<compile_context>
chip_gen: v7x
topology: tpu7x:2x2x1
jax: 0.10.0
libtpu: 0.0.40
codegen_flags: <defaults>
</compile_context>

<pallas_src>
import jax
import jax.numpy as jnp
from jax.experimental import pallas as pl
from jax.experimental.pallas import tpu as pltpu

IN_FEATURES = 16          # stands in for len(filtered_adc_columns)
H1, H2, H3, OUT = 128, 64, 32, 6
HPAD = 128                # hidden layers padded to a full lane tile (VMEM-only)
OUT_PAD = 8               # output padded 6 -> 8 lanes (HBM writeback path)
TB = 1024                 # batch tile: 2 grid steps at BATCH=2048 (even -> v7x megacore)
BATCH = 2048              # demo batch


def _mlp_kernel(x_ref,
                w1_ref, b1_ref,
                w2_ref, b2_ref,
                w3_ref, b3_ref,
                w4_ref, b4_ref,
                o_ref):
    # Activations go through the MXU as bf16 (f32 accumulation); bias-add/ReLU in f32.
    h = x_ref[...].astype(jnp.bfloat16)

    h = jnp.dot(h, w1_ref[...], preferred_element_type=jnp.float32) + b1_ref[...]
    h = jnp.maximum(h, 0.0).astype(jnp.bfloat16)          # relu(fc1)

    h = jnp.dot(h, w2_ref[...], preferred_element_type=jnp.float32) + b2_ref[...]
    h = jnp.maximum(h, 0.0).astype(jnp.bfloat16)          # relu(fc2)

    h = jnp.dot(h, w3_ref[...], preferred_element_type=jnp.float32) + b3_ref[...]
    h = jnp.maximum(h, 0.0).astype(jnp.bfloat16)          # relu(fc3)

    y = jnp.dot(h, w4_ref[...], preferred_element_type=jnp.float32) + b4_ref[...]
    o_ref[...] = y                                        # fc4: (tb, OUT_PAD) f32


def six_axis_nn_forward(x, kparams, *, tb=TB):
    """x: (B, IN_FEATURES) f32; kparams: padded/bf16 kernel params. Returns (B, 6)."""
    B = x.shape[0]
    if B % tb == 0:
        n_blocks, Bp = B // tb, B
    else:
        # Ragged-batch fallback only; prefer picking tb that divides the
        # deployment batch (the extra pad pass is avoidable HBM traffic).
        n_blocks = pl.cdiv(B, tb)
        Bp = n_blocks * tb
        x = jnp.pad(x, ((0, Bp - B), (0, 0)))

    plist = [kparams["w1"], kparams["b1"], kparams["w2"], kparams["b2"],
             kparams["w3"], kparams["b3"], kparams["w4"], kparams["b4"]]

    weight_bytes = sum(int(p.size) * p.dtype.itemsize for p in plist)
    flops = 2 * Bp * (IN_FEATURES * HPAD + HPAD * HPAD + HPAD * HPAD + HPAD * OUT_PAD)
    bytes_accessed = Bp * IN_FEATURES * 4 + weight_bytes + Bp * OUT_PAD * 4

    out = pl.pallas_call(
        _mlp_kernel,
        out_shape=jax.ShapeDtypeStruct((Bp, OUT_PAD), jnp.float32),
        grid=(n_blocks,),
        in_specs=[
            # x: one (tb, IN_FEATURES) tile per grid step (auto double-buffered)
            pl.BlockSpec((tb, IN_FEATURES), lambda i: (i, 0)),
            # weights / biases: constant index_map -> fetched once, VMEM-resident
            *[pl.BlockSpec(p.shape, lambda i: (0, 0)) for p in plist],
        ],
        out_specs=pl.BlockSpec((tb, OUT_PAD), lambda i: (i, 0)),
        compiler_params=pltpu.CompilerParams(
            dimension_semantics=("parallel",),        # megacore on v7x
            vmem_limit_bytes=32 * 1024 * 1024),       # portable across v5e/v6e/v7x
        cost_estimate=pl.CostEstimate(
            flops=flops, transcendentals=0, bytes_accessed=bytes_accessed),
    )(x, *plist)

    return out[:B, :OUT]


def init_params(key):
    """f32, unpadded params matching PyTorch nn.Linear default init
    (uniform in [-1/sqrt(fan_in), 1/sqrt(fan_in)]); W stored as (in, out)."""
    dims = [(IN_FEATURES, H1), (H1, H2), (H2, H3), (H3, OUT)]
    params = {}
    keys = jax.random.split(key, 2 * len(dims))
    for i, (fan_in, fan_out) in enumerate(dims):
        bound = 1.0 / jnp.sqrt(jnp.float32(fan_in))
        params[f"w{i + 1}"] = jax.random.uniform(
            keys[2 * i], (fan_in, fan_out), jnp.float32, -bound, bound)
        params[f"b{i + 1}"] = jax.random.uniform(
            keys[2 * i + 1], (1, fan_out), jnp.float32, -bound, bound)
    return params


def prepare_kernel_params(params):
    """Zero-pad: hidden widths to HPAD lanes, output to OUT_PAD lanes.
    Weights -> bf16 (MXU path), biases stay f32 (f32 bias-add in kernel)."""
    padded_dims = [(IN_FEATURES, HPAD), (HPAD, HPAD), (HPAD, HPAD), (HPAD, OUT_PAD)]
    kparams = {}
    for i, (pin, pout) in enumerate(padded_dims, start=1):
        w = params[f"w{i}"]
        b = params[f"b{i}"]
        w_p = jnp.zeros((pin, pout), jnp.float32).at[:w.shape[0], :w.shape[1]].set(w)
        b_p = jnp.zeros((1, pout), jnp.float32).at[:, :b.shape[1]].set(b)
        kparams[f"w{i}"] = w_p.astype(jnp.bfloat16)
        kparams[f"b{i}"] = b_p
    return kparams


def _reference_forward_f32(x, p):
    """Original (unpadded, f32) module semantics."""
    h = jnp.maximum(x @ p["w1"] + p["b1"], 0.0)
    h = jnp.maximum(h @ p["w2"] + p["b2"], 0.0)
    h = jnp.maximum(h @ p["w3"] + p["b3"], 0.0)
    return h @ p["w4"] + p["b4"]


def _reference_forward_kernel_math(x, kp):
    """Mirrors the kernel exactly: padded bf16 weights, f32 accumulation."""
    def layer(h, w, b, relu):
        y = jnp.dot(h.astype(jnp.bfloat16), w,
                    preferred_element_type=jnp.float32) + b
        return jnp.maximum(y, 0.0) if relu else y
    h = layer(x, kp["w1"], kp["b1"], True)
    h = layer(h, kp["w2"], kp["b2"], True)
    h = layer(h, kp["w3"], kp["b3"], True)
    return layer(h, kp["w4"], kp["b4"], False)[:, :OUT]


if __name__ == "__main__":
    key = jax.random.PRNGKey(0)
    k_param, k_x = jax.random.split(key)
    params = init_params(k_param)
    kparams = prepare_kernel_params(params)
    x = jax.random.normal(k_x, (BATCH, IN_FEATURES), jnp.float32)

    out = six_axis_nn_forward(x, kparams)
    out = jax.block_until_ready(out)
    assert out.shape == (BATCH, OUT)

    # Exact-semantics check (same bf16/padded math as the kernel).
    ref_k = _reference_forward_kernel_math(x, kparams)
    assert jnp.allclose(out, ref_k, atol=1e-3, rtol=1e-3)

    # Sanity check against the original f32 module semantics (bf16 rounding slack).
    ref_f32 = _reference_forward_f32(x, params)
    assert jnp.allclose(out, ref_f32, atol=5e-2, rtol=5e-2)

    print("KERNEL_OK")
</pallas_src>

<mosaic_0001>
module attributes {stable_mosaic.version = 11 : i64} {
  func.func @_mlp_kernel(%arg0: i32, %arg1: memref<1024x16xf32, #tpu.memory_space<vmem>>, %arg2: memref<16x128xbf16, #tpu.memory_space<vmem>>, %arg3: memref<1x128xf32, #tpu.memory_space<vmem>>, %arg4: memref<128x128xbf16, #tpu.memory_space<vmem>>, %arg5: memref<1x128xf32, #tpu.memory_space<vmem>>, %arg6: memref<128x128xbf16, #tpu.memory_space<vmem>>, %arg7: memref<1x128xf32, #tpu.memory_space<vmem>>, %arg8: memref<128x8xbf16, #tpu.memory_space<vmem>>, %arg9: memref<1x8xf32, #tpu.memory_space<vmem>>, %arg10: memref<1024x8xf32, #tpu.memory_space<vmem>>) attributes {dimension_semantics = [#tpu.dimension_semantics<parallel>], iteration_bounds = array<i64: 2>, scalar_prefetch = 0 : i64, scratch_operands = 0 : i64, tpu.core_type = #tpu.core_type<tc>, window_params = [{transform_indices = @transform_0, window_bounds = array<i64: 1024, 16>}, {pipeline_mode = #tpu.pipeline_mode<synchronous>, transform_indices = @transform_1, window_bounds = array<i64: 16, 128>}, {pipeline_mode = #tpu.pipeline_mode<synchronous>, transform_indices = @transform_2, window_bounds = array<i64: 1, 128>}, {pipeline_mode = #tpu.pipeline_mode<synchronous>, transform_indices = @transform_3, window_bounds = array<i64: 128, 128>}, {pipeline_mode = #tpu.pipeline_mode<synchronous>, transform_indices = @transform_4, window_bounds = array<i64: 1, 128>}, {pipeline_mode = #tpu.pipeline_mode<synchronous>, transform_indices = @transform_5, window_bounds = array<i64: 128, 128>}, {pipeline_mode = #tpu.pipeline_mode<synchronous>, transform_indices = @transform_6, window_bounds = array<i64: 1, 128>}, {pipeline_mode = #tpu.pipeline_mode<synchronous>, transform_indices = @transform_7, window_bounds = array<i64: 128, 8>}, {pipeline_mode = #tpu.pipeline_mode<synchronous>, transform_indices = @transform_8, window_bounds = array<i64: 1, 8>}, {transform_indices = @transform_9, window_bounds = array<i64: 1024, 8>}]} {
    %c0 = arith.constant 0 : index
    %c0_0 = arith.constant 0 : index
    %0 = vector.load %arg1[%c0, %c0_0] : memref<1024x16xf32, #tpu.memory_space<vmem>>, vector<1024x16xf32>
    %1 = arith.truncf %0 : vector<1024x16xf32> to vector<1024x16xbf16>
    %c0_1 = arith.constant 0 : index
    %c0_2 = arith.constant 0 : index
    %2 = vector.load %arg2[%c0_1, %c0_2] : memref<16x128xbf16, #tpu.memory_space<vmem>>, vector<16x128xbf16>
    %cst = arith.constant dense<0.000000e+00> : vector<1024x128xf32>
    %3 = tpu.matmul %1, %2, %cst {dimension_numbers = #tpu.dot_dimension_numbers<[1], [0], [0], [1], [0, 0, 1, 1], [], []>} : vector<1024x16xbf16>, vector<16x128xbf16>, vector<1024x128xf32> -> vector<1024x128xf32>
    %c0_3 = arith.constant 0 : index
    %c0_4 = arith.constant 0 : index
    %4 = vector.load %arg3[%c0_3, %c0_4] : memref<1x128xf32, #tpu.memory_space<vmem>>, vector<1x128xf32>
    %5 = vector.broadcast %4 : vector<1x128xf32> to vector<1024x128xf32>
    %6 = arith.addf %3, %5 : vector<1024x128xf32>
    %cst_5 = arith.constant 0.000000e+00 : f32
    %7 = vector.broadcast %cst_5 : f32 to vector<1024x128xf32>
    %8 = arith.maximumf %6, %7 : vector<1024x128xf32>
    %9 = arith.truncf %8 : vector<1024x128xf32> to vector<1024x128xbf16>
    %c0_6 = arith.constant 0 : index
    %c0_7 = arith.constant 0 : index
    %10 = vector.load %arg4[%c0_6, %c0_7] : memref<128x128xbf16, #tpu.memory_space<vmem>>, vector<128x128xbf16>
    %cst_8 = arith.constant dense<0.000000e+00> : vector<1024x128xf32>
    %11 = tpu.matmul %9, %10, %cst_8 {dimension_numbers = #tpu.dot_dimension_numbers<[1], [0], [0], [1], [0, 0, 1, 1], [], []>} : vector<1024x128xbf16>, vector<128x128xbf16>, vector<1024x128xf32> -> vector<1024x128xf32>
    %c0_9 = arith.constant 0 : index
    %c0_10 = arith.constant 0 : index
    %12 = vector.load %arg5[%c0_9, %c0_10] : memref<1x128xf32, #tpu.memory_space<vmem>>, vector<1x128xf32>
    %13 = vector.broadcast %12 : vector<1x128xf32> to vector<1024x128xf32>
    %14 = arith.addf %11, %13 : vector<1024x128xf32>
    %cst_11 = arith.constant 0.000000e+00 : f32
    %15 = vector.broadcast %cst_11 : f32 to vector<1024x128xf32>
    %16 = arith.maximumf %14, %15 : vector<1024x128xf32>
    %17 = arith.truncf %16 : vector<1024x128xf32> to vector<1024x128xbf16>
    %c0_12 = arith.constant 0 : index
    %c0_13 = arith.constant 0 : index
    %18 = vector.load %arg6[%c0_12, %c0_13] : memref<128x128xbf16, #tpu.memory_space<vmem>>, vector<128x128xbf16>
    %cst_14 = arith.constant dense<0.000000e+00> : vector<1024x128xf32>
    %19 = tpu.matmul %17, %18, %cst_14 {dimension_numbers = #tpu.dot_dimension_numbers<[1], [0], [0], [1], [0, 0, 1, 1], [], []>} : vector<1024x128xbf16>, vector<128x128xbf16>, vector<1024x128xf32> -> vector<1024x128xf32>
    %c0_15 = arith.constant 0 : index
    %c0_16 = arith.constant 0 : index
    %20 = vector.load %arg7[%c0_15, %c0_16] : memref<1x128xf32, #tpu.memory_space<vmem>>, vector<1x128xf32>
    %21 = vector.broadcast %20 : vector<1x128xf32> to vector<1024x128xf32>
    %22 = arith.addf %19, %21 : vector<1024x128xf32>
    %cst_17 = arith.constant 0.000000e+00 : f32
    %23 = vector.broadcast %cst_17 : f32 to vector<1024x128xf32>
    %24 = arith.maximumf %22, %23 : vector<1024x128xf32>
    %25 = arith.truncf %24 : vector<1024x128xf32> to vector<1024x128xbf16>
    %c0_18 = arith.constant 0 : index
    %c0_19 = arith.constant 0 : index
    %26 = vector.load %arg8[%c0_18, %c0_19] : memref<128x8xbf16, #tpu.memory_space<vmem>>, vector<128x8xbf16>
    %cst_20 = arith.constant dense<0.000000e+00> : vector<1024x8xf32>
    %27 = tpu.matmul %25, %26, %cst_20 {dimension_numbers = #tpu.dot_dimension_numbers<[1], [0], [0], [1], [0, 0, 1, 1], [], []>} : vector<1024x128xbf16>, vector<128x8xbf16>, vector<1024x8xf32> -> vector<1024x8xf32>
    %c0_21 = arith.constant 0 : index
    %c0_22 = arith.constant 0 : index
    %28 = vector.load %arg9[%c0_21, %c0_22] : memref<1x8xf32, #tpu.memory_space<vmem>>, vector<1x8xf32>
    %29 = vector.broadcast %28 : vector<1x8xf32> to vector<1024x8xf32>
    %30 = arith.addf %27, %29 : vector<1024x8xf32>
    %c0_23 = arith.constant 0 : index
    %c0_24 = arith.constant 0 : index
    %31 = vector.load %arg10[%c0_23, %c0_24] : memref<1024x8xf32, #tpu.memory_space<vmem>>, vector<1024x8xf32>
    tpu.vector_store %arg10[%c0_23, %c0_24], %30 {strides = array<i32>} : memref<1024x8xf32, #tpu.memory_space<vmem>>, vector<1024x8xf32>,
    return
  }
  func.func @transform_0(%arg0: i32) -> (i32, i32) {
    %c0_i32 = arith.constant 0 : i32
    %c0_i32_0 = arith.constant 0 : i32
    return %arg0, %c0_i32 : i32, i32
  }
  func.func @transform_1(%arg0: i32) -> (i32, i32) {
    %c0_i32 = arith.constant 0 : i32
    %c0_i32_0 = arith.constant 0 : i32
    %c0_i32_1 = arith.constant 0 : i32
    return %c0_i32, %c0_i32_0 : i32, i32
  }
  func.func @transform_2(%arg0: i32) -> (i32, i32) {
    %c0_i32 = arith.constant 0 : i32
    %c0_i32_0 = arith.constant 0 : i32
    %c0_i32_1 = arith.constant 0 : i32
    return %c0_i32, %c0_i32_0 : i32, i32
  }
  func.func @transform_3(%arg0: i32) -> (i32, i32) {
    %c0_i32 = arith.constant 0 : i32
    %c0_i32_0 = arith.constant 0 : i32
    %c0_i32_1 = arith.constant 0 : i32
    return %c0_i32, %c0_i32_0 : i32, i32
  }
  func.func @transform_4(%arg0: i32) -> (i32, i32) {
    %c0_i32 = arith.constant 0 : i32
    %c0_i32_0 = arith.constant 0 : i32
    %c0_i32_1 = arith.constant 0 : i32
    return %c0_i32, %c0_i32_0 : i32, i32
  }
  func.func @transform_5(%arg0: i32) -> (i32, i32) {
    %c0_i32 = arith.constant 0 : i32
    %c0_i32_0 = arith.constant 0 : i32
    %c0_i32_1 = arith.constant 0 : i32
    return %c0_i32, %c0_i32_0 : i32, i32
  }
  func.func @transform_6(%arg0: i32) -> (i32, i32) {
    %c0_i32 = arith.constant 0 : i32
    %c0_i32_0 = arith.constant 0 : i32
    %c0_i32_1 = arith.constant 0 : i32
    return %c0_i32, %c0_i32_0 : i32, i32
  }
  func.func @transform_7(%arg0: i32) -> (i32, i32) {
    %c0_i32 = arith.constant 0 : i32
    %c0_i32_0 = arith.constant 0 : i32
    %c0_i32_1 = arith.constant 0 : i32
    return %c0_i32, %c0_i32_0 : i32, i32
  }
  func.func @transform_8(%arg0: i32) -> (i32, i32) {
    %c0_i32 = arith.constant 0 : i32
    %c0_i32_0 = arith.constant 0 : i32
    %c0_i32_1 = arith.constant 0 : i32
    return %c0_i32, %c0_i32_0 : i32, i32
  }
  func.func @transform_9(%arg0: i32) -> (i32, i32) {
    %c0_i32 = arith.constant 0 : i32
    %c0_i32_0 = arith.constant 0 : i32
    return %arg0, %c0_i32 : i32, i32
  }
}

</mosaic_0001>

<llo_original>
// kernel: tpu_custom_call.1
$region0: #{tpu_custom_call.1}
  #allocation0 [shape = 'u32[]', space=smem, size = 0x4, offset = 0x4, fixed_abs, tag = 'smem constant byte address 0x4 - core index']
  #allocation1 [shape = 'u32[144,128]{1,0:T(1,128)}', space=vmem, size = 0x12000, scoped, tag = 'internal scratch']
  %s0 = inlined_call_operand.vmem [shape: f32[2048,16], index: 0, kind: input, shape index: {}]
  %s1 = inlined_call_operand.vmem [shape: bf16[16,128], index: 1, kind: input, shape index: {}]
  %s2 = inlined_call_operand.vmem [shape: f32[1,128], index: 2, kind: input, shape index: {}]
  %s3 = inlined_call_operand.vmem [shape: bf16[128,128], index: 3, kind: input, shape index: {}]
  %s4 = inlined_call_operand.vmem [shape: f32[1,128], index: 4, kind: input, shape index: {}]
  %s5 = inlined_call_operand.vmem [shape: bf16[128,128], index: 5, kind: input, shape index: {}]
  %s6 = inlined_call_operand.vmem [shape: f32[1,128], index: 6, kind: input, shape index: {}]
  %s7 = inlined_call_operand.vmem [shape: bf16[128,8], index: 7, kind: input, shape index: {}]
  %s8 = inlined_call_operand.vmem [shape: f32[1,8], index: 8, kind: input, shape index: {}]
  %s9 = inlined_call_operand.vmem [shape: f32[2048,8], index: 9, kind: output, shape index: {}]
  %s10 = sld [smem:[#allocation0]]
  $region69: #{tpu_custom_call.1} parent=0
    _
  %s12 = ssub.s32 1, %s10
  %s13 = scalar_select 0, %s12, %s10
  loop: start=0, step=1, limit=4
  $region2: #{tpu_custom_call.1} parent=0 // loop_pre_header
    _
  $region3: #{tpu_custom_call.1} parent=0 // loop_header
    %s15 = sphi 0, %s19
    %p16 = scmp.ge.s32.totalorder %s15, 4
    %s25 = sphi 0, %s27
    %s28 = sphi 0, %s25
    %s29 = sphi 0, %s28
    %s45 = sphi 0, %s29
    %s49 = sphi 0, %s49
    %s51 = sphi 0, %s49
    %s52 = sphi 0, %s51
    %s66 = sphi 0, %s52
    %s70 = sphi 0, %s70
    %s72 = sphi 0, %s70
    %s73 = sphi 0, %s72
    %s87 = sphi 0, %s73
    %s91 = sphi 0, %s91
    %s93 = sphi 0, %s91
    %s94 = sphi 0, %s93
    %s108 = sphi 0, %s94
    %s112 = sphi 0, %s112
    %s114 = sphi 0, %s112
    %s115 = sphi 0, %s114
    %s129 = sphi 0, %s115
    %s133 = sphi 0, %s133
    %s135 = sphi 0, %s133
    %s136 = sphi 0, %s135
    %s150 = sphi 0, %s136
    %s154 = sphi 0, %s154
    %s156 = sphi 0, %s154
    %s157 = sphi 0, %s156
    %s171 = sphi 0, %s157
    %s175 = sphi 0, %s175
    %s177 = sphi 0, %s175
    %s178 = sphi 0, %s177
    %s192 = sphi 0, %s178
    %s196 = sphi 0, %s196
    %s198 = sphi 0, %s196
    %s199 = sphi 0, %s198
    %s213 = sphi 0, %s199
    %s219 = sphi 0, %s221
    %s222 = sphi 0, %s219
    %s223 = sphi 0, %s222
    %s239 = sphi 0, %s223
  $region4: #{tpu_custom_call.1} parent=0 // loop_header_branch
    %18 = sbr.rel (%p16) target = $region8
  $region5: #{tpu_custom_call.1} parent=0 // loop_body
    %s20 = ssub.s32 %s15, 1
    %s21 = ssub.s32 %s15, 2
    %s22 = sadd.s32 %s15, 1
    %s23 = ssub.s32 %s15, %s22
    %p24 = scmp.eq.s32.totalorder %s23, 0
    %s26 = sadd.s32 %s25, 1
    %s27 = scalar_select %p24, %s25, %s26
    %p30 = pneg %p24
    %p31 = scmp.eq.s32.totalorder %s15, 1
    %p32 = por %p30, %p31
    %p33 = scmp.ne.s32.totalorder %s25, %s28
    %p34 = scmp.eq.s32.totalorder %s15, 0
    %p35 = por %p33, %p34
    %p36 = scmp.ne.s32.totalorder %s25, %s28
    %p37 = scmp.eq.s32.totalorder %s20, 1
    %p38 = por %p36, %p37
    %p39 = scmp.ne.s32.totalorder %s28, %s29
    %p40 = scmp.eq.s32.totalorder %s20, 0
    %p41 = por %p39, %p40
    %p42 = scmp.ne.s32.totalorder %s28, %s29
    %p43 = scmp.eq.s32.totalorder %s21, 1
    %p44 = por %p42, %p43
    %p46 = scmp.ne.s32.totalorder %s29, %s45
    %p47 = scmp.eq.s32.totalorder %s21, 0
    %p48 = por %p46, %p47
    %s50 = sadd.s32 %s49, 1
    %p53 = scmp.eq.s32.totalorder %s15, 1
    %p54 = scmp.ne.s32.totalorder %s49, %s51
    %p55 = scmp.eq.s32.totalorder %s15, 0
    %p56 = por %p54, %p55
    %p57 = scmp.ne.s32.totalorder %s49, %s51
    %p58 = scmp.eq.s32.totalorder %s20, 1
    %p59 = por %p57, %p58
    %p60 = scmp.ne.s32.totalorder %s51, %s52
    %p61 = scmp.eq.s32.totalorder %s20, 0
    %p62 = por %p60, %p61
    %p63 = scmp.ne.s32.totalorder %s51, %s52
    %p64 = scmp.eq.s32.totalorder %s21, 1
    %p65 = por %p63, %p64
    %p67 = scmp.ne.s32.totalorder %s52, %s66
    %p68 = scmp.eq.s32.totalorder %s21, 0
    %p69 = por %p67, %p68
    %s71 = sadd.s32 %s70, 1
    %p74 = scmp.eq.s32.totalorder %s15, 1
    %p75 = scmp.ne.s32.totalorder %s70, %s72
    %p76 = scmp.eq.s32.totalorder %s15, 0
    %p77 = por %p75, %p76
    %p78 = scmp.ne.s32.totalorder %s70, %s72
    %p79 = scmp.eq.s32.totalorder %s20, 1
    %p80 = por %p78, %p79
    %p81 = scmp.ne.s32.totalorder %s72, %s73
    %p82 = scmp.eq.s32.totalorder %s20, 0
    %p83 = por %p81, %p82
    %p84 = scmp.ne.s32.totalorder %s72, %s73
    %p85 = scmp.eq.s32.totalorder %s21, 1
    %p86 = por %p84, %p85
    %p88 = scmp.ne.s32.totalorder %s73, %s87
    %p89 = scmp.eq.s32.totalorder %s21, 0
    %p90 = por %p88, %p89
    %s92 = sadd.s32 %s91, 1
    %p95 = scmp.eq.s32.totalorder %s15, 1
    %p96 = scmp.ne.s32.totalorder %s91, %s93
    %p97 = scmp.eq.s32.totalorder %s15, 0
    %p98 = por %p96, %p97
    %p99 = scmp.ne.s32.totalorder %s91, %s93
    %p100 = scmp.eq.s32.totalorder %s20, 1
    %p101 = por %p99, %p100
    %p102 = scmp.ne.s32.totalorder %s93, %s94
    %p103 = scmp.eq.s32.totalorder %s20, 0
    %p104 = por %p102, %p103
    %p105 = scmp.ne.s32.totalorder %s93, %s94
    %p106 = scmp.eq.s32.totalorder %s21, 1
    %p107 = por %p105, %p106
    %p109 = scmp.ne.s32.totalorder %s94, %s108
    %p110 = scmp.eq.s32.totalorder %s21, 0
    %p111 = por %p109, %p110
    %s113 = sadd.s32 %s112, 1
    %p116 = scmp.eq.s32.totalorder %s15, 1
    %p117 = scmp.ne.s32.totalorder %s112, %s114
    %p118 = scmp.eq.s32.totalorder %s15, 0
    %p119 = por %p117, %p118
    %p120 = scmp.ne.s32.totalorder %s112, %s114
    %p121 = scmp.eq.s32.totalorder %s20, 1
    %p122 = por %p120, %p121
    %p123 = scmp.ne.s32.totalorder %s114, %s115
    %p124 = scmp.eq.s32.totalorder %s20, 0
    %p125 = por %p123, %p124
    %p126 = scmp.ne.s32.totalorder %s114, %s115
    %p127 = scmp.eq.s32.totalorder %s21, 1
    %p128 = por %p126, %p127
    %p130 = scmp.ne.s32.totalorder %s115, %s129
    %p131 = scmp.eq.s32.totalorder %s21, 0
    %p132 = por %p130, %p131
    %s134 = sadd.s32 %s133, 1
    %p137 = scmp.eq.s32.totalorder %s15, 1
    %p138 = scmp.ne.s32.totalorder %s133, %s135
    %p139 = scmp.eq.s32.totalorder %s15, 0
    %p140 = por %p138, %p139
    %p141 = scmp.ne.s32.totalorder %s133, %s135
    %p142 = scmp.eq.s32.totalorder %s20, 1
    %p143 = por %p141, %p142
    %p144 = scmp.ne.s32.totalorder %s135, %s136
    %p145 = scmp.eq.s32.totalorder %s20, 0
    %p146 = por %p144, %p145
    %p147 = scmp.ne.s32.totalorder %s135, %s136
    %p148 = scmp.eq.s32.totalorder %s21, 1
    %p149 = por %p147, %p148
    %p151 = scmp.ne.s32.totalorder %s136, %s150
    %p152 = scmp.eq.s32.totalorder %s21, 0
    %p153 = por %p151, %p152
    %s155 = sadd.s32 %s154, 1
    %p158 = scmp.eq.s32.totalorder %s15, 1
    %p159 = scmp.ne.s32.totalorder %s154, %s156
    %p160 = scmp.eq.s32.totalorder %s15, 0
    %p161 = por %p159, %p160
    %p162 = scmp.ne.s32.totalorder %s154, %s156
    %p163 = scmp.eq.s32.totalorder %s20, 1
    %p164 = por %p162, %p163
    %p165 = scmp.ne.s32.totalorder %s156, %s157
    %p166 = scmp.eq.s32.totalorder %s20, 0
    %p167 = por %p165, %p166
    %p168 = scmp.ne.s32.totalorder %s156, %s157
    %p169 = scmp.eq.s32.totalorder %s21, 1
    %p170 = por %p168, %p169
    %p172 = scmp.ne.s32.totalorder %s157, %s171
    %p173 = scmp.eq.s32.totalorder %s21, 0
    %p174 = por %p172, %p173
    %s176 = sadd.s32 %s175, 1
    %p179 = scmp.eq.s32.totalorder %s15, 1
    %p180 = scmp.ne.s32.totalorder %s175, %s177
    %p181 = scmp.eq.s32.totalorder %s15, 0
    %p182 = por %p180, %p181
    %p183 = scmp.ne.s32.totalorder %s175, %s177
    %p184 = scmp.eq.s32.totalorder %s20, 1
    %p185 = por %p183, %p184
    %p186 = scmp.ne.s32.totalorder %s177, %s178
    %p187 = scmp.eq.s32.totalorder %s20, 0
    %p188 = por %p186, %p187
    %p189 = scmp.ne.s32.totalorder %s177, %s178
    %p190 = scmp.eq.s32.totalorder %s21, 1
    %p191 = por %p189, %p190
    %p193 = scmp.ne.s32.totalorder %s178, %s192
    %p194 = scmp.eq.s32.totalorder %s21, 0
    %p195 = por %p193, %p194
    %s197 = sadd.s32 %s196, 1
    %p200 = scmp.eq.s32.totalorder %s15, 1
    %p201 = scmp.ne.s32.totalorder %s196, %s198
    %p202 = scmp.eq.s32.totalorder %s15, 0
    %p203 = por %p201, %p202
    %p204 = scmp.ne.s32.totalorder %s196, %s198
    %p205 = scmp.eq.s32.totalorder %s20, 1
    %p206 = por %p204, %p205
    %p207 = scmp.ne.s32.totalorder %s198, %s199
    %p208 = scmp.eq.s32.totalorder %s20, 0
    %p209 = por %p207, %p208
    %p210 = scmp.ne.s32.totalorder %s198, %s199
    %p211 = scmp.eq.s32.totalorder %s21, 1
    %p212 = por %p210, %p211
    %p214 = scmp.ne.s32.totalorder %s199, %s213
    %p215 = scmp.eq.s32.totalorder %s21, 0
    %p216 = por %p214, %p215
    %s217 = ssub.s32 %s15, %s22
    %p218 = scmp.eq.s32.totalorder %s217, 0
    %s220 = sadd.s32 %s219, 1
    %s221 = scalar_select %p218, %s219, %s220
    %p224 = pneg %p218
    %p225 = scmp.eq.s32.totalorder %s15, 1
    %p226 = por %p224, %p225
    %p227 = scmp.ne.s32.totalorder %s219, %s222
    %p228 = scmp.eq.s32.totalorder %s15, 0
    %p229 = por %p227, %p228
    %p230 = scmp.ne.s32.totalorder %s219, %s222
    %p231 = scmp.eq.s32.totalorder %s20, 1
    %p232 = por %p230, %p231
    %p233 = scmp.ne.s32.totalorder %s222, %s223
    %p234 = scmp.eq.s32.totalorder %s20, 0
    %p235 = por %p233, %p234
    %p236 = scmp.ne.s32.totalorder %s222, %s223
    %p237 = scmp.eq.s32.totalorder %s21, 1
    %p238 = por %p236, %p237
    %p240 = scmp.ne.s32.totalorder %s223, %s239
    %p241 = scmp.eq.s32.totalorder %s21, 0
    %p242 = por %p240, %p241
    %p243 = scmp.le.s32.totalorder 1, %s15
    %p244 = scmp.lt.s32.totalorder %s15, 3
    %p245 = pnand %p243, %p244
    %p246 = pneg %p245
    // Predicated region
    $region9: #{tpu_custom_call.1} parent=5 // pred_check
      _
    $region10: #{tpu_custom_call.1} parent=5 // pred_check_branch
      %248 = sbr.rel (%p245) target = $region12
    $region11: #{tpu_custom_call.1} parent=5 // pred_region
      %s249 = ssub.s32 %s15, 1
      // Predicated region
      $region13: #{tpu_custom_call.1} parent=11 // pred_check
        %p250 = pneg %p62
      $region14: #{tpu_custom_call.1} parent=11 // pred_check_branch
        %252 = sbr.rel (%p250) target = $region16
      $region15: #{tpu_custom_call.1} parent=11 // pred_region
        _
      $region16: #{tpu_custom_call.1} parent=11 // pred_fallthru
        _
      // Predicated region
      $region17: #{tpu_custom_call.1} parent=11 // pred_check
        %p253 = pneg %p83
      $region18: #{tpu_custom_call.1} parent=11 // pred_check_branch
        %255 = sbr.rel (%p253) target = $region20
      $region19: #{tpu_custom_call.1} parent=11 // pred_region
        _
      $region20: #{tpu_custom_call.1} parent=11 // pred_fallthru
        _
      // Predicated region
      $region21: #{tpu_custom_call.1} parent=11 // pred_check
        %p256 = pneg %p104
      $region22: #{tpu_custom_call.1} parent=11 // pred_check_branch
        %258 = sbr.rel (%p256) target = $region24
      $region23: #{tpu_custom_call.1} parent=11 // pred_region
        _
      $region24: #{tpu_custom_call.1} parent=11 // pred_fallthru
        _
      // Predicated region
      $region25: #{tpu_custom_call.1} parent=11 // pred_check
        %p259 = pneg %p125
      $region26: #{tpu_custom_call.1} parent=11 // pred_check_branch
        %261 = sbr.rel (%p259) target = $region28
      $region27: #{tpu_custom_call.1} parent=11 // pred_region
        _
      $region28: #{tpu_custom_call.1} parent=11 // pred_fallthru
        _
      // Predicated region
      $region29: #{tpu_custom_call.1} parent=11 // pred_check
        %p262 = pneg %p146
      $region30: #{tpu_custom_call.1} parent=11 // pred_check_branch
        %264 = sbr.rel (%p262) target = $region32
      $region31: #{tpu_custom_call.1} parent=11 // pred_region
        _
      $region32: #{tpu_custom_call.1} parent=11 // pred_fallthru
        _
      // Predicated region
      $region33: #{tpu_custom_call.1} parent=11 // pred_check
        %p265 = pneg %p167
      $region34: #{tpu_custom_call.1} parent=11 // pred_check_branch
        %267 = sbr.rel (%p265) target = $region36
      $region35: #{tpu_custom_call.1} parent=11 // pred_region
        _
      $region36: #{tpu_custom_call.1} parent=11 // pred_fallthru
        _
      // Predicated region
      $region37: #{tpu_custom_call.1} parent=11 // pred_check
        %p268 = pneg %p188
      $region38: #{tpu_custom_call.1} parent=11 // pred_check_branch
        %270 = sbr.rel (%p268) target = $region40
      $region39: #{tpu_custom_call.1} parent=11 // pred_region
        _
      $region40: #{tpu_custom_call.1} parent=11 // pred_fallthru
        _
      // Predicated region
      $region41: #{tpu_custom_call.1} parent=11 // pred_check
        %p271 = pneg %p209
      $region42: #{tpu_custom_call.1} parent=11 // pred_check_branch
        %273 = sbr.rel (%p271) target = $region44
      $region43: #{tpu_custom_call.1} parent=11 // pred_region
        _
      $region44: #{tpu_custom_call.1} parent=11 // pred_fallthru
        _
    $region12: #{tpu_custom_call.1} parent=5 // pred_fallthru
      _
    %p274 = scmp.lt.s32.totalorder %s15, 2
    // Predicated region
    $region45: #{tpu_custom_call.1} parent=5 // pred_check
      %p275 = pneg %p274
    $region46: #{tpu_custom_call.1} parent=5 // pred_check_branch
      %277 = sbr.rel (%p275) target = $region48
    $region47: #{tpu_custom_call.1} parent=5 // pred_region
      // Predicated region
      $region49: #{tpu_custom_call.1} parent=47 // pred_check
        %p278 = pneg %p35
      $region50: #{tpu_custom_call.1} parent=47 // pred_check_branch
        %280 = sbr.rel (%p278) target = $region52
      $region51: #{tpu_custom_call.1} parent=47 // pred_region
        %s281 = smul.u32 128, %s15
        %p282 = scmp.lt.s32.totalorder %s281, 255
        %s283 = scalar_select %p282, %s281, 255
        %s284 = smul.addr %s283, 8
        %s285 = scalar_lea.vmem %s0, %s284
        %s286 = smul.u32 128, %s15
      $region52: #{tpu_custom_call.1} parent=47 // pred_fallthru
        _
    $region48: #{tpu_custom_call.1} parent=5 // pred_fallthru
      _
    %p287 = scmp.le.s32.totalorder 1, %s15
    %p288 = scmp.lt.s32.totalorder %s15, 3
    %p289 = pnand %p287, %p288
    %p290 = pneg %p289
    // Predicated region
    $region53: #{tpu_custom_call.1} parent=5 // pred_check
      _
    $region54: #{tpu_custom_call.1} parent=5 // pred_check_branch
      %292 = sbr.rel (%p289) target = $region56
    $region55: #{tpu_custom_call.1} parent=5 // pred_region
      %s293 = ssub.s32 %s15, 1
      %s294 = smul.u32 128, %s20
      %p295 = scmp.lt.s32.totalorder %s294, 255
      %s296 = scalar_select %p295, %s294, 255
      %s297 = smul.addr %s296, 8
      %s298 = scalar_lea.vmem %s0, %s297
      %p299 = pneg %p41
      %p300 = pneg %p38
      %p301 = pneg %p62
      %p302 = pneg %p59
      %p303 = pneg %p83
      %p304 = pneg %p80
      %p305 = pneg %p104
      %p306 = pneg %p101
      %p307 = pneg %p125
      %p308 = pneg %p122
      %p309 = pneg %p146
      %p310 = pneg %p143
      %p311 = pneg %p167
      %p312 = pneg %p164
      %p313 = pneg %p188
      %p314 = pneg %p185
      %p315 = pneg %p209
      %p316 = pneg %p206
      %p317 = pneg %p235
      %p318 = pneg %p232
      %s319 = smul.u32 128, %s20
      %p320 = scmp.lt.s32.totalorder %s319, 255
      %s321 = scalar_select %p320, %s319, 255
      %s322 = smul.addr %s321, 8
      %s323 = scalar_lea.vmem %s9, %s322
      %s324 = smul.u32 128, %s20
      %p325 = scmp.lt.s32.totalorder %s324, 255
      %s326 = scalar_select %p325, %s324, 255
      %s327 = smul.addr %s326, 8
      %s328 = scalar_lea.vmem %s0, %s327
      %s329 = smul.u32 128, %s20
      %s330 = smul.u32 128, %s20
      %p331 = scmp.lt.s32.totalorder %s330, 255
      %s332 = scalar_select %p331, %s330, 255
      %s333 = smul.addr %s332, 8
      %s334 = scalar_lea.vmem %s9, %s333
      %s335 = smul.u32 128, %s20
      %v337 = vld [vmem:[%s328] sm:$0xff]
      %v338 = vld [vmem:[%s328 + $0x8] sm:$0xff]
      %v339 = vld [vmem:[%s328 + $0x10] sm:$0xff]
      %v340 = vld [vmem:[%s328 + $0x18] sm:$0xff]
      %v341 = vld [vmem:[%s328 + $0x20] sm:$0xff]
      %v342 = vld [vmem:[%s328 + $0x28] sm:$0xff]
      %v343 = vld [vmem:[%s328 + $0x30] sm:$0xff]
      %v344 = vld [vmem:[%s328 + $0x38] sm:$0xff]
      %v345 = vld [vmem:[%s328 + $0x40] sm:$0xff]
      %v346 = vld [vmem:[%s328 + $0x48] sm:$0xff]
      %v347 = vld [vmem:[%s328 + $0x50] sm:$0xff]
      %v348 = vld [vmem:[%s328 + $0x58] sm:$0xff]
      %v349 = vld [vmem:[%s328 + $0x60] sm:$0xff]
      %v350 = vld [vmem:[%s328 + $0x68] sm:$0xff]
      %v351 = vld [vmem:[%s328 + $0x70] sm:$0xff]
      %v352 = vld [vmem:[%s328 + $0x78] sm:$0xff]
      %v353 = vld [vmem:[%s328 + $0x80] sm:$0xff]
      %v354 = vld [vmem:[%s328 + $0x88] sm:$0xff]
      %v355 = vld [vmem:[%s328 + $0x90] sm:$0xff]
      %v356 = vld [vmem:[%s328 + $0x98] sm:$0xff]
      %v357 = vld [vmem:[%s328 + $0xa0] sm:$0xff]
      %v358 = vld [vmem:[%s328 + $0xa8] sm:$0xff]
      %v359 = vld [vmem:[%s328 + $0xb0] sm:$0xff]
      %v360 = vld [vmem:[%s328 + $0xb8] sm:$0xff]
      %v361 = vld [vmem:[%s328 + $0xc0] sm:$0xff]
      %v362 = vld [vmem:[%s328 + $0xc8] sm:$0xff]
      %v363 = vld [vmem:[%s328 + $0xd0] sm:$0xff]
      %v364 = vld [vmem:[%s328 + $0xd8] sm:$0xff]
      %v365 = vld [vmem:[%s328 + $0xe0] sm:$0xff]
      %v366 = vld [vmem:[%s328 + $0xe8] sm:$0xff]
      %v367 = vld [vmem:[%s328 + $0xf0] sm:$0xff]
      %v368 = vld [vmem:[%s328 + $0xf8] sm:$0xff]
      %v369 = vld [vmem:[%s328 + $0x100] sm:$0xff]
      %v370 = vld [vmem:[%s328 + $0x108] sm:$0xff]
      %v371 = vld [vmem:[%s328 + $0x110] sm:$0xff]
      %v372 = vld [vmem:[%s328 + $0x118] sm:$0xff]
      %v373 = vld [vmem:[%s328 + $0x120] sm:$0xff]
      %v374 = vld [vmem:[%s328 + $0x128] sm:$0xff]
      %v375 = vld [vmem:[%s328 + $0x130] sm:$0xff]
      %v376 = vld [vmem:[%s328 + $0x138] sm:$0xff]
      %v377 = vld [vmem:[%s328 + $0x140] sm:$0xff]
      %v378 = vld [vmem:[%s328 + $0x148] sm:$0xff]
      %v379 = vld [vmem:[%s328 + $0x150] sm:$0xff]
      %v380 = vld [vmem:[%s328 + $0x158] sm:$0xff]
      %v381 = vld [vmem:[%s328 + $0x160] sm:$0xff]
      %v382 = vld [vmem:[%s328 + $0x168] sm:$0xff]
      %v383 = vld [vmem:[%s328 + $0x170] sm:$0xff]
      %v384 = vld [vmem:[%s328 + $0x178] sm:$0xff]
      %v385 = vld [vmem:[%s328 + $0x180] sm:$0xff]
      %v386 = vld [vmem:[%s328 + $0x188] sm:$0xff]
      %v387 = vld [vmem:[%s328 + $0x190] sm:$0xff]
      %v388 = vld [vmem:[%s328 + $0x198] sm:$0xff]
      %v389 = vld [vmem:[%s328 + $0x1a0] sm:$0xff]
      %v390 = vld [vmem:[%s328 + $0x1a8] sm:$0xff]
      %v391 = vld [vmem:[%s328 + $0x1b0] sm:$0xff]
      %v392 = vld [vmem:[%s328 + $0x1b8] sm:$0xff]
      %v393 = vld [vmem:[%s328 + $0x1c0] sm:$0xff]
      %v394 = vld [vmem:[%s328 + $0x1c8] sm:$0xff]
      %v395 = vld [vmem:[%s328 + $0x1d0] sm:$0xff]
      %v396 = vld [vmem:[%s328 + $0x1d8] sm:$0xff]
      %v397 = vld [vmem:[%s328 + $0x1e0] sm:$0xff]
      %v398 = vld [vmem:[%s328 + $0x1e8] sm:$0xff]
      %v399 = vld [vmem:[%s328 + $0x1f0] sm:$0xff]
      %v400 = vld [vmem:[%s328 + $0x1f8] sm:$0xff]
      %v401 = vld [vmem:[%s328 + $0x200] sm:$0xff]
      %v402 = vld [vmem:[%s328 + $0x208] sm:$0xff]
      %v403 = vld [vmem:[%s328 + $0x210] sm:$0xff]
      %v404 = vld [vmem:[%s328 + $0x218] sm:$0xff]
      %v405 = vld [vmem:[%s328 + $0x220] sm:$0xff]
      %v406 = vld [vmem:[%s328 + $0x228] sm:$0xff]
      %v407 = vld [vmem:[%s328 + $0x230] sm:$0xff]
      %v408 = vld [vmem:[%s328 + $0x238] sm:$0xff]
      %v409 = vld [vmem:[%s328 + $0x240] sm:$0xff]
      %v410 = vld [vmem:[%s328 + $0x248] sm:$0xff]
      %v411 = vld [vmem:[%s328 + $0x250] sm:$0xff]
      %v412 = vld [vmem:[%s328 + $0x258] sm:$0xff]
      %v413 = vld [vmem:[%s328 + $0x260] sm:$0xff]
      %v414 = vld [vmem:[%s328 + $0x268] sm:$0xff]
      %v415 = vld [vmem:[%s328 + $0x270] sm:$0xff]
      %v416 = vld [vmem:[%s328 + $0x278] sm:$0xff]
      %v417 = vld [vmem:[%s328 + $0x280] sm:$0xff]
      %v418 = vld [vmem:[%s328 + $0x288] sm:$0xff]
      %v419 = vld [vmem:[%s328 + $0x290] sm:$0xff]
      %v420 = vld [vmem:[%s328 + $0x298] sm:$0xff]
      %v421 = vld [vmem:[%s328 + $0x2a0] sm:$0xff]
      %v422 = vld [vmem:[%s328 + $0x2a8] sm:$0xff]
      %v423 = vld [vmem:[%s328 + $0x2b0] sm:$0xff]
      %v424 = vld [vmem:[%s328 + $0x2b8] sm:$0xff]
      %v425 = vld [vmem:[%s328 + $0x2c0] sm:$0xff]
      %v426 = vld [vmem:[%s328 + $0x2c8] sm:$0xff]
      %v427 = vld [vmem:[%s328 + $0x2d0] sm:$0xff]
      %v428 = vld [vmem:[%s328 + $0x2d8] sm:$0xff]
      %v429 = vld [vmem:[%s328 + $0x2e0] sm:$0xff]
      %v430 = vld [vmem:[%s328 + $0x2e8] sm:$0xff]
      %v431 = vld [vmem:[%s328 + $0x2f0] sm:$0xff]
      %v432 = vld [vmem:[%s328 + $0x2f8] sm:$0xff]
      %v433 = vld [vmem:[%s328 + $0x300] sm:$0xff]
      %v434 = vld [vmem:[%s328 + $0x308] sm:$0xff]
      %v435 = vld [vmem:[%s328 + $0x310] sm:$0xff]
      %v436 = vld [vmem:[%s328 + $0x318] sm:$0xff]
      %v437 = vld [vmem:[%s328 + $0x320] sm:$0xff]
      %v438 = vld [vmem:[%s328 + $0x328] sm:$0xff]
      %v439 = vld [vmem:[%s328 + $0x330] sm:$0xff]
      %v440 = vld [vmem:[%s328 + $0x338] sm:$0xff]
      %v441 = vld [vmem:[%s328 + $0x340] sm:$0xff]
      %v442 = vld [vmem:[%s328 + $0x348] sm:$0xff]
      %v443 = vld [vmem:[%s328 + $0x350] sm:$0xff]
      %v444 = vld [vmem:[%s328 + $0x358] sm:$0xff]
      %v445 = vld [vmem:[%s328 + $0x360] sm:$0xff]
      %v446 = vld [vmem:[%s328 + $0x368] sm:$0xff]
      %v447 = vld [vmem:[%s328 + $0x370] sm:$0xff]
      %v448 = vld [vmem:[%s328 + $0x378] sm:$0xff]
      %v449 = vld [vmem:[%s328 + $0x380] sm:$0xff]
      %v450 = vld [vmem:[%s328 + $0x388] sm:$0xff]
      %v451 = vld [vmem:[%s328 + $0x390] sm:$0xff]
      %v452 = vld [vmem:[%s328 + $0x398] sm:$0xff]
      %v453 = vld [vmem:[%s328 + $0x3a0] sm:$0xff]
      %v454 = vld [vmem:[%s328 + $0x3a8] sm:$0xff]
      %v455 = vld [vmem:[%s328 + $0x3b0] sm:$0xff]
      %v456 = vld [vmem:[%s328 + $0x3b8] sm:$0xff]
      %v457 = vld [vmem:[%s328 + $0x3c0] sm:$0xff]
      %v458 = vld [vmem:[%s328 + $0x3c8] sm:$0xff]
      %v459 = vld [vmem:[%s328 + $0x3d0] sm:$0xff]
      %v460 = vld [vmem:[%s328 + $0x3d8] sm:$0xff]
      %v461 = vld [vmem:[%s328 + $0x3e0] sm:$0xff]
      %v462 = vld [vmem:[%s328 + $0x3e8] sm:$0xff]
      %v463 = vld [vmem:[%s328 + $0x3f0] sm:$0xff]
      %v464 = vld [vmem:[%s328 + $0x3f8] sm:$0xff]
      %v465 = vpack.c.bf16 %v338, %v337
      %v466 = vpack.c.bf16 %v340, %v339
      %v467 = vpack.c.bf16 %v342, %v341
      %v468 = vpack.c.bf16 %v344, %v343
      %v469 = vpack.c.bf16 %v346, %v345
      %v470 = vpack.c.bf16 %v348, %v347
      %v471 = vpack.c.bf16 %v350, %v349
      %v472 = vpack.c.bf16 %v352, %v351
      %v473 = vpack.c.bf16 %v354, %v353
      %v474 = vpack.c.bf16 %v356, %v355
      %v475 = vpack.c.bf16 %v358, %v357
      %v476 = vpack.c.bf16 %v360, %v359
      %v477 = vpack.c.bf16 %v362, %v361
      %v478 = vpack.c.bf16 %v364, %v363
      %v479 = vpack.c.bf16 %v366, %v365
      %v480 = vpack.c.bf16 %v368, %v367
      %v481 = vpack.c.bf16 %v370, %v369
      %v482 = vpack.c.bf16 %v372, %v371
      %v483 = vpack.c.bf16 %v374, %v373
      %v484 = vpack.c.bf16 %v376, %v375
      %v485 = vpack.c.bf16 %v378, %v377
      %v486 = vpack.c.bf16 %v380, %v379
      %v487 = vpack.c.bf16 %v382, %v381
      %v488 = vpack.c.bf16 %v384, %v383
      %v489 = vpack.c.bf16 %v386, %v385
      %v490 = vpack.c.bf16 %v388, %v387
      %v491 = vpack.c.bf16 %v390, %v389
      %v492 = vpack.c.bf16 %v392, %v391
      %v493 = vpack.c.bf16 %v394, %v393
      %v494 = vpack.c.bf16 %v396, %v395
      %v495 = vpack.c.bf16 %v398, %v397
      %v496 = vpack.c.bf16 %v400, %v399
      %v497 = vpack.c.bf16 %v402, %v401
      %v498 = vpack.c.bf16 %v404, %v403
      %v499 = vpack.c.bf16 %v406, %v405
      %v500 = vpack.c.bf16 %v408, %v407
      %v501 = vpack.c.bf16 %v410, %v409
      %v502 = vpack.c.bf16 %v412, %v411
      %v503 = vpack.c.bf16 %v414, %v413
      %v504 = vpack.c.bf16 %v416, %v415
      %v505 = vpack.c.bf16 %v418, %v417
      %v506 = vpack.c.bf16 %v420, %v419
      %v507 = vpack.c.bf16 %v422, %v421
      %v508 = vpack.c.bf16 %v424, %v423
      %v509 = vpack.c.bf16 %v426, %v425
      %v510 = vpack.c.bf16 %v428, %v427
      %v511 = vpack.c.bf16 %v430, %v429
      %v512 = vpack.c.bf16 %v432, %v431
      %v513 = vpack.c.bf16 %v434, %v433
      %v514 = vpack.c.bf16 %v436, %v435
      %v515 = vpack.c.bf16 %v438, %v437
      %v516 = vpack.c.bf16 %v440, %v439
      %v517 = vpack.c.bf16 %v442, %v441
      %v518 = vpack.c.bf16 %v444, %v443
      %v519 = vpack.c.bf16 %v446, %v445
      %v520 = vpack.c.bf16 %v448, %v447
      %v521 = vpack.c.bf16 %v450, %v449
      %v522 = vpack.c.bf16 %v452, %v451
      %v523 = vpack.c.bf16 %v454, %v453
      %v524 = vpack.c.bf16 %v456, %v455
      %v525 = vpack.c.bf16 %v458, %v457
      %v526 = vpack.c.bf16 %v460, %v459
      %v527 = vpack.c.bf16 %v462, %v461
      %v528 = vpack.c.bf16 %v464, %v463
      %v529 = vld [vmem:[%s1] sm:$0xf]
      %v530 = vld [vmem:[%s1 + $0x4] sm:$0xf]
      %v531 = vld [vmem:[%s2] sm:$0x1]
      %v533 = vlaneseq
      %v534 = vshrl.u32 %v533, 7
      %v535 = vsub.s32 0, %v534
      %v536 = vrot.slane %v531, %v535
      %v540 = vunpack.c.l.b16 %v529
      %v541 = vunpack.c.l.b16 %v530
      %v542 = vpack.c.b16 %v541, %v540
      %vm544 = vcmask 130048
      %v546 = vsel %vm544, %v465, 0
      %v549 = vsel %vm544, %v466, 0
      %v552 = vsel %vm544, %v467, 0
      %v555 = vsel %vm544, %v468, 0
      %v558 = vsel %vm544, %v469, 0
      %v561 = vsel %vm544, %v470, 0
      %v564 = vsel %vm544, %v471, 0
      %v567 = vsel %vm544, %v472, 0
      %v570 = vsel %vm544, %v473, 0
      %v573 = vsel %vm544, %v474, 0
      %v576 = vsel %vm544, %v475, 0
      %v579 = vsel %vm544, %v476, 0
      %v582 = vsel %vm544, %v477, 0
      %v585 = vsel %vm544, %v478, 0
      %v588 = vsel %vm544, %v479, 0
      %v591 = vsel %vm544, %v480, 0
      %v594 = vsel %vm544, %v481, 0
      %v597 = vsel %vm544, %v482, 0
      %v600 = vsel %vm544, %v483, 0
      %v603 = vsel %vm544, %v484, 0
      %v606 = vsel %vm544, %v485, 0
      %v609 = vsel %vm544, %v486, 0
      %v612 = vsel %vm544, %v487, 0
      %v615 = vsel %vm544, %v488, 0
      %v618 = vsel %vm544, %v489, 0
      %v621 = vsel %vm544, %v490, 0
      %v624 = vsel %vm544, %v491, 0
      %v627 = vsel %vm544, %v492, 0
      %v630 = vsel %vm544, %v493, 0
      %v633 = vsel %vm544, %v494, 0
      %v636 = vsel %vm544, %v495, 0
      %v639 = vsel %vm544, %v496, 0
      %v642 = vsel %vm544, %v497, 0
      %v645 = vsel %vm544, %v498, 0
      %v648 = vsel %vm544, %v499, 0
      %v651 = vsel %vm544, %v500, 0
      %v654 = vsel %vm544, %v501, 0
      %v657 = vsel %vm544, %v502, 0
      %v660 = vsel %vm544, %v503, 0
      %v663 = vsel %vm544, %v504, 0
      %v666 = vsel %vm544, %v505, 0
      %v669 = vsel %vm544, %v506, 0
      %v672 = vsel %vm544, %v507, 0
      %v675 = vsel %vm544, %v508, 0
      %v678 = vsel %vm544, %v509, 0
      %v681 = vsel %vm544, %v510, 0
      %v684 = vsel %vm544, %v511, 0
      %v687 = vsel %vm544, %v512, 0
      %v690 = vsel %vm544, %v513, 0
      %v693 = vsel %vm544, %v514, 0
      %v696 = vsel %vm544, %v515, 0
      %v699 = vsel %vm544, %v516, 0
      %v702 = vsel %vm544, %v517, 0
      %v705 = vsel %vm544, %v518, 0
      %v708 = vsel %vm544, %v519, 0
      %v711 = vsel %vm544, %v520, 0
      %v714 = vsel %vm544, %v521, 0
      %v717 = vsel %vm544, %v522, 0
      %v720 = vsel %vm544, %v523, 0
      %v723 = vsel %vm544, %v524, 0
      %v726 = vsel %vm544, %v525, 0
      %v729 = vsel %vm544, %v526, 0
      %v732 = vsel %vm544, %v527, 0
      %v735 = vsel %vm544, %v528, 0
      %737 = vmatprep.subr.bf16.mxu0 0
      %738 = vmatpush1.bf16.msra.mxu0 %v542
      %739 = vmatprep.subr.bf16.mxu0 0
      %740 = vmatpush1.bf16.msra.mxu0 0
      %741 = vmatprep.subr.bf16.mxu0 0
      %742 = vmatpush1.bf16.msra.mxu0 0
      %743 = vmatprep.subr.bf16.mxu0 0
      %744 = vmatpush1.bf16.msra.mxu0 0
      %745 = vmatprep.subr.bf16.mxu0 0
      %746 = vmatpush1.bf16.msra.mxu0 0
      %747 = vmatprep.subr.bf16.mxu0 0
      %748 = vmatpush1.bf16.msra.mxu0 0
      %749 = vmatprep.subr.bf16.mxu0 0
      %750 = vmatpush1.bf16.msra.mxu0 0
      %751 = vmatprep.subr.bf16.mxu0 0
      %752 = vmatpush1.bf16.msra.mxu0 0
      %753 = vmatprep.subr.bf16.mxu0 0
      %754 = vmatpush1.bf16.msra.mxu0 0
      %755 = vmatprep.subr.bf16.mxu0 0
      %756 = vmatpush1.bf16.msra.mxu0 0
      %757 = vmatprep.subr.bf16.mxu0 0
      %758 = vmatpush1.bf16.msra.mxu0 0
      %759 = vmatprep.subr.bf16.mxu0 0
      %760 = vmatpush1.bf16.msra.mxu0 0
      %761 = vmatprep.subr.bf16.mxu0 0
      %762 = vmatpush1.bf16.msra.mxu0 0
      %763 = vmatprep.subr.bf16.mxu0 0
      %764 = vmatpush1.bf16.msra.mxu0 0
      %765 = vmatprep.subr.bf16.mxu0 0
      %766 = vmatpush1.bf16.msra.mxu0 0
      %767 = vmatprep.subr.bf16.mxu0 0
      %768 = vmatpush1.bf16.msra.mxu0 0
      %769 = vmatprep.mubr.bf16.mxu0 0
      %770 = vmatmul.mubr.bf16.gmra.mrb[0].mxu0 %v546
      %v771 = vpop.f32.mrb[0].mxu0
      %v772 = vadd.f32 %v536, %v771
      %v773 = vpop.f32.mrb[0].mxu0
      %v774 = vpop.f32.mrb[0].mxu0
      %v775 = vadd.f32 %v536, %v774
      %v776 = vpop.f32.mrb[0].mxu0
      %777 = vmatprep.mubr.bf16.mxu0 0
      %778 = vmatmul.mubr.bf16.gmra.mrb[0].mxu0 %v549
      %v779 = vpop.f32.mrb[0].mxu0
      %v780 = vadd.f32 %v536, %v779
      %v781 = vpop.f32.mrb[0].mxu0
      %v782 = vpop.f32.mrb[0].mxu0
      %v783 = vadd.f32 %v536, %v782
      %v784 = vpop.f32.mrb[0].mxu0
      %785 = vmatprep.mubr.bf16.mxu0 0
      %786 = vmatmul.mubr.bf16.gmra.mrb[0].mxu0 %v552
      %v787 = vpop.f32.mrb[0].mxu0
      %v788 = vadd.f32 %v536, %v787
      %v789 = vpop.f32.mrb[0].mxu0
      %v790 = vpop.f32.mrb[0].mxu0
      %v791 = vadd.f32 %v536, %v790
      %v792 = vpop.f32.mrb[0].mxu0
      %793 = vmatprep.mubr.bf16.mxu0 0
      %794 = vmatmul.mubr.bf16.gmra.mrb[0].mxu0 %v555
      %v795 = vpop.f32.mrb[0].mxu0
      %v796 = vadd.f32 %v536, %v795
      %v797 = vpop.f32.mrb[0].mxu0
      %v798 = vpop.f32.mrb[0].mxu0
      %v799 = vadd.f32 %v536, %v798
      %v800 = vpop.f32.mrb[0].mxu0
      %801 = vmatprep.mubr.bf16.mxu0 0
      %802 = vmatmul.mubr.bf16.gmra.mrb[0].mxu0 %v558
      %v803 = vpop.f32.mrb[0].mxu0
      %v804 = vadd.f32 %v536, %v803
      %v805 = vpop.f32.mrb[0].mxu0
      %v806 = vpop.f32.mrb[0].mxu0
      %v807 = vadd.f32 %v536, %v806
      %v808 = vpop.f32.mrb[0].mxu0
      %809 = vmatprep.mubr.bf16.mxu0 0
      %810 = vmatmul.mubr.bf16.gmra.mrb[0].mxu0 %v561
      %v811 = vpop.f32.mrb[0].mxu0
      %v812 = vadd.f32 %v536, %v811
      %v813 = vpop.f32.mrb[0].mxu0
      %v814 = vpop.f32.mrb[0].mxu0
      %v815 = vadd.f32 %v536, %v814
      %v816 = vpop.f32.mrb[0].mxu0
      %817 = vmatprep.mubr.bf16.mxu0 0
      %818 = vmatmul.mubr.bf16.gmra.mrb[0].mxu0 %v564
      %v819 = vpop.f32.mrb[0].mxu0
      %v820 = vadd.f32 %v536, %v819
      %v821 = vpop.f32.mrb[0].mxu0
      %v822 = vpop.f32.mrb[0].mxu0
      %v823 = vadd.f32 %v536, %v822
      %v824 = vpop.f32.mrb[0].mxu0
      %825 = vmatprep.mubr.bf16.mxu0 0
      %826 = vmatmul.mubr.bf16.gmra.mrb[0].mxu0 %v567
      %v827 = vpop.f32.mrb[0].mxu0
      %v828 = vadd.f32 %v536, %v827
      %v829 = vpop.f32.mrb[0].mxu0
      %v830 = vpop.f32.mrb[0].mxu0
      %v831 = vadd.f32 %v536, %v830
      %v832 = vpop.f32.mrb[0].mxu0
      %833 = vmatprep.mubr.bf16.mxu0 0
      %834 = vmatmul.mubr.bf16.gmra.mrb[0].mxu0 %v570
      %v835 = vpop.f32.mrb[0].mxu0
      %v836 = vadd.f32 %v536, %v835
      %v837 = vpop.f32.mrb[0].mxu0
      %v838 = vpop.f32.mrb[0].mxu0
      %v839 = vadd.f32 %v536, %v838
      %v840 = vpop.f32.mrb[0].mxu0
      %841 = vmatprep.mubr.bf16.mxu0 0
      %842 = vmatmul.mubr.bf16.gmra.mrb[0].mxu0 %v573
      %v843 = vpop.f32.mrb[0].mxu0
      %v844 = vadd.f32 %v536, %v843
      %v845 = vpop.f32.mrb[0].mxu0
      %v846 = vpop.f32.mrb[0].mxu0
      %v847 = vadd.f32 %v536, %v846
      %v848 = vpop.f32.mrb[0].mxu0
      %849 = vmatprep.mubr.bf16.mxu0 0
      %850 = vmatmul.mubr.bf16.gmra.mrb[0].mxu0 %v576
      %v851 = vpop.f32.mrb[0].mxu0
      %v852 = vadd.f32 %v536, %v851
      %v853 = vpop.f32.mrb[0].mxu0
      %v854 = vpop.f32.mrb[0].mxu0
      %v855 = vadd.f32 %v536, %v854
      %v856 = vpop.f32.mrb[0].mxu0
      %857 = vmatprep.mubr.bf16.mxu0 0
      %858 = vmatmul.mubr.bf16.gmra.mrb[0].mxu0 %v579
      %v859 = vpop.f32.mrb[0].mxu0
      %v860 = vadd.f32 %v536, %v859
      %v861 = vpop.f32.mrb[0].mxu0
      %v862 = vpop.f32.mrb[0].mxu0
      %v863 = vadd.f32 %v536, %v862
      %v864 = vpop.f32.mrb[0].mxu0
      %865 = vmatprep.mubr.bf16.mxu0 0
      %866 = vmatmul.mubr.bf16.gmra.mrb[0].mxu0 %v582
      %v867 = vpop.f32.mrb[0].mxu0
      %v868 = vadd.f32 %v536, %v867
      %v869 = vpop.f32.mrb[0].mxu0
      %v870 = vpop.f32.mrb[0].mxu0
      %v871 = vadd.f32 %v536, %v870
      %v872 = vpop.f32.mrb[0].mxu0
      %873 = vmatprep.mubr.bf16.mxu0 0
      %874 = vmatmul.mubr.bf16.gmra.mrb[0].mxu0 %v585
      %v875 = vpop.f32.mrb[0].mxu0
      %v876 = vadd.f32 %v536, %v875
      %v877 = vpop.f32.mrb[0].mxu0
      %v878 = vpop.f32.mrb[0].mxu0
      %v879 = vadd.f32 %v536, %v878
      %v880 = vpop.f32.mrb[0].mxu0
      %881 = vmatprep.mubr.bf16.mxu0 0
      %882 = vmatmul.mubr.bf16.gmra.mrb[0].mxu0 %v588
      %v883 = vpop.f32.mrb[0].mxu0
      %v884 = vadd.f32 %v536, %v883
      %v885 = vpop.f32.mrb[0].mxu0
      %v886 = vpop.f32.mrb[0].mxu0
      %v887 = vadd.f32 %v536, %v886
      %v888 = vpop.f32.mrb[0].mxu0
      %889 = vmatprep.mubr.bf16.mxu0 0
      %890 = vmatmul.mubr.bf16.gmra.mrb[0].mxu0 %v591
      %v891 = vpop.f32.mrb[0].mxu0
      %v892 = vadd.f32 %v536, %v891
      %v893 = vpop.f32.mrb[0].mxu0
      %v894 = vpop.f32.mrb[0].mxu0
      %v895 = vadd.f32 %v536, %v894
      %v896 = vpop.f32.mrb[0].mxu0
      %897 = vmatprep.mubr.bf16.mxu0 0
      %898 = vmatmul.mubr.bf16.gmra.mrb[0].mxu0 %v594
      %v899 = vpop.f32.mrb[0].mxu0
      %v900 = vadd.f32 %v536, %v899
      %v901 = vpop.f32.mrb[0].mxu0
      %v902 = vpop.f32.mrb[0].mxu0
      %v903 = vadd.f32 %v536, %v902
      %v904 = vpop.f32.mrb[0].mxu0
      %905 = vmatprep.mubr.bf16.mxu0 0
      %906 = vmatmul.mubr.bf16.gmra.mrb[0].mxu0 %v597
      %v907 = vpop.f32.mrb[0].mxu0
      %v908 = vadd.f32 %v536, %v907
      %v909 = vpop.f32.mrb[0].mxu0
      %v910 = vpop.f32.mrb[0].mxu0
      %v911 = vadd.f32 %v536, %v910
      %v912 = vpop.f32.mrb[0].mxu0
      %913 = vmatprep.mubr.bf16.mxu0 0
      %914 = vmatmul.mubr.bf16.gmra.mrb[0].mxu0 %v600
      %v915 = vpop.f32.mrb[0].mxu0
      %v916 = vadd.f32 %v536, %v915
      %v917 = vpop.f32.mrb[0].mxu0
      %v918 = vpop.f32.mrb[0].mxu0
      %v919 = vadd.f32 %v536, %v918
      %v920 = vpop.f32.mrb[0].mxu0
      %921 = vmatprep.mubr.bf16.mxu0 0
      %922 = vmatmul.mubr.bf16.gmra.mrb[0].mxu0 %v603
      %v923 = vpop.f32.mrb[0].mxu0
      %v924 = vadd.f32 %v536, %v923
      %v925 = vpop.f32.mrb[0].mxu0
      %v926 = vpop.f32.mrb[0].mxu0
      %v927 = vadd.f32 %v536, %v926
      %v928 = vpop.f32.mrb[0].mxu0
      %929 = vmatprep.mubr.bf16.mxu0 0
      %930 = vmatmul.mubr.bf16.gmra.mrb[0].mxu0 %v606
      %v931 = vpop.f32.mrb[0].mxu0
      %v932 = vadd.f32 %v536, %v931
      %v933 = vpop.f32.mrb[0].mxu0
      %v934 = vpop.f32.mrb[0].mxu0
      %v935 = vadd.f32 %v536, %v934
      %v936 = vpop.f32.mrb[0].mxu0
      %937 = vmatprep.mubr.bf16.mxu0 0
      %938 = vmatmul.mubr.bf16.gmra.mrb[0].mxu0 %v609
      %v939 = vpop.f32.mrb[0].mxu0
      %v940 = vadd.f32 %v536, %v939
      %v941 = vpop.f32.mrb[0].mxu0
      %v942 = vpop.f32.mrb[0].mxu0
      %v943 = vadd.f32 %v536, %v942
      %v944 = vpop.f32.mrb[0].mxu0
      %945 = vmatprep.mubr.bf16.mxu0 0
      %946 = vmatmul.mubr.bf16.gmra.mrb[0].mxu0 %v612
      %v947 = vpop.f32.mrb[0].mxu0
      %v948 = vadd.f32 %v536, %v947
      %v949 = vpop.f32.mrb[0].mxu0
      %v950 = vpop.f32.mrb[0].mxu0
      %v951 = vadd.f32 %v536, %v950
      %v952 = vpop.f32.mrb[0].mxu0
      %953 = vmatprep.mubr.bf16.mxu0 0
      %954 = vmatmul.mubr.bf16.gmra.mrb[0].mxu0 %v615
      %v955 = vpop.f32.mrb[0].mxu0
      %v956 = vadd.f32 %v536, %v955
      %v957 = vpop.f32.mrb[0].mxu0
      %v958 = vpop.f32.mrb[0].mxu0
      %v959 = vadd.f32 %v536, %v958
      %v960 = vpop.f32.mrb[0].mxu0
      %961 = vmatprep.mubr.bf16.mxu0 0
      %962 = vmatmul.mubr.bf16.gmra.mrb[0].mxu0 %v618
      %v963 = vpop.f32.mrb[0].mxu0
      %v964 = vadd.f32 %v536, %v963
      %v965 = vpop.f32.mrb[0].mxu0
      %v966 = vpop.f32.mrb[0].mxu0
      %v967 = vadd.f32 %v536, %v966
      %v968 = vpop.f32.mrb[0].mxu0
      %969 = vmatprep.mubr.bf16.mxu0 0
      %970 = vmatmul.mubr.bf16.gmra.mrb[0].mxu0 %v621
      %v971 = vpop.f32.mrb[0].mxu0
      %v972 = vadd.f32 %v536, %v971
      %v973 = vpop.f32.mrb[0].mxu0
      %v974 = vpop.f32.mrb[0].mxu0
      %v975 = vadd.f32 %v536, %v974
      %v976 = vpop.f32.mrb[0].mxu0
      %977 = vmatprep.mubr.bf16.mxu0 0
      %978 = vmatmul.mubr.bf16.gmra.mrb[0].mxu0 %v624
      %v979 = vpop.f32.mrb[0].mxu0
      %v980 = vadd.f32 %v536, %v979
      %v981 = vpop.f32.mrb[0].mxu0
      %v982 = vpop.f32.mrb[0].mxu0
      %v983 = vadd.f32 %v536, %v982
      %v984 = vpop.f32.mrb[0].mxu0
      %985 = vmatprep.mubr.bf16.mxu0 0
      %986 = vmatmul.mubr.bf16.gmra.mrb[0].mxu0 %v627
      %v987 = vpop.f32.mrb[0].mxu0
      %v988 = vadd.f32 %v536, %v987
      %v989 = vpop.f32.mrb[0].mxu0
      %v990 = vpop.f32.mrb[0].mxu0
      %v991 = vadd.f32 %v536, %v990
      %v992 = vpop.f32.mrb[0].mxu0
      %993 = vmatprep.mubr.bf16.mxu0 0
      %994 = vmatmul.mubr.bf16.gmra.mrb[0].mxu0 %v630
      %v995 = vpop.f32.mrb[0].mxu0
      %v996 = vadd.f32 %v536, %v995
      %v997 = vpop.f32.mrb[0].mxu0
      %v998 = vpop.f32.mrb[0].mxu0
      %v999 = vadd.f32 %v536, %v998
      %v1000 = vpop.f32.mrb[0].mxu0
      %1001 = vmatprep.mubr.bf16.mxu0 0
      %1002 = vmatmul.mubr.bf16.gmra.mrb[0].mxu0 %v633
      %v1003 = vpop.f32.mrb[0].mxu0
      %v1004 = vadd.f32 %v536, %v1003
      %v1005 = vpop.f32.mrb[0].mxu0
      %v1006 = vpop.f32.mrb[0].mxu0
      %v1007 = vadd.f32 %v536, %v1006
      %v1008 = vpop.f32.mrb[0].mxu0
      %1009 = vmatprep.mubr.bf16.mxu0 0
      %1010 = vmatmul.mubr.bf16.gmra.mrb[0].mxu0 %v636
      %v1011 = vpop.f32.mrb[0].mxu0
      %v1012 = vadd.f32 %v536, %v1011
      %v1013 = vpop.f32.mrb[0].mxu0
      %v1014 = vpop.f32.mrb[0].mxu0
      %v1015 = vadd.f32 %v536, %v1014
      %v1016 = vpop.f32.mrb[0].mxu0
      %1017 = vmatprep.mubr.bf16.mxu0 0
      %1018 = vmatmul.mubr.bf16.gmra.mrb[0].mxu0 %v639
      %v1019 = vpop.f32.mrb[0].mxu0
      %v1020 = vadd.f32 %v536, %v1019
      %v1021 = vpop.f32.mrb[0].mxu0
      %v1022 = vpop.f32.mrb[0].mxu0
      %v1023 = vadd.f32 %v536, %v1022
      %v1024 = vpop.f32.mrb[0].mxu0
      %1025 = vmatprep.mubr.bf16.mxu0 0
      %1026 = vmatmul.mubr.bf16.gmra.mrb[0].mxu0 %v642
      %v1027 = vpop.f32.mrb[0].mxu0
      %v1028 = vadd.f32 %v536, %v1027
      %v1029 = vpop.f32.mrb[0].mxu0
      %v1030 = vpop.f32.mrb[0].mxu0
      %v1031 = vadd.f32 %v536, %v1030
      %v1032 = vpop.f32.mrb[0].mxu0
      %1033 = vmatprep.mubr.bf16.mxu0 0
      %1034 = vmatmul.mubr.bf16.gmra.mrb[0].mxu0 %v645
      %v1035 = vpop.f32.mrb[0].mxu0
      %v1036 = vadd.f32 %v536, %v1035
      %v1037 = vpop.f32.mrb[0].mxu0
      %v1038 = vpop.f32.mrb[0].mxu0
      %v1039 = vadd.f32 %v536, %v1038
      %v1040 = vpop.f32.mrb[0].mxu0
      %1041 = vmatprep.mubr.bf16.mxu0 0
      %1042 = vmatmul.mubr.bf16.gmra.mrb[0].mxu0 %v648
      %v1043 = vpop.f32.mrb[0].mxu0
      %v1044 = vadd.f32 %v536, %v1043
      %v1045 = vpop.f32.mrb[0].mxu0
      %v1046 = vpop.f32.mrb[0].mxu0
      %v1047 = vadd.f32 %v536, %v1046
      %v1048 = vpop.f32.mrb[0].mxu0
      %1049 = vmatprep.mubr.bf16.mxu0 0
      %1050 = vmatmul.mubr.bf16.gmra.mrb[0].mxu0 %v651
      %v1051 = vpop.f32.mrb[0].mxu0
      %v1052 = vadd.f32 %v536, %v1051
      %v1053 = vpop.f32.mrb[0].mxu0
      %v1054 = vpop.f32.mrb[0].mxu0
      %v1055 = vadd.f32 %v536, %v1054
      %v1056 = vpop.f32.mrb[0].mxu0
      %1057 = vmatprep.mubr.bf16.mxu0 0
      %1058 = vmatmul.mubr.bf16.gmra.mrb[0].mxu0 %v654
      %v1059 = vpop.f32.mrb[0].mxu0
      %v1060 = vadd.f32 %v536, %v1059
      %v1061 = vpop.f32.mrb[0].mxu0
      %v1062 = vpop.f32.mrb[0].mxu0
      %v1063 = vadd.f32 %v536, %v1062
      %v1064 = vpop.f32.mrb[0].mxu0
      %1065 = vmatprep.mubr.bf16.mxu0 0
      %1066 = vmatmul.mubr.bf16.gmra.mrb[0].mxu0 %v657
      %v1067 = vpop.f32.mrb[0].mxu0
      %v1068 = vadd.f32 %v536, %v1067
      %v1069 = vpop.f32.mrb[0].mxu0
      %v1070 = vpop.f32.mrb[0].mxu0
      %v1071 = vadd.f32 %v536, %v1070
      %v1072 = vpop.f32.mrb[0].mxu0
      %1073 = vmatprep.mubr.bf16.mxu0 0
      %1074 = vmatmul.mubr.bf16.gmra.mrb[0].mxu0 %v660
      %v1075 = vpop.f32.mrb[0].mxu0
      %v1076 = vadd.f32 %v536, %v1075
      %v1077 = vpop.f32.mrb[0].mxu0
      %v1078 = vpop.f32.mrb[0].mxu0
      %v1079 = vadd.f32 %v536, %v1078
      %v1080 = vpop.f32.mrb[0].mxu0
      %1081 = vmatprep.mubr.bf16.mxu0 0
      %1082 = vmatmul.mubr.bf16.gmra.mrb[0].mxu0 %v663
      %v1083 = vpop.f32.mrb[0].mxu0
      %v1084 = vadd.f32 %v536, %v1083
      %v1085 = vpop.f32.mrb[0].mxu0
      %v1086 = vpop.f32.mrb[0].mxu0
      %v1087 = vadd.f32 %v536, %v1086
      %v1088 = vpop.f32.mrb[0].mxu0
      %1089 = vmatprep.mubr.bf16.mxu0 0
      %1090 = vmatmul.mubr.bf16.gmra.mrb[0].mxu0 %v666
      %v1091 = vpop.f32.mrb[0].mxu0
      %v1092 = vadd.f32 %v536, %v1091
      %v1093 = vpop.f32.mrb[0].mxu0
      %v1094 = vpop.f32.mrb[0].mxu0
      %v1095 = vadd.f32 %v536, %v1094
      %v1096 = vpop.f32.mrb[0].mxu0
      %1097 = vmatprep.mubr.bf16.mxu0 0
      %1098 = vmatmul.mubr.bf16.gmra.mrb[0].mxu0 %v669
      %v1099 = vpop.f32.mrb[0].mxu0
      %v1100 = vadd.f32 %v536, %v1099
      %v1101 = vpop.f32.mrb[0].mxu0
      %v1102 = vpop.f32.mrb[0].mxu0
      %v1103 = vadd.f32 %v536, %v1102
      %v1104 = vpop.f32.mrb[0].mxu0
      %1105 = vmatprep.mubr.bf16.mxu0 0
      %1106 = vmatmul.mubr.bf16.gmra.mrb[0].mxu0 %v672
      %v1107 = vpop.f32.mrb[0].mxu0
      %v1108 = vadd.f32 %v536, %v1107
      %v1109 = vpop.f32.mrb[0].mxu0
      %v1110 = vpop.f32.mrb[0].mxu0
      %v1111 = vadd.f32 %v536, %v1110
      %v1112 = vpop.f32.mrb[0].mxu0
      %1113 = vmatprep.mubr.bf16.mxu0 0
      %1114 = vmatmul.mubr.bf16.gmra.mrb[0].mxu0 %v675
      %v1115 = vpop.f32.mrb[0].mxu0
      %v1116 = vadd.f32 %v536, %v1115
      %v1117 = vpop.f32.mrb[0].mxu0
      %v1118 = vpop.f32.mrb[0].mxu0
      %v1119 = vadd.f32 %v536, %v1118
      %v1120 = vpop.f32.mrb[0].mxu0
      %1121 = vmatprep.mubr.bf16.mxu0 0
      %1122 = vmatmul.mubr.bf16.gmra.mrb[0].mxu0 %v678
      %v1123 = vpop.f32.mrb[0].mxu0
      %v1124 = vadd.f32 %v536, %v1123
      %v1125 = vpop.f32.mrb[0].mxu0
      %v1126 = vpop.f32.mrb[0].mxu0
      %v1127 = vadd.f32 %v536, %v1126
      %v1128 = vpop.f32.mrb[0].mxu0
      %1129 = vmatprep.mubr.bf16.mxu0 0
      %1130 = vmatmul.mubr.bf16.gmra.mrb[0].mxu0 %v681
      %v1131 = vpop.f32.mrb[0].mxu0
      %v1132 = vadd.f32 %v536, %v1131
      %v1133 = vpop.f32.mrb[0].mxu0
      %v1134 = vpop.f32.mrb[0].mxu0
      %v1135 = vadd.f32 %v536, %v1134
      %v1136 = vpop.f32.mrb[0].mxu0
      %1137 = vmatprep.mubr.bf16.mxu0 0
      %1138 = vmatmul.mubr.bf16.gmra.mrb[0].mxu0 %v684
      %v1139 = vpop.f32.mrb[0].mxu0
      %v1140 = vadd.f32 %v536, %v1139
      %v1141 = vpop.f32.mrb[0].mxu0
      %v1142 = vpop.f32.mrb[0].mxu0
      %v1143 = vadd.f32 %v536, %v1142
      %v1144 = vpop.f32.mrb[0].mxu0
      %1145 = vmatprep.mubr.bf16.mxu0 0
      %1146 = vmatmul.mubr.bf16.gmra.mrb[0].mxu0 %v687
      %v1147 = vpop.f32.mrb[0].mxu0
      %v1148 = vadd.f32 %v536, %v1147
      %v1149 = vpop.f32.mrb[0].mxu0
      %v1150 = vpop.f32.mrb[0].mxu0
      %v1151 = vadd.f32 %v536, %v1150
      %v1152 = vpop.f32.mrb[0].mxu0
      %1153 = vmatprep.mubr.bf16.mxu0 0
      %1154 = vmatmul.mubr.bf16.gmra.mrb[0].mxu0 %v690
      %v1155 = vpop.f32.mrb[0].mxu0
      %v1156 = vadd.f32 %v536, %v1155
      %v1157 = vpop.f32.mrb[0].mxu0
      %v1158 = vpop.f32.mrb[0].mxu0
      %v1159 = vadd.f32 %v536, %v1158
      %v1160 = vpop.f32.mrb[0].mxu0
      %1161 = vmatprep.mubr.bf16.mxu0 0
      %1162 = vmatmul.mubr.bf16.gmra.mrb[0].mxu0 %v693
      %v1163 = vpop.f32.mrb[0].mxu0
      %v1164 = vadd.f32 %v536, %v1163
      %v1165 = vpop.f32.mrb[0].mxu0
      %v1166 = vpop.f32.mrb[0].mxu0
      %v1167 = vadd.f32 %v536, %v1166
      %v1168 = vpop.f32.mrb[0].mxu0
      %1169 = vmatprep.mubr.bf16.mxu0 0
      %1170 = vmatmul.mubr.bf16.gmra.mrb[0].mxu0 %v696
      %v1171 = vpop.f32.mrb[0].mxu0
      %v1172 = vadd.f32 %v536, %v1171
      %v1173 = vpop.f32.mrb[0].mxu0
      %v1174 = vpop.f32.mrb[0].mxu0
      %v1175 = vadd.f32 %v536, %v1174
      %v1176 = vpop.f32.mrb[0].mxu0
      %1177 = vmatprep.mubr.bf16.mxu0 0
      %1178 = vmatmul.mubr.bf16.gmra.mrb[0].mxu0 %v699
      %v1179 = vpop.f32.mrb[0].mxu0
      %v1180 = vadd.f32 %v536, %v1179
      %v1181 = vpop.f32.mrb[0].mxu0
      %v1182 = vpop.f32.mrb[0].mxu0
      %v1183 = vadd.f32 %v536, %v1182
      %v1184 = vpop.f32.mrb[0].mxu0
      %1185 = vmatprep.mubr.bf16.mxu0 0
      %1186 = vmatmul.mubr.bf16.gmra.mrb[0].mxu0 %v702
      %v1187 = vpop.f32.mrb[0].mxu0
      %v1188 = vadd.f32 %v536, %v1187
      %v1189 = vpop.f32.mrb[0].mxu0
      %v1190 = vpop.f32.mrb[0].mxu0
      %v1191 = vadd.f32 %v536, %v1190
      %v1192 = vpop.f32.mrb[0].mxu0
      %1193 = vmatprep.mubr.bf16.mxu0 0
      %1194 = vmatmul.mubr.bf16.gmra.mrb[0].mxu0 %v705
      %v1195 = vpop.f32.mrb[0].mxu0
      %v1196 = vadd.f32 %v536, %v1195
      %v1197 = vpop.f32.mrb[0].mxu0
      %v1198 = vpop.f32.mrb[0].mxu0
      %v1199 = vadd.f32 %v536, %v1198
      %v1200 = vpop.f32.mrb[0].mxu0
      %1201 = vmatprep.mubr.bf16.mxu0 0
      %1202 = vmatmul.mubr.bf16.gmra.mrb[0].mxu0 %v708
      %v1203 = vpop.f32.mrb[0].mxu0
      %v1204 = vadd.f32 %v536, %v1203
      %v1205 = vpop.f32.mrb[0].mxu0
      %v1206 = vpop.f32.mrb[0].mxu0
      %v1207 = vadd.f32 %v536, %v1206
      %v1208 = vpop.f32.mrb[0].mxu0
      %1209 = vmatprep.mubr.bf16.mxu0 0
      %1210 = vmatmul.mubr.bf16.gmra.mrb[0].mxu0 %v711
      %v1211 = vpop.f32.mrb[0].mxu0
      %v1212 = vadd.f32 %v536, %v1211
      %v1213 = vpop.f32.mrb[0].mxu0
      %v1214 = vpop.f32.mrb[0].mxu0
      %v1215 = vadd.f32 %v536, %v1214
      %v1216 = vpop.f32.mrb[0].mxu0
      %1217 = vmatprep.mubr.bf16.mxu0 0
      %1218 = vmatmul.mubr.bf16.gmra.mrb[0].mxu0 %v714
      %v1219 = vpop.f32.mrb[0].mxu0
      %v1220 = vadd.f32 %v536, %v1219
      %v1221 = vpop.f32.mrb[0].mxu0
      %v1222 = vpop.f32.mrb[0].mxu0
      %v1223 = vadd.f32 %v536, %v1222
      %v1224 = vpop.f32.mrb[0].mxu0
      %1225 = vmatprep.mubr.bf16.mxu0 0
      %1226 = vmatmul.mubr.bf16.gmra.mrb[0].mxu0 %v717
      %v1227 = vpop.f32.mrb[0].mxu0
      %v1228 = vadd.f32 %v536, %v1227
      %v1229 = vpop.f32.mrb[0].mxu0
      %v1230 = vpop.f32.mrb[0].mxu0
      %v1231 = vadd.f32 %v536, %v1230
      %v1232 = vpop.f32.mrb[0].mxu0
      %1233 = vmatprep.mubr.bf16.mxu0 0
      %1234 = vmatmul.mubr.bf16.gmra.mrb[0].mxu0 %v720
      %v1235 = vpop.f32.mrb[0].mxu0
      %v1236 = vadd.f32 %v536, %v1235
      %v1237 = vpop.f32.mrb[0].mxu0
      %v1238 = vpop.f32.mrb[0].mxu0
      %v1239 = vadd.f32 %v536, %v1238
      %v1240 = vpop.f32.mrb[0].mxu0
      %1241 = vmatprep.mubr.bf16.mxu0 0
      %1242 = vmatmul.mubr.bf16.gmra.mrb[0].mxu0 %v723
      %v1243 = vpop.f32.mrb[0].mxu0
      %v1244 = vadd.f32 %v536, %v1243
      %v1245 = vpop.f32.mrb[0].mxu0
      %v1246 = vpop.f32.mrb[0].mxu0
      %v1247 = vadd.f32 %v536, %v1246
      %v1248 = vpop.f32.mrb[0].mxu0
      %1249 = vmatprep.mubr.bf16.mxu0 0
      %1250 = vmatmul.mubr.bf16.gmra.mrb[0].mxu0 %v726
      %v1251 = vpop.f32.mrb[0].mxu0
      %v1252 = vadd.f32 %v536, %v1251
      %v1253 = vpop.f32.mrb[0].mxu0
      %v1254 = vpop.f32.mrb[0].mxu0
      %v1255 = vadd.f32 %v536, %v1254
      %v1256 = vpop.f32.mrb[0].mxu0
      %1257 = vmatprep.mubr.bf16.mxu0 0
      %1258 = vmatmul.mubr.bf16.gmra.mrb[0].mxu0 %v729
      %v1259 = vpop.f32.mrb[0].mxu0
      %v1260 = vadd.f32 %v536, %v1259
      %v1261 = vpop.f32.mrb[0].mxu0
      %v1262 = vpop.f32.mrb[0].mxu0
      %v1263 = vadd.f32 %v536, %v1262
      %v1264 = vpop.f32.mrb[0].mxu0
      %1265 = vmatprep.mubr.bf16.mxu0 0
      %1266 = vmatmul.mubr.bf16.gmra.mrb[0].mxu0 %v732
      %v1267 = vpop.f32.mrb[0].mxu0
      %v1268 = vadd.f32 %v536, %v1267
      %v1269 = vpop.f32.mrb[0].mxu0
      %v1270 = vpop.f32.mrb[0].mxu0
      %v1271 = vadd.f32 %v536, %v1270
      %v1272 = vpop.f32.mrb[0].mxu0
      %1273 = vmatprep.mubr.bf16.mxu0 0
      %1274 = vmatmul.mubr.bf16.gmra.mrb[0].mxu0 %v735
      %v1275 = vpop.f32.mrb[0].mxu0
      %v1276 = vadd.f32 %v536, %v1275
      %v1277 = vpop.f32.mrb[0].mxu0
      %v1278 = vpop.f32.mrb[0].mxu0
      %v1279 = vadd.f32 %v536, %v1278
      %v1280 = vpop.f32.mrb[0].mxu0
      %1281 = vdwg.mxu0
      %v1282 = vmax.f32 %v772, 0.0
      %v1283 = vmax.f32 %v775, 0.0
      %v1284 = vmax.f32 %v780, 0.0
      %v1285 = vmax.f32 %v783, 0.0
      %v1286 = vmax.f32 %v788, 0.0
      %v1287 = vmax.f32 %v791, 0.0
      %v1288 = vmax.f32 %v796, 0.0
      %v1289 = vmax.f32 %v799, 0.0
      %v1290 = vmax.f32 %v804, 0.0
      %v1291 = vmax.f32 %v807, 0.0
      %v1292 = vmax.f32 %v812, 0.0
      %v1293 = vmax.f32 %v815, 0.0
      %v1294 = vmax.f32 %v820, 0.0
      %v1295 = vmax.f32 %v823, 0.0
      %v1296 = vmax.f32 %v828, 0.0
      %v1297 = vmax.f32 %v831, 0.0
      %v1298 = vmax.f32 %v836, 0.0
      %v1299 = vmax.f32 %v839, 0.0
      %v1300 = vmax.f32 %v844, 0.0
      %v1301 = vmax.f32 %v847, 0.0
      %v1302 = vmax.f32 %v852, 0.0
      %v1303 = vmax.f32 %v855, 0.0
      %v1304 = vmax.f32 %v860, 0.0
      %v1305 = vmax.f32 %v863, 0.0
      %v1306 = vmax.f32 %v868, 0.0
      %v1307 = vmax.f32 %v871, 0.0
      %v1308 = vmax.f32 %v876, 0.0
      %v1309 = vmax.f32 %v879, 0.0
      %v1310 = vmax.f32 %v884, 0.0
      %v1311 = vmax.f32 %v887, 0.0
      %v1312 = vmax.f32 %v892, 0.0
      %v1313 = vmax.f32 %v895, 0.0
      %v1314 = vmax.f32 %v900, 0.0
      %v1315 = vmax.f32 %v903, 0.0
      %v1316 = vmax.f32 %v908, 0.0
      %v1317 = vmax.f32 %v911, 0.0
      %v1318 = vmax.f32 %v916, 0.0
      %v1319 = vmax.f32 %v919, 0.0
      %v1320 = vmax.f32 %v924, 0.0
      %v1321 = vmax.f32 %v927, 0.0
      %v1322 = vmax.f32 %v932, 0.0
      %v1323 = vmax.f32 %v935, 0.0
      %v1324 = vmax.f32 %v940, 0.0
      %v1325 = vmax.f32 %v943, 0.0
      %v1326 = vmax.f32 %v948, 0.0
      %v1327 = vmax.f32 %v951, 0.0
      %v1328 = vmax.f32 %v956, 0.0
      %v1329 = vmax.f32 %v959, 0.0
      %v1330 = vmax.f32 %v964, 0.0
      %v1331 = vmax.f32 %v967, 0.0
      %v1332 = vmax.f32 %v972, 0.0
      %v1333 = vmax.f32 %v975, 0.0
      %v1334 = vmax.f32 %v980, 0.0
      %v1335 = vmax.f32 %v983, 0.0
      %v1336 = vmax.f32 %v988, 0.0
      %v1337 = vmax.f32 %v991, 0.0
      %v1338 = vmax.f32 %v996, 0.0
      %v1339 = vmax.f32 %v999, 0.0
      %v1340 = vmax.f32 %v1004, 0.0
      %v1341 = vmax.f32 %v1007, 0.0
      %v1342 = vmax.f32 %v1012, 0.0
      %v1343 = vmax.f32 %v1015, 0.0
      %v1344 = vmax.f32 %v1020, 0.0
      %v1345 = vmax.f32 %v1023, 0.0
      %v1346 = vmax.f32 %v1028, 0.0
      %v1347 = vmax.f32 %v1031, 0.0
      %v1348 = vmax.f32 %v1036, 0.0
      %v1349 = vmax.f32 %v1039, 0.0
      %v1350 = vmax.f32 %v1044, 0.0
      %v1351 = vmax.f32 %v1047, 0.0
      %v1352 = vmax.f32 %v1052, 0.0
      %v1353 = vmax.f32 %v1055, 0.0
      %v1354 = vmax.f32 %v1060, 0.0
      %v1355 = vmax.f32 %v1063, 0.0
      %v1356 = vmax.f32 %v1068, 0.0
      %v1357 = vmax.f32 %v1071, 0.0
      %v1358 = vmax.f32 %v1076, 0.0
      %v1359 = vmax.f32 %v1079, 0.0
      %v1360 = vmax.f32 %v1084, 0.0
      %v1361 = vmax.f32 %v1087, 0.0
      %v1362 = vmax.f32 %v1092, 0.0
      %v1363 = vmax.f32 %v1095, 0.0
      %v1364 = vmax.f32 %v1100, 0.0
      %v1365 = vmax.f32 %v1103, 0.0
      %v1366 = vmax.f32 %v1108, 0.0
      %v1367 = vmax.f32 %v1111, 0.0
      %v1368 = vmax.f32 %v1116, 0.0
      %v1369 = vmax.f32 %v1119, 0.0
      %v1370 = vmax.f32 %v1124, 0.0
      %v1371 = vmax.f32 %v1127, 0.0
      %v1372 = vmax.f32 %v1132, 0.0
      %v1373 = vmax.f32 %v1135, 0.0
      %v1374 = vmax.f32 %v1140, 0.0
      %v1375 = vmax.f32 %v1143, 0.0
      %v1376 = vmax.f32 %v1148, 0.0
      %v1377 = vmax.f32 %v1151, 0.0
      %v1378 = vmax.f32 %v1156, 0.0
      %v1379 = vmax.f32 %v1159, 0.0
      %v1380 = vmax.f32 %v1164, 0.0
      %v1381 = vmax.f32 %v1167, 0.0
      %v1382 = vmax.f32 %v1172, 0.0
      %v1383 = vmax.f32 %v1175, 0.0
      %v1384 = vmax.f32 %v1180, 0.0
      %v1385 = vmax.f32 %v1183, 0.0
      %v1386 = vmax.f32 %v1188, 0.0
      %v1387 = vmax.f32 %v1191, 0.0
      %v1388 = vmax.f32 %v1196, 0.0
      %v1389 = vmax.f32 %v1199, 0.0
      %v1390 = vmax.f32 %v1204, 0.0
      %v1391 = vmax.f32 %v1207, 0.0
      %v1392 = vmax.f32 %v1212, 0.0
      %v1393 = vmax.f32 %v1215, 0.0
      %v1394 = vmax.f32 %v1220, 0.0
      %v1395 = vmax.f32 %v1223, 0.0
      %v1396 = vmax.f32 %v1228, 0.0
      %v1397 = vmax.f32 %v1231, 0.0
      %v1398 = vmax.f32 %v1236, 0.0
      %v1399 = vmax.f32 %v1239, 0.0
      %v1400 = vmax.f32 %v1244, 0.0
      %v1401 = vmax.f32 %v1247, 0.0
      %v1402 = vmax.f32 %v1252, 0.0
      %v1403 = vmax.f32 %v1255, 0.0
      %v1404 = vmax.f32 %v1260, 0.0
      %v1405 = vmax.f32 %v1263, 0.0
      %v1406 = vmax.f32 %v1268, 0.0
      %v1407 = vmax.f32 %v1271, 0.0
      %v1408 = vmax.f32 %v1276, 0.0
      %v1409 = vmax.f32 %v1279, 0.0
      %v1410 = vpack.c.bf16 %v1283, %v1282
      %v1411 = vpack.c.bf16 %v1285, %v1284
      %v1412 = vpack.c.bf16 %v1287, %v1286
      %v1413 = vpack.c.bf16 %v1289, %v1288
      %v1414 = vpack.c.bf16 %v1291, %v1290
      %v1415 = vpack.c.bf16 %v1293, %v1292
      %v1416 = vpack.c.bf16 %v1295, %v1294
      %v1417 = vpack.c.bf16 %v1297, %v1296
      %v1418 = vpack.c.bf16 %v1299, %v1298
      %v1419 = vpack.c.bf16 %v1301, %v1300
      %v1420 = vpack.c.bf16 %v1303, %v1302
      %v1421 = vpack.c.bf16 %v1305, %v1304
      %v1422 = vpack.c.bf16 %v1307, %v1306
      %v1423 = vpack.c.bf16 %v1309, %v1308
      %v1424 = vpack.c.bf16 %v1311, %v1310
      %v1425 = vpack.c.bf16 %v1313, %v1312
      %v1426 = vpack.c.bf16 %v1315, %v1314
      %v1427 = vpack.c.bf16 %v1317, %v1316
      %v1428 = vpack.c.bf16 %v1319, %v1318
      %v1429 = vpack.c.bf16 %v1321, %v1320
      %v1430 = vpack.c.bf16 %v1323, %v1322
      %v1431 = vpack.c.bf16 %v1325, %v1324
      %v1432 = vpack.c.bf16 %v1327, %v1326
      %v1433 = vpack.c.bf16 %v1329, %v1328
      %v1434 = vpack.c.bf16 %v1331, %v1330
      %v1435 = vpack.c.bf16 %v1333, %v1332
      %v1436 = vpack.c.bf16 %v1335, %v1334
      %v1437 = vpack.c.bf16 %v1337, %v1336
      %v1438 = vpack.c.bf16 %v1339, %v1338
      %v1439 = vpack.c.bf16 %v1341, %v1340
      %v1440 = vpack.c.bf16 %v1343, %v1342
      %v1441 = vpack.c.bf16 %v1345, %v1344
      %v1442 = vpack.c.bf16 %v1347, %v1346
      %v1443 = vpack.c.bf16 %v1349, %v1348
      %v1444 = vpack.c.bf16 %v1351, %v1350
      %v1445 = vpack.c.bf16 %v1353, %v1352
      %v1446 = vpack.c.bf16 %v1355, %v1354
      %v1447 = vpack.c.bf16 %v1357, %v1356
      %v1448 = vpack.c.bf16 %v1359, %v1358
      %v1449 = vpack.c.bf16 %v1361, %v1360
      %v1450 = vpack.c.bf16 %v1363, %v1362
      %v1451 = vpack.c.bf16 %v1365, %v1364
      %v1452 = vpack.c.bf16 %v1367, %v1366
      %v1453 = vpack.c.bf16 %v1369, %v1368
      %v1454 = vpack.c.bf16 %v1371, %v1370
      %v1455 = vpack.c.bf16 %v1373, %v1372
      %v1456 = vpack.c.bf16 %v1375, %v1374
      %v1457 = vpack.c.bf16 %v1377, %v1376
      %v1458 = vpack.c.bf16 %v1379, %v1378
      %v1459 = vpack.c.bf16 %v1381, %v1380
      %v1460 = vpack.c.bf16 %v1383, %v1382
      %v1461 = vpack.c.bf16 %v1385, %v1384
      %v1462 = vpack.c.bf16 %v1387, %v1386
      %v1463 = vpack.c.bf16 %v1389, %v1388
      %v1464 = vpack.c.bf16 %v1391, %v1390
      %v1465 = vpack.c.bf16 %v1393, %v1392
      %v1466 = vpack.c.bf16 %v1395, %v1394
      %v1467 = vpack.c.bf16 %v1397, %v1396
      %v1468 = vpack.c.bf16 %v1399, %v1398
      %v1469 = vpack.c.bf16 %v1401, %v1400
      %v1470 = vpack.c.bf16 %v1403, %v1402
      %v1471 = vpack.c.bf16 %v1405, %v1404
      %v1472 = vpack.c.bf16 %v1407, %v1406
      %v1473 = vpack.c.bf16 %v1409, %v1408
      %v1474 = vld [vmem:[%s3] sm:$0xf]
      %v1475 = vld [vmem:[%s3 + $0x4] sm:$0xf]
      %v1476 = vld [vmem:[%s3 + $0x8] sm:$0xf]
      %v1477 = vld [vmem:[%s3 + $0xc] sm:$0xf]
      %v1478 = vld [vmem:[%s3 + $0x10] sm:$0xf]
      %v1479 = vld [vmem:[%s3 + $0x14] sm:$0xf]
      %v1480 = vld [vmem:[%s3 + $0x18] sm:$0xf]
      %v1481 = vld [vmem:[%s3 + $0x1c] sm:$0xf]
      %v1482 = vld [vmem:[%s3 + $0x20] sm:$0xf]
      %v1483 = vld [vmem:[%s3 + $0x24] sm:$0xf]
      %v1484 = vld [vmem:[%s3 + $0x28] sm:$0xf]
      %v1485 = vld [vmem:[%s3 + $0x2c] sm:$0xf]
      %v1486 = vld [vmem:[%s3 + $0x30] sm:$0xf]
      %v1487 = vld [vmem:[%s3 + $0x34] sm:$0xf]
      %v1488 = vld [vmem:[%s3 + $0x38] sm:$0xf]
      %v1489 = vld [vmem:[%s3 + $0x3c] sm:$0xf]
      %v1490 = vld [vmem:[%s4] sm:$0x1]
      %v1492 = vlaneseq
      %v1493 = vshrl.u32 %v1492, 7
      %v1494 = vsub.s32 0, %v1493
      %v1495 = vrot.slane %v1490, %v1494
      %v1513 = vunpack.c.l.b16 %v1474
      %v1514 = vunpack.c.l.b16 %v1475
      %v1515 = vunpack.c.l.b16 %v1476
      %v1516 = vunpack.c.l.b16 %v1477
      %v1517 = vunpack.c.l.b16 %v1478
      %v1518 = vunpack.c.l.b16 %v1479
      %v1519 = vunpack.c.l.b16 %v1480
      %v1520 = vunpack.c.l.b16 %v1481
      %v1521 = vunpack.c.l.b16 %v1482
      %v1522 = vunpack.c.l.b16 %v1483
      %v1523 = vunpack.c.l.b16 %v1484
      %v1524 = vunpack.c.l.b16 %v1485
      %v1525 = vunpack.c.l.b16 %v1486
      %v1526 = vunpack.c.l.b16 %v1487
      %v1527 = vunpack.c.l.b16 %v1488
      %v1528 = vunpack.c.l.b16 %v1489
      %v1529 = vpack.c.b16 %v1514, %v1513
      %v1530 = vpack.c.b16 %v1516, %v1515
      %v1531 = vpack.c.b16 %v1518, %v1517
      %v1532 = vpack.c.b16 %v1520, %v1519
      %v1533 = vpack.c.b16 %v1522, %v1521
      %v1534 = vpack.c.b16 %v1524, %v1523
      %v1535 = vpack.c.b16 %v1526, %v1525
      %v1536 = vpack.c.b16 %v1528, %v1527
      %1545 = vmatprep.subr.bf16.mxu0 0
      %1546 = vmatpush1.bf16.msra.mxu0 %v1529
      %1547 = vmatprep.subr.bf16.mxu0 0
      %1548 = vmatpush1.bf16.msra.mxu0 %v1530
      %1549 = vmatprep.subr.bf16.mxu0 0
      %1550 = vmatpush1.bf16.msra.mxu0 %v1531
      %1551 = vmatprep.subr.bf16.mxu0 0
      %1552 = vmatpush1.bf16.msra.mxu0 %v1532
      %1553 = vmatprep.subr.bf16.mxu0 0
      %1554 = vmatpush1.bf16.msra.mxu0 %v1533
      %1555 = vmatprep.subr.bf16.mxu0 0
      %1556 = vmatpush1.bf16.msra.mxu0 %v1534
      %1557 = vmatprep.subr.bf16.mxu0 0
      %1558 = vmatpush1.bf16.msra.mxu0 %v1535
      %1559 = vmatprep.subr.bf16.mxu0 0
      %1560 = vmatpush1.bf16.msra.mxu0 %v1536
      %1561 = vmatprep.subr.bf16.mxu0 0
      %1562 = vmatpush1.bf16.msra.mxu0 0
      %1563 = vmatprep.subr.bf16.mxu0 0
      %1564 = vmatpush1.bf16.msra.mxu0 0
      %1565 = vmatprep.subr.bf16.mxu0 0
      %1566 = vmatpush1.bf16.msra.mxu0 0
      %1567 = vmatprep.subr.bf16.mxu0 0
      %1568 = vmatpush1.bf16.msra.mxu0 0
      %1569 = vmatprep.subr.bf16.mxu0 0
      %1570 = vmatpush1.bf16.msra.mxu0 0
      %1571 = vmatprep.subr.bf16.mxu0 0
      %1572 = vmatpush1.bf16.msra.mxu0 0
      %1573 = vmatprep.subr.bf16.mxu0 0
      %1574 = vmatpush1.bf16.msra.mxu0 0
      %1575 = vmatprep.subr.bf16.mxu0 0
      %1576 = vmatpush1.bf16.msra.mxu0 0
      %1577 = vmatprep.mubr.bf16.mxu0 0
      %1578 = vmatmul.mubr.bf16.gmra.mrb[0].mxu0 %v1410
      %v1579 = vpop.f32.mrb[0].mxu0
      %v1580 = vadd.f32 %v1495, %v1579
      %v1581 = vpop.f32.mrb[0].mxu0
      %v1582 = vpop.f32.mrb[0].mxu0
      %v1583 = vadd.f32 %v1495, %v1582
      %v1584 = vpop.f32.mrb[0].mxu0
      %1585 = vmatprep.mubr.bf16.mxu0 0
      %1586 = vmatmul.mubr.bf16.gmra.mrb[0].mxu0 %v1411
      %v1587 = vpop.f32.mrb[0].mxu0
      %v1588 = vadd.f32 %v1495, %v1587
      %v1589 = vpop.f32.mrb[0].mxu0
      %v1590 = vpop.f32.mrb[0].mxu0
      %v1591 = vadd.f32 %v1495, %v1590
      %v1592 = vpop.f32.mrb[0].mxu0
      %1593 = vmatprep.mubr.bf16.mxu0 0
      %1594 = vmatmul.mubr.bf16.gmra.mrb[0].mxu0 %v1412
      %v1595 = vpop.f32.mrb[0].mxu0
      %v1596 = vadd.f32 %v1495, %v1595
      %v1597 = vpop.f32.mrb[0].mxu0
      %v1598 = vpop.f32.mrb[0].mxu0
      %v1599 = vadd.f32 %v1495, %v1598
      %v1600 = vpop.f32.mrb[0].mxu0
      %1601 = vmatprep.mubr.bf16.mxu0 0
      %1602 = vmatmul.mubr.bf16.gmra.mrb[0].mxu0 %v1413
      %v1603 = vpop.f32.mrb[0].mxu0
      %v1604 = vadd.f32 %v1495, %v1603
      %v1605 = vpop.f32.mrb[0].mxu0
      %v1606 = vpop.f32.mrb[0].mxu0
      %v1607 = vadd.f32 %v1495, %v1606
      %v1608 = vpop.f32.mrb[0].mxu0
      %1609 = vmatprep.mubr.bf16.mxu0 0
      %1610 = vmatmul.mubr.bf16.gmra.mrb[0].mxu0 %v1414
      %v1611 = vpop.f32.mrb[0].mxu0
      %v1612 = vadd.f32 %v1495, %v1611
      %v1613 = vpop.f32.mrb[0].mxu0
      %v1614 = vpop.f32.mrb[0].mxu0
      %v1615 = vadd.f32 %v1495, %v1614
      %v1616 = vpop.f32.mrb[0].mxu0
      %1617 = vmatprep.mubr.bf16.mxu0 0
      %1618 = vmatmul.mubr.bf16.gmra.mrb[0].mxu0 %v1415
      %v1619 = vpop.f32.mrb[0].mxu0
      %v1620 = vadd.f32 %v1495, %v1619
      %v1621 = vpop.f32.mrb[0].mxu0
      %v1622 = vpop.f32.mrb[0].mxu0
      %v1623 = vadd.f32 %v1495, %v1622
      %v1624 = vpop.f32.mrb[0].mxu0
      %1625 = vmatprep.mubr.bf16.mxu0 0
      %1626 = vmatmul.mubr.bf16.gmra.mrb[0].mxu0 %v1416
      %v1627 = vpop.f32.mrb[0].mxu0
      %v1628 = vadd.f32 %v1495, %v1627
      %v1629 = vpop.f32.mrb[0].mxu0
      %v1630 = vpop.f32.mrb[0].mxu0
      %v1631 = vadd.f32 %v1495, %v1630
      %v1632 = vpop.f32.mrb[0].mxu0
      %1633 = vmatprep.mubr.bf16.mxu0 0
      %1634 = vmatmul.mubr.bf16.gmra.mrb[0].mxu0 %v1417
      %v1635 = vpop.f32.mrb[0].mxu0
      %v1636 = vadd.f32 %v1495, %v1635
      %v1637 = vpop.f32.mrb[0].mxu0
      %v1638 = vpop.f32.mrb[0].mxu0
      %v1639 = vadd.f32 %v1495, %v1638
      %v1640 = vpop.f32.mrb[0].mxu0
      %1641 = vmatprep.mubr.bf16.mxu0 0
      %1642 = vmatmul.mubr.bf16.gmra.mrb[0].mxu0 %v1418
      %v1643 = vpop.f32.mrb[0].mxu0
      %v1644 = vadd.f32 %v1495, %v1643
      %v1645 = vpop.f32.mrb[0].mxu0
      %v1646 = vpop.f32.mrb[0].mxu0
      %v1647 = vadd.f32 %v1495, %v1646
      %v1648 = vpop.f32.mrb[0].mxu0
      %1649 = vmatprep.mubr.bf16.mxu0 0
      %1650 = vmatmul.mubr.bf16.gmra.mrb[0].mxu0 %v1419
      %v1651 = vpop.f32.mrb[0].mxu0
      %v1652 = vadd.f32 %v1495, %v1651
      %v1653 = vpop.f32.mrb[0].mxu0
      %v1654 = vpop.f32.mrb[0].mxu0
      %v1655 = vadd.f32 %v1495, %v1654
      %v1656 = vpop.f32.mrb[0].mxu0
      %1657 = vmatprep.mubr.bf16.mxu0 0
      %1658 = vmatmul.mubr.bf16.gmra.mrb[0].mxu0 %v1420
      %v1659 = vpop.f32.mrb[0].mxu0
      %v1660 = vadd.f32 %v1495, %v1659
      %v1661 = vpop.f32.mrb[0].mxu0
      %v1662 = vpop.f32.mrb[0].mxu0
      %v1663 = vadd.f32 %v1495, %v1662
      %v1664 = vpop.f32.mrb[0].mxu0
      %1665 = vmatprep.mubr.bf16.mxu0 0
      %1666 = vmatmul.mubr.bf16.gmra.mrb[0].mxu0 %v1421
      %v1667 = vpop.f32.mrb[0].mxu0
      %v1668 = vadd.f32 %v1495, %v1667
      %v1669 = vpop.f32.mrb[0].mxu0
      %v1670 = vpop.f32.mrb[0].mxu0
      %v1671 = vadd.f32 %v1495, %v1670
      %v1672 = vpop.f32.mrb[0].mxu0
      %1673 = vmatprep.mubr.bf16.mxu0 0
      %1674 = vmatmul.mubr.bf16.gmra.mrb[0].mxu0 %v1422
      %v1675 = vpop.f32.mrb[0].mxu0
      %v1676 = vadd.f32 %v1495, %v1675
      %v1677 = vpop.f32.mrb[0].mxu0
      %v1678 = vpop.f32.mrb[0].mxu0
      %v1679 = vadd.f32 %v1495, %v1678
      %v1680 = vpop.f32.mrb[0].mxu0
      %1681 = vmatprep.mubr.bf16.mxu0 0
      %1682 = vmatmul.mubr.bf16.gmra.mrb[0].mxu0 %v1423
      %v1683 = vpop.f32.mrb[0].mxu0
      %v1684 = vadd.f32 %v1495, %v1683
      %v1685 = vpop.f32.mrb[0].mxu0
      %v1686 = vpop.f32.mrb[0].mxu0
      %v1687 = vadd.f32 %v1495, %v1686
      %v1688 = vpop.f32.mrb[0].mxu0
      %1689 = vmatprep.mubr.bf16.mxu0 0
      %1690 = vmatmul.mubr.bf16.gmra.mrb[0].mxu0 %v1424
      %v1691 = vpop.f32.mrb[0].mxu0
      %v1692 = vadd.f32 %v1495, %v1691
      %v1693 = vpop.f32.mrb[0].mxu0
      %v1694 = vpop.f32.mrb[0].mxu0
      %v1695 = vadd.f32 %v1495, %v1694
      %v1696 = vpop.f32.mrb[0].mxu0
      %1697 = vmatprep.mubr.bf16.mxu0 0
      %1698 = vmatmul.mubr.bf16.gmra.mrb[0].mxu0 %v1425
      %v1699 = vpop.f32.mrb[0].mxu0
      %v1700 = vadd.f32 %v1495, %v1699
      %v1701 = vpop.f32.mrb[0].mxu0
      %v1702 = vpop.f32.mrb[0].mxu0
      %v1703 = vadd.f32 %v1495, %v1702
      %v1704 = vpop.f32.mrb[0].mxu0
      %1705 = vmatprep.mubr.bf16.mxu0 0
      %1706 = vmatmul.mubr.bf16.gmra.mrb[0].mxu0 %v1426
      %v1707 = vpop.f32.mrb[0].mxu0
      %v1708 = vadd.f32 %v1495, %v1707
      %v1709 = vpop.f32.mrb[0].mxu0
      %v1710 = vpop.f32.mrb[0].mxu0
      %v1711 = vadd.f32 %v1495, %v1710
      %v1712 = vpop.f32.mrb[0].mxu0
      %1713 = vmatprep.mubr.bf16.mxu0 0
      %1714 = vmatmul.mubr.bf16.gmra.mrb[0].mxu0 %v1427
      %v1715 = vpop.f32.mrb[0].mxu0
      %v1716 = vadd.f32 %v1495, %v1715
      %v1717 = vpop.f32.mrb[0].mxu0
      %v1718 = vpop.f32.mrb[0].mxu0
      %v1719 = vadd.f32 %v1495, %v1718
      %v1720 = vpop.f32.mrb[0].mxu0
      %1721 = vmatprep.mubr.bf16.mxu0 0
      %1722 = vmatmul.mubr.bf16.gmra.mrb[0].mxu0 %v1428
      %v1723 = vpop.f32.mrb[0].mxu0
      %v1724 = vadd.f32 %v1495, %v1723
      %v1725 = vpop.f32.mrb[0].mxu0
      %v1726 = vpop.f32.mrb[0].mxu0
      %v1727 = vadd.f32 %v1495, %v1726
      %v1728 = vpop.f32.mrb[0].mxu0
      %1729 = vmatprep.mubr.bf16.mxu0 0
      %1730 = vmatmul.mubr.bf16.gmra.mrb[0].mxu0 %v1429
      %v1731 = vpop.f32.mrb[0].mxu0
      %v1732 = vadd.f32 %v1495, %v1731
      %v1733 = vpop.f32.mrb[0].mxu0
      %v1734 = vpop.f32.mrb[0].mxu0
      %v1735 = vadd.f32 %v1495, %v1734
      %v1736 = vpop.f32.mrb[0].mxu0
      %1737 = vmatprep.mubr.bf16.mxu0 0
      %1738 = vmatmul.mubr.bf16.gmra.mrb[0].mxu0 %v1430
      %v1739 = vpop.f32.mrb[0].mxu0
      %v1740 = vadd.f32 %v1495, %v1739
      %v1741 = vpop.f32.mrb[0].mxu0
      %v1742 = vpop.f32.mrb[0].mxu0
      %v1743 = vadd.f32 %v1495, %v1742
      %v1744 = vpop.f32.mrb[0].mxu0
      %1745 = vmatprep.mubr.bf16.mxu0 0
      %1746 = vmatmul.mubr.bf16.gmra.mrb[0].mxu0 %v1431
      %v1747 = vpop.f32.mrb[0].mxu0
      %v1748 = vadd.f32 %v1495, %v1747
      %v1749 = vpop.f32.mrb[0].mxu0
      %v1750 = vpop.f32.mrb[0].mxu0
      %v1751 = vadd.f32 %v1495, %v1750
      %v1752 = vpop.f32.mrb[0].mxu0
      %1753 = vmatprep.mubr.bf16.mxu0 0
      %1754 = vmatmul.mubr.bf16.gmra.mrb[0].mxu0 %v1432
      %v1755 = vpop.f32.mrb[0].mxu0
      %v1756 = vadd.f32 %v1495, %v1755
      %v1757 = vpop.f32.mrb[0].mxu0
      %v1758 = vpop.f32.mrb[0].mxu0
      %v1759 = vadd.f32 %v1495, %v1758
      %v1760 = vpop.f32.mrb[0].mxu0
      %1761 = vmatprep.mubr.bf16.mxu0 0
      %1762 = vmatmul.mubr.bf16.gmra.mrb[0].mxu0 %v1433
      %v1763 = vpop.f32.mrb[0].mxu0
      %v1764 = vadd.f32 %v1495, %v1763
      %v1765 = vpop.f32.mrb[0].mxu0
      %v1766 = vpop.f32.mrb[0].mxu0
      %v1767 = vadd.f32 %v1495, %v1766
      %v1768 = vpop.f32.mrb[0].mxu0
      %1769 = vmatprep.mubr.bf16.mxu0 0
      %1770 = vmatmul.mubr.bf16.gmra.mrb[0].mxu0 %v1434
      %v1771 = vpop.f32.mrb[0].mxu0
      %v1772 = vadd.f32 %v1495, %v1771
      %v1773 = vpop.f32.mrb[0].mxu0
      %v1774 = vpop.f32.mrb[0].mxu0
      %v1775 = vadd.f32 %v1495, %v1774
      %v1776 = vpop.f32.mrb[0].mxu0
      %1777 = vmatprep.mubr.bf16.mxu0 0
      %1778 = vmatmul.mubr.bf16.gmra.mrb[0].mxu0 %v1435
      %v1779 = vpop.f32.mrb[0].mxu0
      %v1780 = vadd.f32 %v1495, %v1779
      %v1781 = vpop.f32.mrb[0].mxu0
      %v1782 = vpop.f32.mrb[0].mxu0
      %v1783 = vadd.f32 %v1495, %v1782
      %v1784 = vpop.f32.mrb[0].mxu0
      %1785 = vmatprep.mubr.bf16.mxu0 0
      %1786 = vmatmul.mubr.bf16.gmra.mrb[0].mxu0 %v1436
      %v1787 = vpop.f32.mrb[0].mxu0
      %v1788 = vadd.f32 %v1495, %v1787
      %v1789 = vpop.f32.mrb[0].mxu0
      %v1790 = vpop.f32.mrb[0].mxu0
      %v1791 = vadd.f32 %v1495, %v1790
      %v1792 = vpop.f32.mrb[0].mxu0
      %1793 = vmatprep.mubr.bf16.mxu0 0
      %1794 = vmatmul.mubr.bf16.gmra.mrb[0].mxu0 %v1437
      %v1795 = vpop.f32.mrb[0].mxu0
      %v1796 = vadd.f32 %v1495, %v1795
      %v1797 = vpop.f32.mrb[0].mxu0
      %v1798 = vpop.f32.mrb[0].mxu0
      %v1799 = vadd.f32 %v1495, %v1798
      %v1800 = vpop.f32.mrb[0].mxu0
      %1801 = vmatprep.mubr.bf16.mxu0 0
      %1802 = vmatmul.mubr.bf16.gmra.mrb[0].mxu0 %v1438
      %v1803 = vpop.f32.mrb[0].mxu0
      %v1804 = vadd.f32 %v1495, %v1803
      %v1805 = vpop.f32.mrb[0].mxu0
      %v1806 = vpop.f32.mrb[0].mxu0
      %v1807 = vadd.f32 %v1495, %v1806
      %v1808 = vpop.f32.mrb[0].mxu0
      %1809 = vmatprep.mubr.bf16.mxu0 0
      %1810 = vmatmul.mubr.bf16.gmra.mrb[0].mxu0 %v1439
      %v1811 = vpop.f32.mrb[0].mxu0
      %v1812 = vadd.f32 %v1495, %v1811
      %v1813 = vpop.f32.mrb[0].mxu0
      %v1814 = vpop.f32.mrb[0].mxu0
      %v1815 = vadd.f32 %v1495, %v1814
      %v1816 = vpop.f32.mrb[0].mxu0
      %1817 = vmatprep.mubr.bf16.mxu0 0
      %1818 = vmatmul.mubr.bf16.gmra.mrb[0].mxu0 %v1440
      %v1819 = vpop.f32.mrb[0].mxu0
      %v1820 = vadd.f32 %v1495, %v1819
      %v1821 = vpop.f32.mrb[0].mxu0
      %v1822 = vpop.f32.mrb[0].mxu0
      %v1823 = vadd.f32 %v1495, %v1822
      %v1824 = vpop.f32.mrb[0].mxu0
      %1825 = vmatprep.mubr.bf16.mxu0 0
      %1826 = vmatmul.mubr.bf16.gmra.mrb[0].mxu0 %v1441
      %v1827 = vpop.f32.mrb[0].mxu0
      %v1828 = vadd.f32 %v1495, %v1827
      %v1829 = vpop.f32.mrb[0].mxu0
      %v1830 = vpop.f32.mrb[0].mxu0
      %v1831 = vadd.f32 %v1495, %v1830
      %v1832 = vpop.f32.mrb[0].mxu0
      %1833 = vmatprep.mubr.bf16.mxu0 0
      %1834 = vmatmul.mubr.bf16.gmra.mrb[0].mxu0 %v1442
      %v1835 = vpop.f32.mrb[0].mxu0
      %v1836 = vadd.f32 %v1495, %v1835
      %v1837 = vpop.f32.mrb[0].mxu0
      %v1838 = vpop.f32.mrb[0].mxu0
      %v1839 = vadd.f32 %v1495, %v1838
      %v1840 = vpop.f32.mrb[0].mxu0
      %1841 = vmatprep.mubr.bf16.mxu0 0
      %1842 = vmatmul.mubr.bf16.gmra.mrb[0].mxu0 %v1443
      %v1843 = vpop.f32.mrb[0].mxu0
      %v1844 = vadd.f32 %v1495, %v1843
      %v1845 = vpop.f32.mrb[0].mxu0
      %v1846 = vpop.f32.mrb[0].mxu0
      %v1847 = vadd.f32 %v1495, %v1846
      %v1848 = vpop.f32.mrb[0].mxu0
      %1849 = vmatprep.mubr.bf16.mxu0 0
      %1850 = vmatmul.mubr.bf16.gmra.mrb[0].mxu0 %v1444
      %v1851 = vpop.f32.mrb[0].mxu0
      %v1852 = vadd.f32 %v1495, %v1851
      %v1853 = vpop.f32.mrb[0].mxu0
      %v1854 = vpop.f32.mrb[0].mxu0
      %v1855 = vadd.f32 %v1495, %v1854
      %v1856 = vpop.f32.mrb[0].mxu0
      %1857 = vmatprep.mubr.bf16.mxu0 0
      %1858 = vmatmul.mubr.bf16.gmra.mrb[0].mxu0 %v1445
      %v1859 = vpop.f32.mrb[0].mxu0
      %v1860 = vadd.f32 %v1495, %v1859
      %v1861 = vpop.f32.mrb[0].mxu0
      %v1862 = vpop.f32.mrb[0].mxu0
      %v1863 = vadd.f32 %v1495, %v1862
      %v1864 = vpop.f32.mrb[0].mxu0
      %1865 = vmatprep.mubr.bf16.mxu0 0
      %1866 = vmatmul.mubr.bf16.gmra.mrb[0].mxu0 %v1446
      %v1867 = vpop.f32.mrb[0].mxu0
      %v1868 = vadd.f32 %v1495, %v1867
      %v1869 = vpop.f32.mrb[0].mxu0
      %v1870 = vpop.f32.mrb[0].mxu0
      %v1871 = vadd.f32 %v1495, %v1870
      %v1872 = vpop.f32.mrb[0].mxu0
      %1873 = vmatprep.mubr.bf16.mxu0 0
      %1874 = vmatmul.mubr.bf16.gmra.mrb[0].mxu0 %v1447
      %v1875 = vpop.f32.mrb[0].mxu0
      %v1876 = vadd.f32 %v1495, %v1875
      %v1877 = vpop.f32.mrb[0].mxu0
      %v1878 = vpop.f32.mrb[0].mxu0
      %v1879 = vadd.f32 %v1495, %v1878
      %v1880 = vpop.f32.mrb[0].mxu0
      %1881 = vmatprep.mubr.bf16.mxu0 0
      %1882 = vmatmul.mubr.bf16.gmra.mrb[0].mxu0 %v1448
      %v1883 = vpop.f32.mrb[0].mxu0
      %v1884 = vadd.f32 %v1495, %v1883
      %v1885 = vpop.f32.mrb[0].mxu0
      %v1886 = vpop.f32.mrb[0].mxu0
      %v1887 = vadd.f32 %v1495, %v1886
      %v1888 = vpop.f32.mrb[0].mxu0
      %1889 = vmatprep.mubr.bf16.mxu0 0
      %1890 = vmatmul.mubr.bf16.gmra.mrb[0].mxu0 %v1449
      %v1891 = vpop.f32.mrb[0].mxu0
      %v1892 = vadd.f32 %v1495, %v1891
      %v1893 = vpop.f32.mrb[0].mxu0
      %v1894 = vpop.f32.mrb[0].mxu0
      %v1895 = vadd.f32 %v1495, %v1894
      %v1896 = vpop.f32.mrb[0].mxu0
      %1897 = vmatprep.mubr.bf16.mxu0 0
      %1898 = vmatmul.mubr.bf16.gmra.mrb[0].mxu0 %v1450
      %v1899 = vpop.f32.mrb[0].mxu0
      %v1900 = vadd.f32 %v1495, %v1899
      %v1901 = vpop.f32.mrb[0].mxu0
      %v1902 = vpop.f32.mrb[0].mxu0
      %v1903 = vadd.f32 %v1495, %v1902
      %v1904 = vpop.f32.mrb[0].mxu0
      %1905 = vmatprep.mubr.bf16.mxu0 0
      %1906 = vmatmul.mubr.bf16.gmra.mrb[0].mxu0 %v1451
      %v1907 = vpop.f32.mrb[0].mxu0
      %v1908 = vadd.f32 %v1495, %v1907
      %v1909 = vpop.f32.mrb[0].mxu0
      %v1910 = vpop.f32.mrb[0].mxu0
      %v1911 = vadd.f32 %v1495, %v1910
      %v1912 = vpop.f32.mrb[0].mxu0
      %1913 = vmatprep.mubr.bf16.mxu0 0
      %1914 = vmatmul.mubr.bf16.gmra.mrb[0].mxu0 %v1452
      %v1915 = vpop.f32.mrb[0].mxu0
      %v1916 = vadd.f32 %v1495, %v1915
      %v1917 = vpop.f32.mrb[0].mxu0
      %v1918 = vpop.f32.mrb[0].mxu0
      %v1919 = vadd.f32 %v1495, %v1918
      %v1920 = vpop.f32.mrb[0].mxu0
      %1921 = vmatprep.mubr.bf16.mxu0 0
      %1922 = vmatmul.mubr.bf16.gmra.mrb[0].mxu0 %v1453
      %v1923 = vpop.f32.mrb[0].mxu0
      %v1924 = vadd.f32 %v1495, %v1923
      %v1925 = vpop.f32.mrb[0].mxu0
      %v1926 = vpop.f32.mrb[0].mxu0
      %v1927 = vadd.f32 %v1495, %v1926
      %v1928 = vpop.f32.mrb[0].mxu0
      %1929 = vmatprep.mubr.bf16.mxu0 0
      %1930 = vmatmul.mubr.bf16.gmra.mrb[0].mxu0 %v1454
      %v1931 = vpop.f32.mrb[0].mxu0
      %v1932 = vadd.f32 %v1495, %v1931
      %v1933 = vpop.f32.mrb[0].mxu0
      %v1934 = vpop.f32.mrb[0].mxu0
      %v1935 = vadd.f32 %v1495, %v1934
      %v1936 = vpop.f32.mrb[0].mxu0
      %1937 = vmatprep.mubr.bf16.mxu0 0
      %1938 = vmatmul.mubr.bf16.gmra.mrb[0].mxu0 %v1455
      %v1939 = vpop.f32.mrb[0].mxu0
      %v1940 = vadd.f32 %v1495, %v1939
      %v1941 = vpop.f32.mrb[0].mxu0
      %v1942 = vpop.f32.mrb[0].mxu0
      %v1943 = vadd.f32 %v1495, %v1942
      %v1944 = vpop.f32.mrb[0].mxu0
      %1945 = vmatprep.mubr.bf16.mxu0 0
      %1946 = vmatmul.mubr.bf16.gmra.mrb[0].mxu0 %v1456
      %v1947 = vpop.f32.mrb[0].mxu0
      %v1948 = vadd.f32 %v1495, %v1947
      %v1949 = vpop.f32.mrb[0].mxu0
      %v1950 = vpop.f32.mrb[0].mxu0
      %v1951 = vadd.f32 %v1495, %v1950
      %v1952 = vpop.f32.mrb[0].mxu0
      %1953 = vmatprep.mubr.bf16.mxu0 0
      %1954 = vmatmul.mubr.bf16.gmra.mrb[0].mxu0 %v1457
      %v1955 = vpop.f32.mrb[0].mxu0
      %v1956 = vadd.f32 %v1495, %v1955
      %v1957 = vpop.f32.mrb[0].mxu0
      %v1958 = vpop.f32.mrb[0].mxu0
      %v1959 = vadd.f32 %v1495, %v1958
      %v1960 = vpop.f32.mrb[0].mxu0
      %1961 = vmatprep.mubr.bf16.mxu0 0
      %1962 = vmatmul.mubr.bf16.gmra.mrb[0].mxu0 %v1458
      %v1963 = vpop.f32.mrb[0].mxu0
      %v1964 = vadd.f32 %v1495, %v1963
      %v1965 = vpop.f32.mrb[0].mxu0
      %v1966 = vpop.f32.mrb[0].mxu0
      %v1967 = vadd.f32 %v1495, %v1966
      %v1968 = vpop.f32.mrb[0].mxu0
      %1969 = vmatprep.mubr.bf16.mxu0 0
      %1970 = vmatmul.mubr.bf16.gmra.mrb[0].mxu0 %v1459
      %v1971 = vpop.f32.mrb[0].mxu0
      %v1972 = vadd.f32 %v1495, %v1971
      %v1973 = vpop.f32.mrb[0].mxu0
      %v1974 = vpop.f32.mrb[0].mxu0
      %v1975 = vadd.f32 %v1495, %v1974
      %v1976 = vpop.f32.mrb[0].mxu0
      %1977 = vmatprep.mubr.bf16.mxu0 0
      %1978 = vmatmul.mubr.bf16.gmra.mrb[0].mxu0 %v1460
      %v1979 = vpop.f32.mrb[0].mxu0
      %v1980 = vadd.f32 %v1495, %v1979
      %v1981 = vpop.f32.mrb[0].mxu0
      %v1982 = vpop.f32.mrb[0].mxu0
      %v1983 = vadd.f32 %v1495, %v1982
      %v1984 = vpop.f32.mrb[0].mxu0
      %1985 = vmatprep.mubr.bf16.mxu0 0
      %1986 = vmatmul.mubr.bf16.gmra.mrb[0].mxu0 %v1461
      %v1987 = vpop.f32.mrb[0].mxu0
      %v1988 = vadd.f32 %v1495, %v1987
      %v1989 = vpop.f32.mrb[0].mxu0
      %v1990 = vpop.f32.mrb[0].mxu0
      %v1991 = vadd.f32 %v1495, %v1990
      %v1992 = vpop.f32.mrb[0].mxu0
      %1993 = vmatprep.mubr.bf16.mxu0 0
      %1994 = vmatmul.mubr.bf16.gmra.mrb[0].mxu0 %v1462
      %v1995 = vpop.f32.mrb[0].mxu0
      %v1996 = vadd.f32 %v1495, %v1995
      %v1997 = vpop.f32.mrb[0].mxu0
      %v1998 = vpop.f32.mrb[0].mxu0
      %v1999 = vadd.f32 %v1495, %v1998
      %v2000 = vpop.f32.mrb[0].mxu0
      %2001 = vmatprep.mubr.bf16.mxu0 0
      %2002 = vmatmul.mubr.bf16.gmra.mrb[0].mxu0 %v1463
      %v2003 = vpop.f32.mrb[0].mxu0
      %v2004 = vadd.f32 %v1495, %v2003
      %v2005 = vpop.f32.mrb[0].mxu0
      %v2006 = vpop.f32.mrb[0].mxu0
      %v2007 = vadd.f32 %v1495, %v2006
      %v2008 = vpop.f32.mrb[0].mxu0
      %2009 = vmatprep.mubr.bf16.mxu0 0
      %2010 = vmatmul.mubr.bf16.gmra.mrb[0].mxu0 %v1464
      %v2011 = vpop.f32.mrb[0].mxu0
      %v2012 = vadd.f32 %v1495, %v2011
      %v2013 = vpop.f32.mrb[0].mxu0
      %v2014 = vpop.f32.mrb[0].mxu0
      %v2015 = vadd.f32 %v1495, %v2014
      %v2016 = vpop.f32.mrb[0].mxu0
      %2017 = vmatprep.mubr.bf16.mxu0 0
      %2018 = vmatmul.mubr.bf16.gmra.mrb[0].mxu0 %v1465
      %v2019 = vpop.f32.mrb[0].mxu0
      %v2020 = vadd.f32 %v1495, %v2019
      %v2021 = vpop.f32.mrb[0].mxu0
      %v2022 = vpop.f32.mrb[0].mxu0
      %v2023 = vadd.f32 %v1495, %v2022
      %v2024 = vpop.f32.mrb[0].mxu0
      %2025 = vmatprep.mubr.bf16.mxu0 0
      %2026 = vmatmul.mubr.bf16.gmra.mrb[0].mxu0 %v1466
      %v2027 = vpop.f32.mrb[0].mxu0
      %v2028 = vadd.f32 %v1495, %v2027
      %v2029 = vpop.f32.mrb[0].mxu0
      %v2030 = vpop.f32.mrb[0].mxu0
      %v2031 = vadd.f32 %v1495, %v2030
      %v2032 = vpop.f32.mrb[0].mxu0
      %2033 = vmatprep.mubr.bf16.mxu0 0
      %2034 = vmatmul.mubr.bf16.gmra.mrb[0].mxu0 %v1467
      %v2035 = vpop.f32.mrb[0].mxu0
      %v2036 = vadd.f32 %v1495, %v2035
      %v2037 = vpop.f32.mrb[0].mxu0
      %v2038 = vpop.f32.mrb[0].mxu0
      %v2039 = vadd.f32 %v1495, %v2038
      %v2040 = vpop.f32.mrb[0].mxu0
      %2041 = vmatprep.mubr.bf16.mxu0 0
      %2042 = vmatmul.mubr.bf16.gmra.mrb[0].mxu0 %v1468
      %v2043 = vpop.f32.mrb[0].mxu0
      %v2044 = vadd.f32 %v1495, %v2043
      %v2045 = vpop.f32.mrb[0].mxu0
      %v2046 = vpop.f32.mrb[0].mxu0
      %v2047 = vadd.f32 %v1495, %v2046
      %v2048 = vpop.f32.mrb[0].mxu0
      %2049 = vmatprep.mubr.bf16.mxu0 0
      %2050 = vmatmul.mubr.bf16.gmra.mrb[0].mxu0 %v1469
      %v2051 = vpop.f32.mrb[0].mxu0
      %v2052 = vadd.f32 %v1495, %v2051
      %v2053 = vpop.f32.mrb[0].mxu0
      %v2054 = vpop.f32.mrb[0].mxu0
      %v2055 = vadd.f32 %v1495, %v2054
      %v2056 = vpop.f32.mrb[0].mxu0
      %2057 = vmatprep.mubr.bf16.mxu0 0
      %2058 = vmatmul.mubr.bf16.gmra.mrb[0].mxu0 %v1470
      %v2059 = vpop.f32.mrb[0].mxu0
      %v2060 = vadd.f32 %v1495, %v2059
      %v2061 = vpop.f32.mrb[0].mxu0
      %v2062 = vpop.f32.mrb[0].mxu0
      %v2063 = vadd.f32 %v1495, %v2062
      %v2064 = vpop.f32.mrb[0].mxu0
      %2065 = vmatprep.mubr.bf16.mxu0 0
      %2066 = vmatmul.mubr.bf16.gmra.mrb[0].mxu0 %v1471
      %v2067 = vpop.f32.mrb[0].mxu0
      %v2068 = vadd.f32 %v1495, %v2067
      %v2069 = vpop.f32.mrb[0].mxu0
      %v2070 = vpop.f32.mrb[0].mxu0
      %v2071 = vadd.f32 %v1495, %v2070
      %v2072 = vpop.f32.mrb[0].mxu0
      %2073 = vmatprep.mubr.bf16.mxu0 0
      %2074 = vmatmul.mubr.bf16.gmra.mrb[0].mxu0 %v1472
      %v2075 = vpop.f32.mrb[0].mxu0
      %v2076 = vadd.f32 %v1495, %v2075
      %v2077 = vpop.f32.mrb[0].mxu0
      %v2078 = vpop.f32.mrb[0].mxu0
      %v2079 = vadd.f32 %v1495, %v2078
      %v2080 = vpop.f32.mrb[0].mxu0
      %2081 = vmatprep.mubr.bf16.mxu0 0
      %2082 = vmatmul.mubr.bf16.gmra.mrb[0].mxu0 %v1473
      %v2083 = vpop.f32.mrb[0].mxu0
      %v2084 = vadd.f32 %v1495, %v2083
      %v2085 = vpop.f32.mrb[0].mxu0
      %v2086 = vpop.f32.mrb[0].mxu0
      %v2087 = vadd.f32 %v1495, %v2086
      %v2088 = vpop.f32.mrb[0].mxu0
      %2089 = vdwg.mxu0
      %v2090 = vmax.f32 %v1580, 0.0
      %v2091 = vmax.f32 %v1583, 0.0
      %v2092 = vmax.f32 %v1588, 0.0
      %v2093 = vmax.f32 %v1591, 0.0
      %v2094 = vmax.f32 %v1596, 0.0
      %v2095 = vmax.f32 %v1599, 0.0
      %v2096 = vmax.f32 %v1604, 0.0
      %v2097 = vmax.f32 %v1607, 0.0
      %v2098 = vmax.f32 %v1612, 0.0
      %v2099 = vmax.f32 %v1615, 0.0
      %v2100 = vmax.f32 %v1620, 0.0
      %v2101 = vmax.f32 %v1623, 0.0
      %v2102 = vmax.f32 %v1628, 0.0
      %v2103 = vmax.f32 %v1631, 0.0
      %v2104 = vmax.f32 %v1636, 0.0
      %v2105 = vmax.f32 %v1639, 0.0
      %v2106 = vmax.f32 %v1644, 0.0
      %v2107 = vmax.f32 %v1647, 0.0
      %v2108 = vmax.f32 %v1652, 0.0
      %v2109 = vmax.f32 %v1655, 0.0
      %v2110 = vmax.f32 %v1660, 0.0
      %v2111 = vmax.f32 %v1663, 0.0
      %v2112 = vmax.f32 %v1668, 0.0
      %v2113 = vmax.f32 %v1671, 0.0
      %v2114 = vmax.f32 %v1676, 0.0
      %v2115 = vmax.f32 %v1679, 0.0
      %v2116 = vmax.f32 %v1684, 0.0
      %v2117 = vmax.f32 %v1687, 0.0
      %v2118 = vmax.f32 %v1692, 0.0
      %v2119 = vmax.f32 %v1695, 0.0
      %v2120 = vmax.f32 %v1700, 0.0
      %v2121 = vmax.f32 %v1703, 0.0
      %v2122 = vmax.f32 %v1708, 0.0
      %v2123 = vmax.f32 %v1711, 0.0
      %v2124 = vmax.f32 %v1716, 0.0
      %v2125 = vmax.f32 %v1719, 0.0
      %v2126 = vmax.f32 %v1724, 0.0
      %v2127 = vmax.f32 %v1727, 0.0
      %v2128 = vmax.f32 %v1732, 0.0
      %v2129 = vmax.f32 %v1735, 0.0
      %v2130 = vmax.f32 %v1740, 0.0
      %v2131 = vmax.f32 %v1743, 0.0
      %v2132 = vmax.f32 %v1748, 0.0
      %v2133 = vmax.f32 %v1751, 0.0
      %v2134 = vmax.f32 %v1756, 0.0
      %v2135 = vmax.f32 %v1759, 0.0
      %v2136 = vmax.f32 %v1764, 0.0
      %v2137 = vmax.f32 %v1767, 0.0
      %v2138 = vmax.f32 %v1772, 0.0
      %v2139 = vmax.f32 %v1775, 0.0
      %v2140 = vmax.f32 %v1780, 0.0
      %v2141 = vmax.f32 %v1783, 0.0
      %v2142 = vmax.f32 %v1788, 0.0
      %v2143 = vmax.f32 %v1791, 0.0
      %v2144 = vmax.f32 %v1796, 0.0
      %v2145 = vmax.f32 %v1799, 0.0
      %v2146 = vmax.f32 %v1804, 0.0
      %v2147 = vmax.f32 %v1807, 0.0
      %v2148 = vmax.f32 %v1812, 0.0
      %v2149 = vmax.f32 %v1815, 0.0
      %v2150 = vmax.f32 %v1820, 0.0
      %v2151 = vmax.f32 %v1823, 0.0
      %v2152 = vmax.f32 %v1828, 0.0
      %v2153 = vmax.f32 %v1831, 0.0
      %v2154 = vmax.f32 %v1836, 0.0
      %v2155 = vmax.f32 %v1839, 0.0
      %v2156 = vmax.f32 %v1844, 0.0
      %v2157 = vmax.f32 %v1847, 0.0
      %v2158 = vmax.f32 %v1852, 0.0
      %v2159 = vmax.f32 %v1855, 0.0
      %v2160 = vmax.f32 %v1860, 0.0
      %v2161 = vmax.f32 %v1863, 0.0
      %v2162 = vmax.f32 %v1868, 0.0
      %v2163 = vmax.f32 %v1871, 0.0
      %v2164 = vmax.f32 %v1876, 0.0
      %v2165 = vmax.f32 %v1879, 0.0
      %v2166 = vmax.f32 %v1884, 0.0
      %v2167 = vmax.f32 %v1887, 0.0
      %v2168 = vmax.f32 %v1892, 0.0
      %v2169 = vmax.f32 %v1895, 0.0
      %v2170 = vmax.f32 %v1900, 0.0
      %v2171 = vmax.f32 %v1903, 0.0
      %v2172 = vmax.f32 %v1908, 0.0
      %v2173 = vmax.f32 %v1911, 0.0
      %v2174 = vmax.f32 %v1916, 0.0
      %v2175 = vmax.f32 %v1919, 0.0
      %v2176 = vmax.f32 %v1924, 0.0
      %v2177 = vmax.f32 %v1927, 0.0
      %v2178 = vmax.f32 %v1932, 0.0
      %v2179 = vmax.f32 %v1935, 0.0
      %v2180 = vmax.f32 %v1940, 0.0
      %v2181 = vmax.f32 %v1943, 0.0
      %v2182 = vmax.f32 %v1948, 0.0
      %v2183 = vmax.f32 %v1951, 0.0
      %v2184 = vmax.f32 %v1956, 0.0
      %v2185 = vmax.f32 %v1959, 0.0
      %v2186 = vmax.f32 %v1964, 0.0
      %v2187 = vmax.f32 %v1967, 0.0
      %v2188 = vmax.f32 %v1972, 0.0
      %v2189 = vmax.f32 %v1975, 0.0
      %v2190 = vmax.f32 %v1980, 0.0
      %v2191 = vmax.f32 %v1983, 0.0
      %v2192 = vmax.f32 %v1988, 0.0
      %v2193 = vmax.f32 %v1991, 0.0
      %v2194 = vmax.f32 %v1996, 0.0
      %v2195 = vmax.f32 %v1999, 0.0
      %v2196 = vmax.f32 %v2004, 0.0
      %v2197 = vmax.f32 %v2007, 0.0
      %v2198 = vmax.f32 %v2012, 0.0
      %v2199 = vmax.f32 %v2015, 0.0
      %v2200 = vmax.f32 %v2020, 0.0
      %v2201 = vmax.f32 %v2023, 0.0
      %v2202 = vmax.f32 %v2028, 0.0
      %v2203 = vmax.f32 %v2031, 0.0
      %v2204 = vmax.f32 %v2036, 0.0
      %v2205 = vmax.f32 %v2039, 0.0
      %v2206 = vmax.f32 %v2044, 0.0
      %v2207 = vmax.f32 %v2047, 0.0
      %v2208 = vmax.f32 %v2052, 0.0
      %v2209 = vmax.f32 %v2055, 0.0
      %v2210 = vmax.f32 %v2060, 0.0
      %v2211 = vmax.f32 %v2063, 0.0
      %v2212 = vmax.f32 %v2068, 0.0
      %v2213 = vmax.f32 %v2071, 0.0
      %v2214 = vmax.f32 %v2076, 0.0
      %v2215 = vmax.f32 %v2079, 0.0
      %v2216 = vmax.f32 %v2084, 0.0
      %v2217 = vmax.f32 %v2087, 0.0
      %v2218 = vpack.c.bf16 %v2091, %v2090
      %v2219 = vpack.c.bf16 %v2093, %v2092
      %v2220 = vpack.c.bf16 %v2095, %v2094
      %v2221 = vpack.c.bf16 %v2097, %v2096
      %v2222 = vpack.c.bf16 %v2099, %v2098
      %v2223 = vpack.c.bf16 %v2101, %v2100
      %v2224 = vpack.c.bf16 %v2103, %v2102
      %v2225 = vpack.c.bf16 %v2105, %v2104
      %v2226 = vpack.c.bf16 %v2107, %v2106
      %v2227 = vpack.c.bf16 %v2109, %v2108
      %v2228 = vpack.c.bf16 %v2111, %v2110
      %v2229 = vpack.c.bf16 %v2113, %v2112
      %v2230 = vpack.c.bf16 %v2115, %v2114
      %v2231 = vpack.c.bf16 %v2117, %v2116
      %v2232 = vpack.c.bf16 %v2119, %v2118
      %v2233 = vpack.c.bf16 %v2121, %v2120
      %v2234 = vpack.c.bf16 %v2123, %v2122
      %v2235 = vpack.c.bf16 %v2125, %v2124
      %v2236 = vpack.c.bf16 %v2127, %v2126
      %v2237 = vpack.c.bf16 %v2129, %v2128
      %v2238 = vpack.c.bf16 %v2131, %v2130
      %v2239 = vpack.c.bf16 %v2133, %v2132
      %v2240 = vpack.c.bf16 %v2135, %v2134
      %v2241 = vpack.c.bf16 %v2137, %v2136
      %v2242 = vpack.c.bf16 %v2139, %v2138
      %v2243 = vpack.c.bf16 %v2141, %v2140
      %v2244 = vpack.c.bf16 %v2143, %v2142
      %v2245 = vpack.c.bf16 %v2145, %v2144
      %v2246 = vpack.c.bf16 %v2147, %v2146
      %v2247 = vpack.c.bf16 %v2149, %v2148
      %v2248 = vpack.c.bf16 %v2151, %v2150
      %v2249 = vpack.c.bf16 %v2153, %v2152
      %v2250 = vpack.c.bf16 %v2155, %v2154
      %v2251 = vpack.c.bf16 %v2157, %v2156
      %v2252 = vpack.c.bf16 %v2159, %v2158
      %v2253 = vpack.c.bf16 %v2161, %v2160
      %v2254 = vpack.c.bf16 %v2163, %v2162
      %v2255 = vpack.c.bf16 %v2165, %v2164
      %v2256 = vpack.c.bf16 %v2167, %v2166
      %v2257 = vpack.c.bf16 %v2169, %v2168
      %v2258 = vpack.c.bf16 %v2171, %v2170
      %v2259 = vpack.c.bf16 %v2173, %v2172
      %v2260 = vpack.c.bf16 %v2175, %v2174
      %v2261 = vpack.c.bf16 %v2177, %v2176
      %v2262 = vpack.c.bf16 %v2179, %v2178
      %v2263 = vpack.c.bf16 %v2181, %v2180
      %v2264 = vpack.c.bf16 %v2183, %v2182
      %v2265 = vpack.c.bf16 %v2185, %v2184
      %v2266 = vpack.c.bf16 %v2187, %v2186
      %v2267 = vpack.c.bf16 %v2189, %v2188
      %v2268 = vpack.c.bf16 %v2191, %v2190
      %v2269 = vpack.c.bf16 %v2193, %v2192
      %v2270 = vpack.c.bf16 %v2195, %v2194
      %v2271 = vpack.c.bf16 %v2197, %v2196
      %v2272 = vpack.c.bf16 %v2199, %v2198
      %v2273 = vpack.c.bf16 %v2201, %v2200
      %v2274 = vpack.c.bf16 %v2203, %v2202
      %v2275 = vpack.c.bf16 %v2205, %v2204
      %v2276 = vpack.c.bf16 %v2207, %v2206
      %v2277 = vpack.c.bf16 %v2209, %v2208
      %v2278 = vpack.c.bf16 %v2211, %v2210
      %v2279 = vpack.c.bf16 %v2213, %v2212
      %v2280 = vpack.c.bf16 %v2215, %v2214
      %v2281 = vpack.c.bf16 %v2217, %v2216
      %v2282 = vld [vmem:[%s5] sm:$0xf]
      %v2283 = vld [vmem:[%s5 + $0x4] sm:$0xf]
      %v2284 = vld [vmem:[%s5 + $0x8] sm:$0xf]
      %v2285 = vld [vmem:[%s5 + $0xc] sm:$0xf]
      %v2286 = vld [vmem:[%s5 + $0x10] sm:$0xf]
      %v2287 = vld [vmem:[%s5 + $0x14] sm:$0xf]
      %v2288 = vld [vmem:[%s5 + $0x18] sm:$0xf]
      %v2289 = vld [vmem:[%s5 + $0x1c] sm:$0xf]
      %v2290 = vld [vmem:[%s5 + $0x20] sm:$0xf]
      %v2291 = vld [vmem:[%s5 + $0x24] sm:$0xf]
      %v2292 = vld [vmem:[%s5 + $0x28] sm:$0xf]
      %v2293 = vld [vmem:[%s5 + $0x2c] sm:$0xf]
      %v2294 = vld [vmem:[%s5 + $0x30] sm:$0xf]
      %v2295 = vld [vmem:[%s5 + $0x34] sm:$0xf]
      %v2296 = vld [vmem:[%s5 + $0x38] sm:$0xf]
      %v2297 = vld [vmem:[%s5 + $0x3c] sm:$0xf]
      %v2298 = vld [vmem:[%s6] sm:$0x1]
      %v2300 = vlaneseq
      %v2301 = vshrl.u32 %v2300, 7
      %v2302 = vsub.s32 0, %v2301
      %v2303 = vrot.slane %v2298, %v2302
      %v2321 = vunpack.c.l.b16 %v2282
      %v2322 = vunpack.c.l.b16 %v2283
      %v2323 = vunpack.c.l.b16 %v2284
      %v2324 = vunpack.c.l.b16 %v2285
      %v2325 = vunpack.c.l.b16 %v2286
      %v2326 = vunpack.c.l.b16 %v2287
      %v2327 = vunpack.c.l.b16 %v2288
      %v2328 = vunpack.c.l.b16 %v2289
      %v2329 = vunpack.c.l.b16 %v2290
      %v2330 = vunpack.c.l.b16 %v2291
      %v2331 = vunpack.c.l.b16 %v2292
      %v2332 = vunpack.c.l.b16 %v2293
      %v2333 = vunpack.c.l.b16 %v2294
      %v2334 = vunpack.c.l.b16 %v2295
      %v2335 = vunpack.c.l.b16 %v2296
      %v2336 = vunpack.c.l.b16 %v2297
      %v2337 = vpack.c.b16 %v2322, %v2321
      %v2338 = vpack.c.b16 %v2324, %v2323
      %v2339 = vpack.c.b16 %v2326, %v2325
      %v2340 = vpack.c.b16 %v2328, %v2327
      %v2341 = vpack.c.b16 %v2330, %v2329
      %v2342 = vpack.c.b16 %v2332, %v2331
      %v2343 = vpack.c.b16 %v2334, %v2333
      %v2344 = vpack.c.b16 %v2336, %v2335
      %2353 = vmatprep.subr.bf16.mxu0 0
      %2354 = vmatpush1.bf16.msra.mxu0 %v2337
      %2355 = vmatprep.subr.bf16.mxu0 0
      %2356 = vmatpush1.bf16.msra.mxu0 %v2338
      %2357 = vmatprep.subr.bf16.mxu0 0
      %2358 = vmatpush1.bf16.msra.mxu0 %v2339
      %2359 = vmatprep.subr.bf16.mxu0 0
      %2360 = vmatpush1.bf16.msra.mxu0 %v2340
      %2361 = vmatprep.subr.bf16.mxu0 0
      %2362 = vmatpush1.bf16.msra.mxu0 %v2341
      %2363 = vmatprep.subr.bf16.mxu0 0
      %2364 = vmatpush1.bf16.msra.mxu0 %v2342
      %2365 = vmatprep.subr.bf16.mxu0 0
      %2366 = vmatpush1.bf16.msra.mxu0 %v2343
      %2367 = vmatprep.subr.bf16.mxu0 0
      %2368 = vmatpush1.bf16.msra.mxu0 %v2344
      %2369 = vmatprep.subr.bf16.mxu0 0
      %2370 = vmatpush1.bf16.msra.mxu0 0
      %2371 = vmatprep.subr.bf16.mxu0 0
      %2372 = vmatpush1.bf16.msra.mxu0 0
      %2373 = vmatprep.subr.bf16.mxu0 0
      %2374 = vmatpush1.bf16.msra.mxu0 0
      %2375 = vmatprep.subr.bf16.mxu0 0
      %2376 = vmatpush1.bf16.msra.mxu0 0
      %2377 = vmatprep.subr.bf16.mxu0 0
      %2378 = vmatpush1.bf16.msra.mxu0 0
      %2379 = vmatprep.subr.bf16.mxu0 0
      %2380 = vmatpush1.bf16.msra.mxu0 0
      %2381 = vmatprep.subr.bf16.mxu0 0
      %2382 = vmatpush1.bf16.msra.mxu0 0
      %2383 = vmatprep.subr.bf16.mxu0 0
      %2384 = vmatpush1.bf16.msra.mxu0 0
      %2385 = vmatprep.mubr.bf16.mxu0 0
      %2386 = vmatmul.mubr.bf16.gmra.mrb[0].mxu0 %v2218
      %v2387 = vpop.f32.mrb[0].mxu0
      %v2388 = vadd.f32 %v2303, %v2387
      %v2389 = vpop.f32.mrb[0].mxu0
      %v2390 = vpop.f32.mrb[0].mxu0
      %v2391 = vadd.f32 %v2303, %v2390
      %v2392 = vpop.f32.mrb[0].mxu0
      %2393 = vmatprep.mubr.bf16.mxu0 0
      %2394 = vmatmul.mubr.bf16.gmra.mrb[0].mxu0 %v2219
      %v2395 = vpop.f32.mrb[0].mxu0
      %v2396 = vadd.f32 %v2303, %v2395
      %v2397 = vpop.f32.mrb[0].mxu0
      %v2398 = vpop.f32.mrb[0].mxu0
      %v2399 = vadd.f32 %v2303, %v2398
      %v2400 = vpop.f32.mrb[0].mxu0
      %2401 = vmatprep.mubr.bf16.mxu0 0
      %2402 = vmatmul.mubr.bf16.gmra.mrb[0].mxu0 %v2220
      %v2403 = vpop.f32.mrb[0].mxu0
      %v2404 = vadd.f32 %v2303, %v2403
      %v2405 = vpop.f32.mrb[0].mxu0
      %v2406 = vpop.f32.mrb[0].mxu0
      %v2407 = vadd.f32 %v2303, %v2406
      %v2408 = vpop.f32.mrb[0].mxu0
      %2409 = vmatprep.mubr.bf16.mxu0 0
      %2410 = vmatmul.mubr.bf16.gmra.mrb[0].mxu0 %v2221
      %v2411 = vpop.f32.mrb[0].mxu0
      %v2412 = vadd.f32 %v2303, %v2411
      %v2413 = vpop.f32.mrb[0].mxu0
      %v2414 = vpop.f32.mrb[0].mxu0
      %v2415 = vadd.f32 %v2303, %v2414
      %v2416 = vpop.f32.mrb[0].mxu0
      %2417 = vmatprep.mubr.bf16.mxu0 0
      %2418 = vmatmul.mubr.bf16.gmra.mrb[0].mxu0 %v2222
      %v2419 = vpop.f32.mrb[0].mxu0
      %v2420 = vadd.f32 %v2303, %v2419
      %v2421 = vpop.f32.mrb[0].mxu0
      %v2422 = vpop.f32.mrb[0].mxu0
      %v2423 = vadd.f32 %v2303, %v2422
      %v2424 = vpop.f32.mrb[0].mxu0
      %2425 = vmatprep.mubr.bf16.mxu0 0
      %2426 = vmatmul.mubr.bf16.gmra.mrb[0].mxu0 %v2223
      %v2427 = vpop.f32.mrb[0].mxu0
      %v2428 = vadd.f32 %v2303, %v2427
      %v2429 = vpop.f32.mrb[0].mxu0
      %v2430 = vpop.f32.mrb[0].mxu0
      %v2431 = vadd.f32 %v2303, %v2430
      %v2432 = vpop.f32.mrb[0].mxu0
      %2433 = vmatprep.mubr.bf16.mxu0 0
      %2434 = vmatmul.mubr.bf16.gmra.mrb[0].mxu0 %v2224
      %v2435 = vpop.f32.mrb[0].mxu0
      %v2436 = vadd.f32 %v2303, %v2435
      %v2437 = vpop.f32.mrb[0].mxu0
      %v2438 = vpop.f32.mrb[0].mxu0
      %v2439 = vadd.f32 %v2303, %v2438
      %v2440 = vpop.f32.mrb[0].mxu0
      %2441 = vmatprep.mubr.bf16.mxu0 0
      %2442 = vmatmul.mubr.bf16.gmra.mrb[0].mxu0 %v2225
      %v2443 = vpop.f32.mrb[0].mxu0
      %v2444 = vadd.f32 %v2303, %v2443
      %v2445 = vpop.f32.mrb[0].mxu0
      %v2446 = vpop.f32.mrb[0].mxu0
      %v2447 = vadd.f32 %v2303, %v2446
      %v2448 = vpop.f32.mrb[0].mxu0
      %2449 = vmatprep.mubr.bf16.mxu0 0
      %2450 = vmatmul.mubr.bf16.gmra.mrb[0].mxu0 %v2226
      %v2451 = vpop.f32.mrb[0].mxu0
      %v2452 = vadd.f32 %v2303, %v2451
      %v2453 = vpop.f32.mrb[0].mxu0
      %v2454 = vpop.f32.mrb[0].mxu0
      %v2455 = vadd.f32 %v2303, %v2454
      %v2456 = vpop.f32.mrb[0].mxu0
      %2457 = vmatprep.mubr.bf16.mxu0 0
      %2458 = vmatmul.mubr.bf16.gmra.mrb[0].mxu0 %v2227
      %v2459 = vpop.f32.mrb[0].mxu0
      %v2460 = vadd.f32 %v2303, %v2459
      %v2461 = vpop.f32.mrb[0].mxu0
      %v2462 = vpop.f32.mrb[0].mxu0
      %v2463 = vadd.f32 %v2303, %v2462
      %v2464 = vpop.f32.mrb[0].mxu0
      %2465 = vmatprep.mubr.bf16.mxu0 0
      %2466 = vmatmul.mubr.bf16.gmra.mrb[0].mxu0 %v2228
      %v2467 = vpop.f32.mrb[0].mxu0
      %v2468 = vadd.f32 %v2303, %v2467
      %v2469 = vpop.f32.mrb[0].mxu0
      %v2470 = vpop.f32.mrb[0].mxu0
      %v2471 = vadd.f32 %v2303, %v2470
      %v2472 = vpop.f32.mrb[0].mxu0
      %2473 = vmatprep.mubr.bf16.mxu0 0
      %2474 = vmatmul.mubr.bf16.gmra.mrb[0].mxu0 %v2229
      %v2475 = vpop.f32.mrb[0].mxu0
      %v2476 = vadd.f32 %v2303, %v2475
      %v2477 = vpop.f32.mrb[0].mxu0
      %v2478 = vpop.f32.mrb[0].mxu0
      %v2479 = vadd.f32 %v2303, %v2478
      %v2480 = vpop.f32.mrb[0].mxu0
      %2481 = vmatprep.mubr.bf16.mxu0 0
      %2482 = vmatmul.mubr.bf16.gmra.mrb[0].mxu0 %v2230
      %v2483 = vpop.f32.mrb[0].mxu0
      %v2484 = vadd.f32 %v2303, %v2483
      %v2485 = vpop.f32.mrb[0].mxu0
      %v2486 = vpop.f32.mrb[0].mxu0
      %v2487 = vadd.f32 %v2303, %v2486
      %v2488 = vpop.f32.mrb[0].mxu0
      %2489 = vmatprep.mubr.bf16.mxu0 0
      %2490 = vmatmul.mubr.bf16.gmra.mrb[0].mxu0 %v2231
      %v2491 = vpop.f32.mrb[0].mxu0
      %v2492 = vadd.f32 %v2303, %v2491
      %v2493 = vpop.f32.mrb[0].mxu0
      %v2494 = vpop.f32.mrb[0].mxu0
      %v2495 = vadd.f32 %v2303, %v2494
      %v2496 = vpop.f32.mrb[0].mxu0
      %2497 = vmatprep.mubr.bf16.mxu0 0
      %2498 = vmatmul.mubr.bf16.gmra.mrb[0].mxu0 %v2232
      %v2499 = vpop.f32.mrb[0].mxu0
      %v2500 = vadd.f32 %v2303, %v2499
      %v2501 = vpop.f32.mrb[0].mxu0
      %v2502 = vpop.f32.mrb[0].mxu0
      %v2503 = vadd.f32 %v2303, %v2502
      %v2504 = vpop.f32.mrb[0].mxu0
      %2505 = vmatprep.mubr.bf16.mxu0 0
      %2506 = vmatmul.mubr.bf16.gmra.mrb[0].mxu0 %v2233
      %v2507 = vpop.f32.mrb[0].mxu0
      %v2508 = vadd.f32 %v2303, %v2507
      %v2509 = vpop.f32.mrb[0].mxu0
      %v2510 = vpop.f32.mrb[0].mxu0
      %v2511 = vadd.f32 %v2303, %v2510
      %v2512 = vpop.f32.mrb[0].mxu0
      %2513 = vmatprep.mubr.bf16.mxu0 0
      %2514 = vmatmul.mubr.bf16.gmra.mrb[0].mxu0 %v2234
      %v2515 = vpop.f32.mrb[0].mxu0
      %v2516 = vadd.f32 %v2303, %v2515
      %v2517 = vpop.f32.mrb[0].mxu0
      %v2518 = vpop.f32.mrb[0].mxu0
      %v2519 = vadd.f32 %v2303, %v2518
      %v2520 = vpop.f32.mrb[0].mxu0
      %2521 = vmatprep.mubr.bf16.mxu0 0
      %2522 = vmatmul.mubr.bf16.gmra.mrb[0].mxu0 %v2235
      %v2523 = vpop.f32.mrb[0].mxu0
      %v2524 = vadd.f32 %v2303, %v2523
      %v2525 = vpop.f32.mrb[0].mxu0
      %v2526 = vpop.f32.mrb[0].mxu0
      %v2527 = vadd.f32 %v2303, %v2526
      %v2528 = vpop.f32.mrb[0].mxu0
      %2529 = vmatprep.mubr.bf16.mxu0 0
      %2530 = vmatmul.mubr.bf16.gmra.mrb[0].mxu0 %v2236
      %v2531 = vpop.f32.mrb[0].mxu0
      %v2532 = vadd.f32 %v2303, %v2531
      %v2533 = vpop.f32.mrb[0].mxu0
      %v2534 = vpop.f32.mrb[0].mxu0
      %v2535 = vadd.f32 %v2303, %v2534
      %v2536 = vpop.f32.mrb[0].mxu0
      %2537 = vmatprep.mubr.bf16.mxu0 0
      %2538 = vmatmul.mubr.bf16.gmra.mrb[0].mxu0 %v2237
      %v2539 = vpop.f32.mrb[0].mxu0
      %v2540 = vadd.f32 %v2303, %v2539
      %v2541 = vpop.f32.mrb[0].mxu0
      %v2542 = vpop.f32.mrb[0].mxu0
      %v2543 = vadd.f32 %v2303, %v2542
      %v2544 = vpop.f32.mrb[0].mxu0
      %2545 = vmatprep.mubr.bf16.mxu0 0
      %2546 = vmatmul.mubr.bf16.gmra.mrb[0].mxu0 %v2238
      %v2547 = vpop.f32.mrb[0].mxu0
      %v2548 = vadd.f32 %v2303, %v2547
      %v2549 = vpop.f32.mrb[0].mxu0
      %v2550 = vpop.f32.mrb[0].mxu0
      %v2551 = vadd.f32 %v2303, %v2550
      %v2552 = vpop.f32.mrb[0].mxu0
      %2553 = vmatprep.mubr.bf16.mxu0 0
      %2554 = vmatmul.mubr.bf16.gmra.mrb[0].mxu0 %v2239
      %v2555 = vpop.f32.mrb[0].mxu0
      %v2556 = vadd.f32 %v2303, %v2555
      %v2557 = vpop.f32.mrb[0].mxu0
      %v2558 = vpop.f32.mrb[0].mxu0
      %v2559 = vadd.f32 %v2303, %v2558
      %v2560 = vpop.f32.mrb[0].mxu0
      %2561 = vmatprep.mubr.bf16.mxu0 0
      %2562 = vmatmul.mubr.bf16.gmra.mrb[0].mxu0 %v2240
      %v2563 = vpop.f32.mrb[0].mxu0
      %v2564 = vadd.f32 %v2303, %v2563
      %v2565 = vpop.f32.mrb[0].mxu0
      %v2566 = vpop.f32.mrb[0].mxu0
      %v2567 = vadd.f32 %v2303, %v2566
      %v2568 = vpop.f32.mrb[0].mxu0
      %2569 = vmatprep.mubr.bf16.mxu0 0
      %2570 = vmatmul.mubr.bf16.gmra.mrb[0].mxu0 %v2241
      %v2571 = vpop.f32.mrb[0].mxu0
      %v2572 = vadd.f32 %v2303, %v2571
      %v2573 = vpop.f32.mrb[0].mxu0
      %v2574 = vpop.f32.mrb[0].mxu0
      %v2575 = vadd.f32 %v2303, %v2574
      %v2576 = vpop.f32.mrb[0].mxu0
      %2577 = vmatprep.mubr.bf16.mxu0 0
      %2578 = vmatmul.mubr.bf16.gmra.mrb[0].mxu0 %v2242
      %v2579 = vpop.f32.mrb[0].mxu0
      %v2580 = vadd.f32 %v2303, %v2579
      %v2581 = vpop.f32.mrb[0].mxu0
      %v2582 = vpop.f32.mrb[0].mxu0
      %v2583 = vadd.f32 %v2303, %v2582
      %v2584 = vpop.f32.mrb[0].mxu0
      %2585 = vmatprep.mubr.bf16.mxu0 0
      %2586 = vmatmul.mubr.bf16.gmra.mrb[0].mxu0 %v2243
      %v2587 = vpop.f32.mrb[0].mxu0
      %v2588 = vadd.f32 %v2303, %v2587
      %v2589 = vpop.f32.mrb[0].mxu0
      %v2590 = vpop.f32.mrb[0].mxu0
      %v2591 = vadd.f32 %v2303, %v2590
      %v2592 = vpop.f32.mrb[0].mxu0
      %2593 = vmatprep.mubr.bf16.mxu0 0
      %2594 = vmatmul.mubr.bf16.gmra.mrb[0].mxu0 %v2244
      %v2595 = vpop.f32.mrb[0].mxu0
      %v2596 = vadd.f32 %v2303, %v2595
      %v2597 = vpop.f32.mrb[0].mxu0
      %v2598 = vpop.f32.mrb[0].mxu0
      %v2599 = vadd.f32 %v2303, %v2598
      %v2600 = vpop.f32.mrb[0].mxu0
      %2601 = vmatprep.mubr.bf16.mxu0 0
      %2602 = vmatmul.mubr.bf16.gmra.mrb[0].mxu0 %v2245
      %v2603 = vpop.f32.mrb[0].mxu0
      %v2604 = vadd.f32 %v2303, %v2603
      %v2605 = vpop.f32.mrb[0].mxu0
      %v2606 = vpop.f32.mrb[0].mxu0
      %v2607 = vadd.f32 %v2303, %v2606
      %v2608 = vpop.f32.mrb[0].mxu0
      %2609 = vmatprep.mubr.bf16.mxu0 0
      %2610 = vmatmul.mubr.bf16.gmra.mrb[0].mxu0 %v2246
      %v2611 = vpop.f32.mrb[0].mxu0
      %v2612 = vadd.f32 %v2303, %v2611
      %v2613 = vpop.f32.mrb[0].mxu0
      %v2614 = vpop.f32.mrb[0].mxu0
      %v2615 = vadd.f32 %v2303, %v2614
      %v2616 = vpop.f32.mrb[0].mxu0
      %2617 = vmatprep.mubr.bf16.mxu0 0
      %2618 = vmatmul.mubr.bf16.gmra.mrb[0].mxu0 %v2247
      %v2619 = vpop.f32.mrb[0].mxu0
      %v2620 = vadd.f32 %v2303, %v2619
      %v2621 = vpop.f32.mrb[0].mxu0
      %v2622 = vpop.f32.mrb[0].mxu0
      %v2623 = vadd.f32 %v2303, %v2622
      %v2624 = vpop.f32.mrb[0].mxu0
      %2625 = vmatprep.mubr.bf16.mxu0 0
      %2626 = vmatmul.mubr.bf16.gmra.mrb[0].mxu0 %v2248
      %v2627 = vpop.f32.mrb[0].mxu0
      %v2628 = vadd.f32 %v2303, %v2627
      %v2629 = vpop.f32.mrb[0].mxu0
      %v2630 = vpop.f32.mrb[0].mxu0
      %v2631 = vadd.f32 %v2303, %v2630
      %v2632 = vpop.f32.mrb[0].mxu0
      %2633 = vmatprep.mubr.bf16.mxu0 0
      %2634 = vmatmul.mubr.bf16.gmra.mrb[0].mxu0 %v2249
      %v2635 = vpop.f32.mrb[0].mxu0
      %v2636 = vadd.f32 %v2303, %v2635
      %v2637 = vpop.f32.mrb[0].mxu0
      %v2638 = vpop.f32.mrb[0].mxu0
      %v2639 = vadd.f32 %v2303, %v2638
      %v2640 = vpop.f32.mrb[0].mxu0
      %2641 = vmatprep.mubr.bf16.mxu0 0
      %2642 = vmatmul.mubr.bf16.gmra.mrb[0].mxu0 %v2250
      %v2643 = vpop.f32.mrb[0].mxu0
      %v2644 = vadd.f32 %v2303, %v2643
      %v2645 = vpop.f32.mrb[0].mxu0
      %v2646 = vpop.f32.mrb[0].mxu0
      %v2647 = vadd.f32 %v2303, %v2646
      %v2648 = vpop.f32.mrb[0].mxu0
      %2649 = vmatprep.mubr.bf16.mxu0 0
      %2650 = vmatmul.mubr.bf16.gmra.mrb[0].mxu0 %v2251
      %v2651 = vpop.f32.mrb[0].mxu0
      %v2652 = vadd.f32 %v2303, %v2651
      %v2653 = vpop.f32.mrb[0].mxu0
      %v2654 = vpop.f32.mrb[0].mxu0
      %v2655 = vadd.f32 %v2303, %v2654
      %v2656 = vpop.f32.mrb[0].mxu0
      %2657 = vmatprep.mubr.bf16.mxu0 0
      %2658 = vmatmul.mubr.bf16.gmra.mrb[0].mxu0 %v2252
      %v2659 = vpop.f32.mrb[0].mxu0
      %v2660 = vadd.f32 %v2303, %v2659
      %v2661 = vpop.f32.mrb[0].mxu0
      %v2662 = vpop.f32.mrb[0].mxu0
      %v2663 = vadd.f32 %v2303, %v2662
      %v2664 = vpop.f32.mrb[0].mxu0
      %2665 = vmatprep.mubr.bf16.mxu0 0
      %2666 = vmatmul.mubr.bf16.gmra.mrb[0].mxu0 %v2253
      %v2667 = vpop.f32.mrb[0].mxu0
      %v2668 = vadd.f32 %v2303, %v2667
      %v2669 = vpop.f32.mrb[0].mxu0
      %v2670 = vpop.f32.mrb[0].mxu0
      %v2671 = vadd.f32 %v2303, %v2670
      %v2672 = vpop.f32.mrb[0].mxu0
      %2673 = vmatprep.mubr.bf16.mxu0 0
      %2674 = vmatmul.mubr.bf16.gmra.mrb[0].mxu0 %v2254
      %v2675 = vpop.f32.mrb[0].mxu0
      %v2676 = vadd.f32 %v2303, %v2675
      %v2677 = vpop.f32.mrb[0].mxu0
      %v2678 = vpop.f32.mrb[0].mxu0
      %v2679 = vadd.f32 %v2303, %v2678
      %v2680 = vpop.f32.mrb[0].mxu0
      %2681 = vmatprep.mubr.bf16.mxu0 0
      %2682 = vmatmul.mubr.bf16.gmra.mrb[0].mxu0 %v2255
      %v2683 = vpop.f32.mrb[0].mxu0
      %v2684 = vadd.f32 %v2303, %v2683
      %v2685 = vpop.f32.mrb[0].mxu0
      %v2686 = vpop.f32.mrb[0].mxu0
      %v2687 = vadd.f32 %v2303, %v2686
      %v2688 = vpop.f32.mrb[0].mxu0
      %2689 = vmatprep.mubr.bf16.mxu0 0
      %2690 = vmatmul.mubr.bf16.gmra.mrb[0].mxu0 %v2256
      %v2691 = vpop.f32.mrb[0].mxu0
      %v2692 = vadd.f32 %v2303, %v2691
      %v2693 = vpop.f32.mrb[0].mxu0
      %v2694 = vpop.f32.mrb[0].mxu0
      %v2695 = vadd.f32 %v2303, %v2694
      %v2696 = vpop.f32.mrb[0].mxu0
      %2697 = vmatprep.mubr.bf16.mxu0 0
      %2698 = vmatmul.mubr.bf16.gmra.mrb[0].mxu0 %v2257
      %v2699 = vpop.f32.mrb[0].mxu0
      %v2700 = vadd.f32 %v2303, %v2699
      %v2701 = vpop.f32.mrb[0].mxu0
      %v2702 = vpop.f32.mrb[0].mxu0
      %v2703 = vadd.f32 %v2303, %v2702
      %v2704 = vpop.f32.mrb[0].mxu0
      %2705 = vmatprep.mubr.bf16.mxu0 0
      %2706 = vmatmul.mubr.bf16.gmra.mrb[0].mxu0 %v2258
      %v2707 = vpop.f32.mrb[0].mxu0
      %v2708 = vadd.f32 %v2303, %v2707
      %v2709 = vpop.f32.mrb[0].mxu0
      %v2710 = vpop.f32.mrb[0].mxu0
      %v2711 = vadd.f32 %v2303, %v2710
      %v2712 = vpop.f32.mrb[0].mxu0
      %2713 = vmatprep.mubr.bf16.mxu0 0
      %2714 = vmatmul.mubr.bf16.gmra.mrb[0].mxu0 %v2259
      %v2715 = vpop.f32.mrb[0].mxu0
      %v2716 = vadd.f32 %v2303, %v2715
      %v2717 = vpop.f32.mrb[0].mxu0
      %v2718 = vpop.f32.mrb[0].mxu0
      %v2719 = vadd.f32 %v2303, %v2718
      %v2720 = vpop.f32.mrb[0].mxu0
      %2721 = vmatprep.mubr.bf16.mxu0 0
      %2722 = vmatmul.mubr.bf16.gmra.mrb[0].mxu0 %v2260
      %v2723 = vpop.f32.mrb[0].mxu0
      %v2724 = vadd.f32 %v2303, %v2723
      %v2725 = vpop.f32.mrb[0].mxu0
      %v2726 = vpop.f32.mrb[0].mxu0
      %v2727 = vadd.f32 %v2303, %v2726
      %v2728 = vpop.f32.mrb[0].mxu0
      %2729 = vmatprep.mubr.bf16.mxu0 0
      %2730 = vmatmul.mubr.bf16.gmra.mrb[0].mxu0 %v2261
      %v2731 = vpop.f32.mrb[0].mxu0
      %v2732 = vadd.f32 %v2303, %v2731
      %v2733 = vpop.f32.mrb[0].mxu0
      %v2734 = vpop.f32.mrb[0].mxu0
      %v2735 = vadd.f32 %v2303, %v2734
      %v2736 = vpop.f32.mrb[0].mxu0
      %2737 = vmatprep.mubr.bf16.mxu0 0
      %2738 = vmatmul.mubr.bf16.gmra.mrb[0].mxu0 %v2262
      %v2739 = vpop.f32.mrb[0].mxu0
      %v2740 = vadd.f32 %v2303, %v2739
      %v2741 = vpop.f32.mrb[0].mxu0
      %v2742 = vpop.f32.mrb[0].mxu0
      %v2743 = vadd.f32 %v2303, %v2742
      %v2744 = vpop.f32.mrb[0].mxu0
      %2745 = vmatprep.mubr.bf16.mxu0 0
      %2746 = vmatmul.mubr.bf16.gmra.mrb[0].mxu0 %v2263
      %v2747 = vpop.f32.mrb[0].mxu0
      %v2748 = vadd.f32 %v2303, %v2747
      %v2749 = vpop.f32.mrb[0].mxu0
      %v2750 = vpop.f32.mrb[0].mxu0
      %v2751 = vadd.f32 %v2303, %v2750
      %v2752 = vpop.f32.mrb[0].mxu0
      %2753 = vmatprep.mubr.bf16.mxu0 0
      %2754 = vmatmul.mubr.bf16.gmra.mrb[0].mxu0 %v2264
      %v2755 = vpop.f32.mrb[0].mxu0
      %v2756 = vadd.f32 %v2303, %v2755
      %v2757 = vpop.f32.mrb[0].mxu0
      %v2758 = vpop.f32.mrb[0].mxu0
      %v2759 = vadd.f32 %v2303, %v2758
      %v2760 = vpop.f32.mrb[0].mxu0
      %2761 = vmatprep.mubr.bf16.mxu0 0
      %2762 = vmatmul.mubr.bf16.gmra.mrb[0].mxu0 %v2265
      %v2763 = vpop.f32.mrb[0].mxu0
      %v2764 = vadd.f32 %v2303, %v2763
      %v2765 = vpop.f32.mrb[0].mxu0
      %v2766 = vpop.f32.mrb[0].mxu0
      %v2767 = vadd.f32 %v2303, %v2766
      %v2768 = vpop.f32.mrb[0].mxu0
      %2769 = vmatprep.mubr.bf16.mxu0 0
      %2770 = vmatmul.mubr.bf16.gmra.mrb[0].mxu0 %v2266
      %v2771 = vpop.f32.mrb[0].mxu0
      %v2772 = vadd.f32 %v2303, %v2771
      %v2773 = vpop.f32.mrb[0].mxu0
      %v2774 = vpop.f32.mrb[0].mxu0
      %v2775 = vadd.f32 %v2303, %v2774
      %v2776 = vpop.f32.mrb[0].mxu0
      %2777 = vmatprep.mubr.bf16.mxu0 0
      %2778 = vmatmul.mubr.bf16.gmra.mrb[0].mxu0 %v2267
      %v2779 = vpop.f32.mrb[0].mxu0
      %v2780 = vadd.f32 %v2303, %v2779
      %v2781 = vpop.f32.mrb[0].mxu0
      %v2782 = vpop.f32.mrb[0].mxu0
      %v2783 = vadd.f32 %v2303, %v2782
      %v2784 = vpop.f32.mrb[0].mxu0
      %2785 = vmatprep.mubr.bf16.mxu0 0
      %2786 = vmatmul.mubr.bf16.gmra.mrb[0].mxu0 %v2268
      %v2787 = vpop.f32.mrb[0].mxu0
      %v2788 = vadd.f32 %v2303, %v2787
      %v2789 = vpop.f32.mrb[0].mxu0
      %v2790 = vpop.f32.mrb[0].mxu0
      %v2791 = vadd.f32 %v2303, %v2790
      %v2792 = vpop.f32.mrb[0].mxu0
      %2793 = vmatprep.mubr.bf16.mxu0 0
      %2794 = vmatmul.mubr.bf16.gmra.mrb[0].mxu0 %v2269
      %v2795 = vpop.f32.mrb[0].mxu0
      %v2796 = vadd.f32 %v2303, %v2795
      %v2797 = vpop.f32.mrb[0].mxu0
      %v2798 = vpop.f32.mrb[0].mxu0
      %v2799 = vadd.f32 %v2303, %v2798
      %v2800 = vpop.f32.mrb[0].mxu0
      %2801 = vmatprep.mubr.bf16.mxu0 0
      %2802 = vmatmul.mubr.bf16.gmra.mrb[0].mxu0 %v2270
      %v2803 = vpop.f32.mrb[0].mxu0
      %v2804 = vadd.f32 %v2303, %v2803
      %v2805 = vpop.f32.mrb[0].mxu0
      %v2806 = vpop.f32.mrb[0].mxu0
      %v2807 = vadd.f32 %v2303, %v2806
      %v2808 = vpop.f32.mrb[0].mxu0
      %2809 = vmatprep.mubr.bf16.mxu0 0
      %2810 = vmatmul.mubr.bf16.gmra.mrb[0].mxu0 %v2271
      %v2811 = vpop.f32.mrb[0].mxu0
      %v2812 = vadd.f32 %v2303, %v2811
      %v2813 = vpop.f32.mrb[0].mxu0
      %v2814 = vpop.f32.mrb[0].mxu0
      %v2815 = vadd.f32 %v2303, %v2814
      %v2816 = vpop.f32.mrb[0].mxu0
      %2817 = vmatprep.mubr.bf16.mxu0 0
      %2818 = vmatmul.mubr.bf16.gmra.mrb[0].mxu0 %v2272
      %v2819 = vpop.f32.mrb[0].mxu0
      %v2820 = vadd.f32 %v2303, %v2819
      %v2821 = vpop.f32.mrb[0].mxu0
      %v2822 = vpop.f32.mrb[0].mxu0
      %v2823 = vadd.f32 %v2303, %v2822
      %v2824 = vpop.f32.mrb[0].mxu0
      %2825 = vmatprep.mubr.bf16.mxu0 0
      %2826 = vmatmul.mubr.bf16.gmra.mrb[0].mxu0 %v2273
      %v2827 = vpop.f32.mrb[0].mxu0
      %v2828 = vadd.f32 %v2303, %v2827
      %v2829 = vpop.f32.mrb[0].mxu0
      %v2830 = vpop.f32.mrb[0].mxu0
      %v2831 = vadd.f32 %v2303, %v2830
      %v2832 = vpop.f32.mrb[0].mxu0
      %2833 = vmatprep.mubr.bf16.mxu0 0
      %2834 = vmatmul.mubr.bf16.gmra.mrb[0].mxu0 %v2274
      %v2835 = vpop.f32.mrb[0].mxu0
      %v2836 = vadd.f32 %v2303, %v2835
      %v2837 = vpop.f32.mrb[0].mxu0
      %v2838 = vpop.f32.mrb[0].mxu0
      %v2839 = vadd.f32 %v2303, %v2838
      %v2840 = vpop.f32.mrb[0].mxu0
      %2841 = vmatprep.mubr.bf16.mxu0 0
      %2842 = vmatmul.mubr.bf16.gmra.mrb[0].mxu0 %v2275
      %v2843 = vpop.f32.mrb[0].mxu0
      %v2844 = vadd.f32 %v2303, %v2843
      %v2845 = vpop.f32.mrb[0].mxu0
      %v2846 = vpop.f32.mrb[0].mxu0
      %v2847 = vadd.f32 %v2303, %v2846
      %v2848 = vpop.f32.mrb[0].mxu0
      %2849 = vmatprep.mubr.bf16.mxu0 0
      %2850 = vmatmul.mubr.bf16.gmra.mrb[0].mxu0 %v2276
      %v2851 = vpop.f32.mrb[0].mxu0
      %v2852 = vadd.f32 %v2303, %v2851
      %v2853 = vpop.f32.mrb[0].mxu0
      %v2854 = vpop.f32.mrb[0].mxu0
      %v2855 = vadd.f32 %v2303, %v2854
      %v2856 = vpop.f32.mrb[0].mxu0
      %2857 = vmatprep.mubr.bf16.mxu0 0
      %2858 = vmatmul.mubr.bf16.gmra.mrb[0].mxu0 %v2277
      %v2859 = vpop.f32.mrb[0].mxu0
      %v2860 = vadd.f32 %v2303, %v2859
      %v2861 = vpop.f32.mrb[0].mxu0
      %v2862 = vpop.f32.mrb[0].mxu0
      %v2863 = vadd.f32 %v2303, %v2862
      %v2864 = vpop.f32.mrb[0].mxu0
      %2865 = vmatprep.mubr.bf16.mxu0 0
      %2866 = vmatmul.mubr.bf16.gmra.mrb[0].mxu0 %v2278
      %v2867 = vpop.f32.mrb[0].mxu0
      %v2868 = vadd.f32 %v2303, %v2867
      %v2869 = vpop.f32.mrb[0].mxu0
      %v2870 = vpop.f32.mrb[0].mxu0
      %v2871 = vadd.f32 %v2303, %v2870
      %v2872 = vpop.f32.mrb[0].mxu0
      %2873 = vmatprep.mubr.bf16.mxu0 0
      %2874 = vmatmul.mubr.bf16.gmra.mrb[0].mxu0 %v2279
      %v2875 = vpop.f32.mrb[0].mxu0
      %v2876 = vadd.f32 %v2303, %v2875
      %v2877 = vpop.f32.mrb[0].mxu0
      %v2878 = vpop.f32.mrb[0].mxu0
      %v2879 = vadd.f32 %v2303, %v2878
      %v2880 = vpop.f32.mrb[0].mxu0
      %2881 = vmatprep.mubr.bf16.mxu0 0
      %2882 = vmatmul.mubr.bf16.gmra.mrb[0].mxu0 %v2280
      %v2883 = vpop.f32.mrb[0].mxu0
      %v2884 = vadd.f32 %v2303, %v2883
      %v2885 = vpop.f32.mrb[0].mxu0
      %v2886 = vpop.f32.mrb[0].mxu0
      %v2887 = vadd.f32 %v2303, %v2886
      %v2888 = vpop.f32.mrb[0].mxu0
      %2889 = vmatprep.mubr.bf16.mxu0 0
      %2890 = vmatmul.mubr.bf16.gmra.mrb[0].mxu0 %v2281
      %v2891 = vpop.f32.mrb[0].mxu0
      %v2892 = vadd.f32 %v2303, %v2891
      %v2893 = vpop.f32.mrb[0].mxu0
      %v2894 = vpop.f32.mrb[0].mxu0
      %v2895 = vadd.f32 %v2303, %v2894
      %v2896 = vpop.f32.mrb[0].mxu0
      %2897 = vdwg.mxu0
      %v2898 = vmax.f32 %v2388, 0.0
      %v2899 = vmax.f32 %v2391, 0.0
      %v2900 = vmax.f32 %v2396, 0.0
      %v2901 = vmax.f32 %v2399, 0.0
      %v2902 = vmax.f32 %v2404, 0.0
      %v2903 = vmax.f32 %v2407, 0.0
      %v2904 = vmax.f32 %v2412, 0.0
      %v2905 = vmax.f32 %v2415, 0.0
      %v2906 = vmax.f32 %v2420, 0.0
      %v2907 = vmax.f32 %v2423, 0.0
      %v2908 = vmax.f32 %v2428, 0.0
      %v2909 = vmax.f32 %v2431, 0.0
      %v2910 = vmax.f32 %v2436, 0.0
      %v2911 = vmax.f32 %v2439, 0.0
      %v2912 = vmax.f32 %v2444, 0.0
      %v2913 = vmax.f32 %v2447, 0.0
      %v2914 = vmax.f32 %v2452, 0.0
      %v2915 = vmax.f32 %v2455, 0.0
      %v2916 = vmax.f32 %v2460, 0.0
      %v2917 = vmax.f32 %v2463, 0.0
      %v2918 = vmax.f32 %v2468, 0.0
      %v2919 = vmax.f32 %v2471, 0.0
      %v2920 = vmax.f32 %v2476, 0.0
      %v2921 = vmax.f32 %v2479, 0.0
      %v2922 = vmax.f32 %v2484, 0.0
      %v2923 = vmax.f32 %v2487, 0.0
      %v2924 = vmax.f32 %v2492, 0.0
      %v2925 = vmax.f32 %v2495, 0.0
      %v2926 = vmax.f32 %v2500, 0.0
      %v2927 = vmax.f32 %v2503, 0.0
      %v2928 = vmax.f32 %v2508, 0.0
      %v2929 = vmax.f32 %v2511, 0.0
      %v2930 = vmax.f32 %v2516, 0.0
      %v2931 = vmax.f32 %v2519, 0.0
      %v2932 = vmax.f32 %v2524, 0.0
      %v2933 = vmax.f32 %v2527, 0.0
      %v2934 = vmax.f32 %v2532, 0.0
      %v2935 = vmax.f32 %v2535, 0.0
      %v2936 = vmax.f32 %v2540, 0.0
      %v2937 = vmax.f32 %v2543, 0.0
      %v2938 = vmax.f32 %v2548, 0.0
      %v2939 = vmax.f32 %v2551, 0.0
      %v2940 = vmax.f32 %v2556, 0.0
      %v2941 = vmax.f32 %v2559, 0.0
      %v2942 = vmax.f32 %v2564, 0.0
      %v2943 = vmax.f32 %v2567, 0.0
      %v2944 = vmax.f32 %v2572, 0.0
      %v2945 = vmax.f32 %v2575, 0.0
      %v2946 = vmax.f32 %v2580, 0.0
      %v2947 = vmax.f32 %v2583, 0.0
      %v2948 = vmax.f32 %v2588, 0.0
      %v2949 = vmax.f32 %v2591, 0.0
      %v2950 = vmax.f32 %v2596, 0.0
      %v2951 = vmax.f32 %v2599, 0.0
      %v2952 = vmax.f32 %v2604, 0.0
      %v2953 = vmax.f32 %v2607, 0.0
      %v2954 = vmax.f32 %v2612, 0.0
      %v2955 = vmax.f32 %v2615, 0.0
      %v2956 = vmax.f32 %v2620, 0.0
      %v2957 = vmax.f32 %v2623, 0.0
      %v2958 = vmax.f32 %v2628, 0.0
      %v2959 = vmax.f32 %v2631, 0.0
      %v2960 = vmax.f32 %v2636, 0.0
      %v2961 = vmax.f32 %v2639, 0.0
      %v2962 = vmax.f32 %v2644, 0.0
      %v2963 = vmax.f32 %v2647, 0.0
      %v2964 = vmax.f32 %v2652, 0.0
      %v2965 = vmax.f32 %v2655, 0.0
      %v2966 = vmax.f32 %v2660, 0.0
      %v2967 = vmax.f32 %v2663, 0.0
      %v2968 = vmax.f32 %v2668, 0.0
      %v2969 = vmax.f32 %v2671, 0.0
      %v2970 = vmax.f32 %v2676, 0.0
      %v2971 = vmax.f32 %v2679, 0.0
      %v2972 = vmax.f32 %v2684, 0.0
      %v2973 = vmax.f32 %v2687, 0.0
      %v2974 = vmax.f32 %v2692, 0.0
      %v2975 = vmax.f32 %v2695, 0.0
      %v2976 = vmax.f32 %v2700, 0.0
      %v2977 = vmax.f32 %v2703, 0.0
      %v2978 = vmax.f32 %v2708, 0.0
      %v2979 = vmax.f32 %v2711, 0.0
      %v2980 = vmax.f32 %v2716, 0.0
      %v2981 = vmax.f32 %v2719, 0.0
      %v2982 = vmax.f32 %v2724, 0.0
      %v2983 = vmax.f32 %v2727, 0.0
      %v2984 = vmax.f32 %v2732, 0.0
      %v2985 = vmax.f32 %v2735, 0.0
      %v2986 = vmax.f32 %v2740, 0.0
      %v2987 = vmax.f32 %v2743, 0.0
      %v2988 = vmax.f32 %v2748, 0.0
      %v2989 = vmax.f32 %v2751, 0.0
      %v2990 = vmax.f32 %v2756, 0.0
      %v2991 = vmax.f32 %v2759, 0.0
      %v2992 = vmax.f32 %v2764, 0.0
      %v2993 = vmax.f32 %v2767, 0.0
      %v2994 = vmax.f32 %v2772, 0.0
      %v2995 = vmax.f32 %v2775, 0.0
      %v2996 = vmax.f32 %v2780, 0.0
      %v2997 = vmax.f32 %v2783, 0.0
      %v2998 = vmax.f32 %v2788, 0.0
      %v2999 = vmax.f32 %v2791, 0.0
      %v3000 = vmax.f32 %v2796, 0.0
      %v3001 = vmax.f32 %v2799, 0.0
      %v3002 = vmax.f32 %v2804, 0.0
      %v3003 = vmax.f32 %v2807, 0.0
      %v3004 = vmax.f32 %v2812, 0.0
      %v3005 = vmax.f32 %v2815, 0.0
      %v3006 = vmax.f32 %v2820, 0.0
      %v3007 = vmax.f32 %v2823, 0.0
      %v3008 = vmax.f32 %v2828, 0.0
      %v3009 = vmax.f32 %v2831, 0.0
      %v3010 = vmax.f32 %v2836, 0.0
      %v3011 = vmax.f32 %v2839, 0.0
      %v3012 = vmax.f32 %v2844, 0.0
      %v3013 = vmax.f32 %v2847, 0.0
      %v3014 = vmax.f32 %v2852, 0.0
      %v3015 = vmax.f32 %v2855, 0.0
      %v3016 = vmax.f32 %v2860, 0.0
      %v3017 = vmax.f32 %v2863, 0.0
      %v3018 = vmax.f32 %v2868, 0.0
      %v3019 = vmax.f32 %v2871, 0.0
      %v3020 = vmax.f32 %v2876, 0.0
      %v3021 = vmax.f32 %v2879, 0.0
      %v3022 = vmax.f32 %v2884, 0.0
      %v3023 = vmax.f32 %v2887, 0.0
      %v3024 = vmax.f32 %v2892, 0.0
      %v3025 = vmax.f32 %v2895, 0.0
      %v3026 = vpack.c.bf16 %v2899, %v2898
      %v3027 = vpack.c.bf16 %v2901, %v2900
      %v3028 = vpack.c.bf16 %v2903, %v2902
      %v3029 = vpack.c.bf16 %v2905, %v2904
      %v3030 = vpack.c.bf16 %v2907, %v2906
      %v3031 = vpack.c.bf16 %v2909, %v2908
      %v3032 = vpack.c.bf16 %v2911, %v2910
      %v3033 = vpack.c.bf16 %v2913, %v2912
      %v3034 = vpack.c.bf16 %v2915, %v2914
      %v3035 = vpack.c.bf16 %v2917, %v2916
      %v3036 = vpack.c.bf16 %v2919, %v2918
      %v3037 = vpack.c.bf16 %v2921, %v2920
      %v3038 = vpack.c.bf16 %v2923, %v2922
      %v3039 = vpack.c.bf16 %v2925, %v2924
      %v3040 = vpack.c.bf16 %v2927, %v2926
      %v3041 = vpack.c.bf16 %v2929, %v2928
      %v3042 = vpack.c.bf16 %v2931, %v2930
      %v3043 = vpack.c.bf16 %v2933, %v2932
      %v3044 = vpack.c.bf16 %v2935, %v2934
      %v3045 = vpack.c.bf16 %v2937, %v2936
      %v3046 = vpack.c.bf16 %v2939, %v2938
      %v3047 = vpack.c.bf16 %v2941, %v2940
      %v3048 = vpack.c.bf16 %v2943, %v2942
      %v3049 = vpack.c.bf16 %v2945, %v2944
      %v3050 = vpack.c.bf16 %v2947, %v2946
      %v3051 = vpack.c.bf16 %v2949, %v2948
      %v3052 = vpack.c.bf16 %v2951, %v2950
      %v3053 = vpack.c.bf16 %v2953, %v2952
      %v3054 = vpack.c.bf16 %v2955, %v2954
      %v3055 = vpack.c.bf16 %v2957, %v2956
      %v3056 = vpack.c.bf16 %v2959, %v2958
      %v3057 = vpack.c.bf16 %v2961, %v2960
      %v3058 = vpack.c.bf16 %v2963, %v2962
      %v3059 = vpack.c.bf16 %v2965, %v2964
      %v3060 = vpack.c.bf16 %v2967, %v2966
      %v3061 = vpack.c.bf16 %v2969, %v2968
      %v3062 = vpack.c.bf16 %v2971, %v2970
      %v3063 = vpack.c.bf16 %v2973, %v2972
      %v3064 = vpack.c.bf16 %v2975, %v2974
      %v3065 = vpack.c.bf16 %v2977, %v2976
      %v3066 = vpack.c.bf16 %v2979, %v2978
      %v3067 = vpack.c.bf16 %v2981, %v2980
      %v3068 = vpack.c.bf16 %v2983, %v2982
      %v3069 = vpack.c.bf16 %v2985, %v2984
      %v3070 = vpack.c.bf16 %v2987, %v2986
      %v3071 = vpack.c.bf16 %v2989, %v2988
      %v3072 = vpack.c.bf16 %v2991, %v2990
      %v3073 = vpack.c.bf16 %v2993, %v2992
      %v3074 = vpack.c.bf16 %v2995, %v2994
      %v3075 = vpack.c.bf16 %v2997, %v2996
      %v3076 = vpack.c.bf16 %v2999, %v2998
      %v3077 = vpack.c.bf16 %v3001, %v3000
      %v3078 = vpack.c.bf16 %v3003, %v3002
      %v3079 = vpack.c.bf16 %v3005, %v3004
      %v3080 = vpack.c.bf16 %v3007, %v3006
      %v3081 = vpack.c.bf16 %v3009, %v3008
      %v3082 = vpack.c.bf16 %v3011, %v3010
      %v3083 = vpack.c.bf16 %v3013, %v3012
      %v3084 = vpack.c.bf16 %v3015, %v3014
      %v3085 = vpack.c.bf16 %v3017, %v3016
      %v3086 = vpack.c.bf16 %v3019, %v3018
      %v3087 = vpack.c.bf16 %v3021, %v3020
      %v3088 = vpack.c.bf16 %v3023, %v3022
      %v3089 = vpack.c.bf16 %v3025, %v3024
      %v3090 = vld [vmem:[%s7] sm:$0xf]
      %v3091 = vld [vmem:[%s7 + $0x4] sm:$0xf]
      %v3092 = vld [vmem:[%s7 + $0x8] sm:$0xf]
      %v3093 = vld [vmem:[%s7 + $0xc] sm:$0xf]
      %v3094 = vld [vmem:[%s7 + $0x10] sm:$0xf]
      %v3095 = vld [vmem:[%s7 + $0x14] sm:$0xf]
      %v3096 = vld [vmem:[%s7 + $0x18] sm:$0xf]
      %v3097 = vld [vmem:[%s7 + $0x1c] sm:$0xf]
      %v3098 = vld [vmem:[%s7 + $0x20] sm:$0xf]
      %v3099 = vld [vmem:[%s7 + $0x24] sm:$0xf]
      %v3100 = vld [vmem:[%s7 + $0x28] sm:$0xf]
      %v3101 = vld [vmem:[%s7 + $0x2c] sm:$0xf]
      %v3102 = vld [vmem:[%s7 + $0x30] sm:$0xf]
      %v3103 = vld [vmem:[%s7 + $0x34] sm:$0xf]
      %v3104 = vld [vmem:[%s7 + $0x38] sm:$0xf]
      %v3105 = vld [vmem:[%s7 + $0x3c] sm:$0xf]
      %v3106 = vld [vmem:[%s8] sm:$0x1]
      %v3108 = vlaneseq
      %v3109 = vshrl.u32 %v3108, 7
      %v3110 = vsub.s32 0, %v3109
      %v3111 = vrot.slane %v3106, %v3110
      %v3129 = vunpack.c.l.b16 %v3090
      %v3130 = vunpack.c.l.b16 %v3091
      %v3131 = vunpack.c.l.b16 %v3092
      %v3132 = vunpack.c.l.b16 %v3093
      %v3133 = vunpack.c.l.b16 %v3094
      %v3134 = vunpack.c.l.b16 %v3095
      %v3135 = vunpack.c.l.b16 %v3096
      %v3136 = vunpack.c.l.b16 %v3097
      %v3137 = vunpack.c.l.b16 %v3098
      %v3138 = vunpack.c.l.b16 %v3099
      %v3139 = vunpack.c.l.b16 %v3100
      %v3140 = vunpack.c.l.b16 %v3101
      %v3141 = vunpack.c.l.b16 %v3102
      %v3142 = vunpack.c.l.b16 %v3103
      %v3143 = vunpack.c.l.b16 %v3104
      %v3144 = vunpack.c.l.b16 %v3105
      %v3145 = vpack.c.b16 %v3130, %v3129
      %v3146 = vpack.c.b16 %v3132, %v3131
      %v3147 = vpack.c.b16 %v3134, %v3133
      %v3148 = vpack.c.b16 %v3136, %v3135
      %v3149 = vpack.c.b16 %v3138, %v3137
      %v3150 = vpack.c.b16 %v3140, %v3139
      %v3151 = vpack.c.b16 %v3142, %v3141
      %v3152 = vpack.c.b16 %v3144, %v3143
      %3161 = vmatprep.subr.bf16.mxu0 0
      %3162 = vmatpush1.bf16.msra.mxu0 %v3145
      %3163 = vmatprep.subr.bf16.mxu0 0
      %3164 = vmatpush1.bf16.msra.mxu0 %v3146
      %3165 = vmatprep.subr.bf16.mxu0 0
      %3166 = vmatpush1.bf16.msra.mxu0 %v3147
      %3167 = vmatprep.subr.bf16.mxu0 0
      %3168 = vmatpush1.bf16.msra.mxu0 %v3148
      %3169 = vmatprep.subr.bf16.mxu0 0
      %3170 = vmatpush1.bf16.msra.mxu0 %v3149
      %3171 = vmatprep.subr.bf16.mxu0 0
      %3172 = vmatpush1.bf16.msra.mxu0 %v3150
      %3173 = vmatprep.subr.bf16.mxu0 0
      %3174 = vmatpush1.bf16.msra.mxu0 %v3151
      %3175 = vmatprep.subr.bf16.mxu0 0
      %3176 = vmatpush1.bf16.msra.mxu0 %v3152
      %3177 = vmatprep.subr.bf16.mxu0 0
      %3178 = vmatpush1.bf16.msra.mxu0 0
      %3179 = vmatprep.subr.bf16.mxu0 0
      %3180 = vmatpush1.bf16.msra.mxu0 0
      %3181 = vmatprep.subr.bf16.mxu0 0
      %3182 = vmatpush1.bf16.msra.mxu0 0
      %3183 = vmatprep.subr.bf16.mxu0 0
      %3184 = vmatpush1.bf16.msra.mxu0 0
      %3185 = vmatprep.subr.bf16.mxu0 0
      %3186 = vmatpush1.bf16.msra.mxu0 0
      %3187 = vmatprep.subr.bf16.mxu0 0
      %3188 = vmatpush1.bf16.msra.mxu0 0
      %3189 = vmatprep.subr.bf16.mxu0 0
      %3190 = vmatpush1.bf16.msra.mxu0 0
      %3191 = vmatprep.subr.bf16.mxu0 0
      %3192 = vmatpush1.bf16.msra.mxu0 0
      %3193 = vmatprep.mubr.bf16.mxu0 0
      %3194 = vmatmul.mubr.bf16.gmra.mrb[0].mxu0 %v3026
      %v3195 = vpop.f32.mrb[0].mxu0
      %v3196 = vadd.f32 %v3111, %v3195
      %v3197 = vpop.f32.mrb[0].mxu0
      %v3198 = vpop.f32.mrb[0].mxu0
      %v3199 = vadd.f32 %v3111, %v3198
      %v3200 = vpop.f32.mrb[0].mxu0
      %3201 = vmatprep.mubr.bf16.mxu0 0
      %3202 = vmatmul.mubr.bf16.gmra.mrb[0].mxu0 %v3027
      %v3203 = vpop.f32.mrb[0].mxu0
      %v3204 = vadd.f32 %v3111, %v3203
      %v3205 = vpop.f32.mrb[0].mxu0
      %v3206 = vpop.f32.mrb[0].mxu0
      %v3207 = vadd.f32 %v3111, %v3206
      %v3208 = vpop.f32.mrb[0].mxu0
      %3209 = vmatprep.mubr.bf16.mxu0 0
      %3210 = vmatmul.mubr.bf16.gmra.mrb[0].mxu0 %v3028
      %v3211 = vpop.f32.mrb[0].mxu0
      %v3212 = vadd.f32 %v3111, %v3211
      %v3213 = vpop.f32.mrb[0].mxu0
      %v3214 = vpop.f32.mrb[0].mxu0
      %v3215 = vadd.f32 %v3111, %v3214
      %v3216 = vpop.f32.mrb[0].mxu0
      %3217 = vmatprep.mubr.bf16.mxu0 0
      %3218 = vmatmul.mubr.bf16.gmra.mrb[0].mxu0 %v3029
      %v3219 = vpop.f32.mrb[0].mxu0
      %v3220 = vadd.f32 %v3111, %v3219
      %v3221 = vpop.f32.mrb[0].mxu0
      %v3222 = vpop.f32.mrb[0].mxu0
      %v3223 = vadd.f32 %v3111, %v3222
      %v3224 = vpop.f32.mrb[0].mxu0
      %3225 = vmatprep.mubr.bf16.mxu0 0
      %3226 = vmatmul.mubr.bf16.gmra.mrb[0].mxu0 %v3030
      %v3227 = vpop.f32.mrb[0].mxu0
      %v3228 = vadd.f32 %v3111, %v3227
      %v3229 = vpop.f32.mrb[0].mxu0
      %v3230 = vpop.f32.mrb[0].mxu0
      %v3231 = vadd.f32 %v3111, %v3230
      %v3232 = vpop.f32.mrb[0].mxu0
      %3233 = vmatprep.mubr.bf16.mxu0 0
      %3234 = vmatmul.mubr.bf16.gmra.mrb[0].mxu0 %v3031
      %v3235 = vpop.f32.mrb[0].mxu0
      %v3236 = vadd.f32 %v3111, %v3235
      %v3237 = vpop.f32.mrb[0].mxu0
      %v3238 = vpop.f32.mrb[0].mxu0
      %v3239 = vadd.f32 %v3111, %v3238
      %v3240 = vpop.f32.mrb[0].mxu0
      %3241 = vmatprep.mubr.bf16.mxu0 0
      %3242 = vmatmul.mubr.bf16.gmra.mrb[0].mxu0 %v3032
      %v3243 = vpop.f32.mrb[0].mxu0
      %v3244 = vadd.f32 %v3111, %v3243
      %v3245 = vpop.f32.mrb[0].mxu0
      %v3246 = vpop.f32.mrb[0].mxu0
      %v3247 = vadd.f32 %v3111, %v3246
      %v3248 = vpop.f32.mrb[0].mxu0
      %3249 = vmatprep.mubr.bf16.mxu0 0
      %3250 = vmatmul.mubr.bf16.gmra.mrb[0].mxu0 %v3033
      %v3251 = vpop.f32.mrb[0].mxu0
      %v3252 = vadd.f32 %v3111, %v3251
      %v3253 = vpop.f32.mrb[0].mxu0
      %v3254 = vpop.f32.mrb[0].mxu0
      %v3255 = vadd.f32 %v3111, %v3254
      %v3256 = vpop.f32.mrb[0].mxu0
      %3257 = vmatprep.mubr.bf16.mxu0 0
      %3258 = vmatmul.mubr.bf16.gmra.mrb[0].mxu0 %v3034
      %v3259 = vpop.f32.mrb[0].mxu0
      %v3260 = vadd.f32 %v3111, %v3259
      %v3261 = vpop.f32.mrb[0].mxu0
      %v3262 = vpop.f32.mrb[0].mxu0
      %v3263 = vadd.f32 %v3111, %v3262
      %v3264 = vpop.f32.mrb[0].mxu0
      %3265 = vmatprep.mubr.bf16.mxu0 0
      %3266 = vmatmul.mubr.bf16.gmra.mrb[0].mxu0 %v3035
      %v3267 = vpop.f32.mrb[0].mxu0
      %v3268 = vadd.f32 %v3111, %v3267
      %v3269 = vpop.f32.mrb[0].mxu0
      %v3270 = vpop.f32.mrb[0].mxu0
      %v3271 = vadd.f32 %v3111, %v3270
      %v3272 = vpop.f32.mrb[0].mxu0
      %3273 = vmatprep.mubr.bf16.mxu0 0
      %3274 = vmatmul.mubr.bf16.gmra.mrb[0].mxu0 %v3036
      %v3275 = vpop.f32.mrb[0].mxu0
      %v3276 = vadd.f32 %v3111, %v3275
      %v3277 = vpop.f32.mrb[0].mxu0
      %v3278 = vpop.f32.mrb[0].mxu0
      %v3279 = vadd.f32 %v3111, %v3278
      %v3280 = vpop.f32.mrb[0].mxu0
      %3281 = vmatprep.mubr.bf16.mxu0 0
      %3282 = vmatmul.mubr.bf16.gmra.mrb[0].mxu0 %v3037
      %v3283 = vpop.f32.mrb[0].mxu0
      %v3284 = vadd.f32 %v3111, %v3283
      %v3285 = vpop.f32.mrb[0].mxu0
      %v3286 = vpop.f32.mrb[0].mxu0
      %v3287 = vadd.f32 %v3111, %v3286
      %v3288 = vpop.f32.mrb[0].mxu0
      %3289 = vmatprep.mubr.bf16.mxu0 0
      %3290 = vmatmul.mubr.bf16.gmra.mrb[0].mxu0 %v3038
      %v3291 = vpop.f32.mrb[0].mxu0
      %v3292 = vadd.f32 %v3111, %v3291
      %v3293 = vpop.f32.mrb[0].mxu0
      %v3294 = vpop.f32.mrb[0].mxu0
      %v3295 = vadd.f32 %v3111, %v3294
      %v3296 = vpop.f32.mrb[0].mxu0
      %3297 = vmatprep.mubr.bf16.mxu0 0
      %3298 = vmatmul.mubr.bf16.gmra.mrb[0].mxu0 %v3039
      %v3299 = vpop.f32.mrb[0].mxu0
      %v3300 = vadd.f32 %v3111, %v3299
      %v3301 = vpop.f32.mrb[0].mxu0
      %v3302 = vpop.f32.mrb[0].mxu0
      %v3303 = vadd.f32 %v3111, %v3302
      %v3304 = vpop.f32.mrb[0].mxu0
      %3305 = vmatprep.mubr.bf16.mxu0 0
      %3306 = vmatmul.mubr.bf16.gmra.mrb[0].mxu0 %v3040
      %v3307 = vpop.f32.mrb[0].mxu0
      %v3308 = vadd.f32 %v3111, %v3307
      %v3309 = vpop.f32.mrb[0].mxu0
      %v3310 = vpop.f32.mrb[0].mxu0
      %v3311 = vadd.f32 %v3111, %v3310
      %v3312 = vpop.f32.mrb[0].mxu0
      %3313 = vmatprep.mubr.bf16.mxu0 0
      %3314 = vmatmul.mubr.bf16.gmra.mrb[0].mxu0 %v3041
      %v3315 = vpop.f32.mrb[0].mxu0
      %v3316 = vadd.f32 %v3111, %v3315
      %v3317 = vpop.f32.mrb[0].mxu0
      %v3318 = vpop.f32.mrb[0].mxu0
      %v3319 = vadd.f32 %v3111, %v3318
      %v3320 = vpop.f32.mrb[0].mxu0
      %3321 = vmatprep.mubr.bf16.mxu0 0
      %3322 = vmatmul.mubr.bf16.gmra.mrb[0].mxu0 %v3042
      %v3323 = vpop.f32.mrb[0].mxu0
      %v3324 = vadd.f32 %v3111, %v3323
      %v3325 = vpop.f32.mrb[0].mxu0
      %v3326 = vpop.f32.mrb[0].mxu0
      %v3327 = vadd.f32 %v3111, %v3326
      %v3328 = vpop.f32.mrb[0].mxu0
      %3329 = vmatprep.mubr.bf16.mxu0 0
      %3330 = vmatmul.mubr.bf16.gmra.mrb[0].mxu0 %v3043
      %v3331 = vpop.f32.mrb[0].mxu0
      %v3332 = vadd.f32 %v3111, %v3331
      %v3333 = vpop.f32.mrb[0].mxu0
      %v3334 = vpop.f32.mrb[0].mxu0
      %v3335 = vadd.f32 %v3111, %v3334
      %v3336 = vpop.f32.mrb[0].mxu0
      %3337 = vmatprep.mubr.bf16.mxu0 0
      %3338 = vmatmul.mubr.bf16.gmra.mrb[0].mxu0 %v3044
      %v3339 = vpop.f32.mrb[0].mxu0
      %v3340 = vadd.f32 %v3111, %v3339
      %v3341 = vpop.f32.mrb[0].mxu0
      %v3342 = vpop.f32.mrb[0].mxu0
      %v3343 = vadd.f32 %v3111, %v3342
      %v3344 = vpop.f32.mrb[0].mxu0
      %3345 = vmatprep.mubr.bf16.mxu0 0
      %3346 = vmatmul.mubr.bf16.gmra.mrb[0].mxu0 %v3045
      %v3347 = vpop.f32.mrb[0].mxu0
      %v3348 = vadd.f32 %v3111, %v3347
      %v3349 = vpop.f32.mrb[0].mxu0
      %v3350 = vpop.f32.mrb[0].mxu0
      %v3351 = vadd.f32 %v3111, %v3350
      %v3352 = vpop.f32.mrb[0].mxu0
      %3353 = vmatprep.mubr.bf16.mxu0 0
      %3354 = vmatmul.mubr.bf16.gmra.mrb[0].mxu0 %v3046
      %v3355 = vpop.f32.mrb[0].mxu0
      %v3356 = vadd.f32 %v3111, %v3355
      %v3357 = vpop.f32.mrb[0].mxu0
      %v3358 = vpop.f32.mrb[0].mxu0
      %v3359 = vadd.f32 %v3111, %v3358
      %v3360 = vpop.f32.mrb[0].mxu0
      %3361 = vmatprep.mubr.bf16.mxu0 0
      %3362 = vmatmul.mubr.bf16.gmra.mrb[0].mxu0 %v3047
      %v3363 = vpop.f32.mrb[0].mxu0
      %v3364 = vadd.f32 %v3111, %v3363
      %v3365 = vpop.f32.mrb[0].mxu0
      %v3366 = vpop.f32.mrb[0].mxu0
      %v3367 = vadd.f32 %v3111, %v3366
      %v3368 = vpop.f32.mrb[0].mxu0
      %3369 = vmatprep.mubr.bf16.mxu0 0
      %3370 = vmatmul.mubr.bf16.gmra.mrb[0].mxu0 %v3048
      %v3371 = vpop.f32.mrb[0].mxu0
      %v3372 = vadd.f32 %v3111, %v3371
      %v3373 = vpop.f32.mrb[0].mxu0
      %v3374 = vpop.f32.mrb[0].mxu0
      %v3375 = vadd.f32 %v3111, %v3374
      %v3376 = vpop.f32.mrb[0].mxu0
      %3377 = vmatprep.mubr.bf16.mxu0 0
      %3378 = vmatmul.mubr.bf16.gmra.mrb[0].mxu0 %v3049
      %v3379 = vpop.f32.mrb[0].mxu0
      %v3380 = vadd.f32 %v3111, %v3379
      %v3381 = vpop.f32.mrb[0].mxu0
      %v3382 = vpop.f32.mrb[0].mxu0
      %v3383 = vadd.f32 %v3111, %v3382
      %v3384 = vpop.f32.mrb[0].mxu0
      %3385 = vmatprep.mubr.bf16.mxu0 0
      %3386 = vmatmul.mubr.bf16.gmra.mrb[0].mxu0 %v3050
      %v3387 = vpop.f32.mrb[0].mxu0
      %v3388 = vadd.f32 %v3111, %v3387
      %v3389 = vpop.f32.mrb[0].mxu0
      %v3390 = vpop.f32.mrb[0].mxu0
      %v3391 = vadd.f32 %v3111, %v3390
      %v3392 = vpop.f32.mrb[0].mxu0
      %3393 = vmatprep.mubr.bf16.mxu0 0
      %3394 = vmatmul.mubr.bf16.gmra.mrb[0].mxu0 %v3051
      %v3395 = vpop.f32.mrb[0].mxu0
      %v3396 = vadd.f32 %v3111, %v3395
      %v3397 = vpop.f32.mrb[0].mxu0
      %v3398 = vpop.f32.mrb[0].mxu0
      %v3399 = vadd.f32 %v3111, %v3398
      %v3400 = vpop.f32.mrb[0].mxu0
      %3401 = vmatprep.mubr.bf16.mxu0 0
      %3402 = vmatmul.mubr.bf16.gmra.mrb[0].mxu0 %v3052
      %v3403 = vpop.f32.mrb[0].mxu0
      %v3404 = vadd.f32 %v3111, %v3403
      %v3405 = vpop.f32.mrb[0].mxu0
      %v3406 = vpop.f32.mrb[0].mxu0
      %v3407 = vadd.f32 %v3111, %v3406
      %v3408 = vpop.f32.mrb[0].mxu0
      %3409 = vmatprep.mubr.bf16.mxu0 0
      %3410 = vmatmul.mubr.bf16.gmra.mrb[0].mxu0 %v3053
      %v3411 = vpop.f32.mrb[0].mxu0
      %v3412 = vadd.f32 %v3111, %v3411
      %v3413 = vpop.f32.mrb[0].mxu0
      %v3414 = vpop.f32.mrb[0].mxu0
      %v3415 = vadd.f32 %v3111, %v3414
      %v3416 = vpop.f32.mrb[0].mxu0
      %3417 = vmatprep.mubr.bf16.mxu0 0
      %3418 = vmatmul.mubr.bf16.gmra.mrb[0].mxu0 %v3054
      %v3419 = vpop.f32.mrb[0].mxu0
      %v3420 = vadd.f32 %v3111, %v3419
      %v3421 = vpop.f32.mrb[0].mxu0
      %v3422 = vpop.f32.mrb[0].mxu0
      %v3423 = vadd.f32 %v3111, %v3422
      %v3424 = vpop.f32.mrb[0].mxu0
      %3425 = vmatprep.mubr.bf16.mxu0 0
      %3426 = vmatmul.mubr.bf16.gmra.mrb[0].mxu0 %v3055
      %v3427 = vpop.f32.mrb[0].mxu0
      %v3428 = vadd.f32 %v3111, %v3427
      %v3429 = vpop.f32.mrb[0].mxu0
      %v3430 = vpop.f32.mrb[0].mxu0
      %v3431 = vadd.f32 %v3111, %v3430
      %v3432 = vpop.f32.mrb[0].mxu0
      %3433 = vmatprep.mubr.bf16.mxu0 0
      %3434 = vmatmul.mubr.bf16.gmra.mrb[0].mxu0 %v3056
      %v3435 = vpop.f32.mrb[0].mxu0
      %v3436 = vadd.f32 %v3111, %v3435
      %v3437 = vpop.f32.mrb[0].mxu0
      %v3438 = vpop.f32.mrb[0].mxu0
      %v3439 = vadd.f32 %v3111, %v3438
      %v3440 = vpop.f32.mrb[0].mxu0
      %3441 = vmatprep.mubr.bf16.mxu0 0
      %3442 = vmatmul.mubr.bf16.gmra.mrb[0].mxu0 %v3057
      %v3443 = vpop.f32.mrb[0].mxu0
      %v3444 = vadd.f32 %v3111, %v3443
      %v3445 = vpop.f32.mrb[0].mxu0
      %v3446 = vpop.f32.mrb[0].mxu0
      %v3447 = vadd.f32 %v3111, %v3446
      %v3448 = vpop.f32.mrb[0].mxu0
      %3449 = vmatprep.mubr.bf16.mxu0 0
      %3450 = vmatmul.mubr.bf16.gmra.mrb[0].mxu0 %v3058
      %v3451 = vpop.f32.mrb[0].mxu0
      %v3452 = vadd.f32 %v3111, %v3451
      %v3453 = vpop.f32.mrb[0].mxu0
      %v3454 = vpop.f32.mrb[0].mxu0
      %v3455 = vadd.f32 %v3111, %v3454
      %v3456 = vpop.f32.mrb[0].mxu0
      %3457 = vmatprep.mubr.bf16.mxu0 0
      %3458 = vmatmul.mubr.bf16.gmra.mrb[0].mxu0 %v3059
      %v3459 = vpop.f32.mrb[0].mxu0
      %v3460 = vadd.f32 %v3111, %v3459
      %v3461 = vpop.f32.mrb[0].mxu0
      %v3462 = vpop.f32.mrb[0].mxu0
      %v3463 = vadd.f32 %v3111, %v3462
      %v3464 = vpop.f32.mrb[0].mxu0
      %3465 = vmatprep.mubr.bf16.mxu0 0
      %3466 = vmatmul.mubr.bf16.gmra.mrb[0].mxu0 %v3060
      %v3467 = vpop.f32.mrb[0].mxu0
      %v3468 = vadd.f32 %v3111, %v3467
      %v3469 = vpop.f32.mrb[0].mxu0
      %v3470 = vpop.f32.mrb[0].mxu0
      %v3471 = vadd.f32 %v3111, %v3470
      %v3472 = vpop.f32.mrb[0].mxu0
      %3473 = vmatprep.mubr.bf16.mxu0 0
      %3474 = vmatmul.mubr.bf16.gmra.mrb[0].mxu0 %v3061
      %v3475 = vpop.f32.mrb[0].mxu0
      %v3476 = vadd.f32 %v3111, %v3475
      %v3477 = vpop.f32.mrb[0].mxu0
      %v3478 = vpop.f32.mrb[0].mxu0
      %v3479 = vadd.f32 %v3111, %v3478
      %v3480 = vpop.f32.mrb[0].mxu0
      %3481 = vmatprep.mubr.bf16.mxu0 0
      %3482 = vmatmul.mubr.bf16.gmra.mrb[0].mxu0 %v3062
      %v3483 = vpop.f32.mrb[0].mxu0
      %v3484 = vadd.f32 %v3111, %v3483
      %v3485 = vpop.f32.mrb[0].mxu0
      %v3486 = vpop.f32.mrb[0].mxu0
      %v3487 = vadd.f32 %v3111, %v3486
      %v3488 = vpop.f32.mrb[0].mxu0
      %3489 = vmatprep.mubr.bf16.mxu0 0
      %3490 = vmatmul.mubr.bf16.gmra.mrb[0].mxu0 %v3063
      %v3491 = vpop.f32.mrb[0].mxu0
      %v3492 = vadd.f32 %v3111, %v3491
      %v3493 = vpop.f32.mrb[0].mxu0
      %v3494 = vpop.f32.mrb[0].mxu0
      %v3495 = vadd.f32 %v3111, %v3494
      %v3496 = vpop.f32.mrb[0].mxu0
      %3497 = vmatprep.mubr.bf16.mxu0 0
      %3498 = vmatmul.mubr.bf16.gmra.mrb[0].mxu0 %v3064
      %v3499 = vpop.f32.mrb[0].mxu0
      %v3500 = vadd.f32 %v3111, %v3499
      %v3501 = vpop.f32.mrb[0].mxu0
      %v3502 = vpop.f32.mrb[0].mxu0
      %v3503 = vadd.f32 %v3111, %v3502
      %v3504 = vpop.f32.mrb[0].mxu0
      %3505 = vmatprep.mubr.bf16.mxu0 0
      %3506 = vmatmul.mubr.bf16.gmra.mrb[0].mxu0 %v3065
      %v3507 = vpop.f32.mrb[0].mxu0
      %v3508 = vadd.f32 %v3111, %v3507
      %v3509 = vpop.f32.mrb[0].mxu0
      %v3510 = vpop.f32.mrb[0].mxu0
      %v3511 = vadd.f32 %v3111, %v3510
      %v3512 = vpop.f32.mrb[0].mxu0
      %3513 = vmatprep.mubr.bf16.mxu0 0
      %3514 = vmatmul.mubr.bf16.gmra.mrb[0].mxu0 %v3066
      %v3515 = vpop.f32.mrb[0].mxu0
      %v3516 = vadd.f32 %v3111, %v3515
      %v3517 = vpop.f32.mrb[0].mxu0
      %v3518 = vpop.f32.mrb[0].mxu0
      %v3519 = vadd.f32 %v3111, %v3518
      %v3520 = vpop.f32.mrb[0].mxu0
      %3521 = vmatprep.mubr.bf16.mxu0 0
      %3522 = vmatmul.mubr.bf16.gmra.mrb[0].mxu0 %v3067
      %v3523 = vpop.f32.mrb[0].mxu0
      %v3524 = vadd.f32 %v3111, %v3523
      %v3525 = vpop.f32.mrb[0].mxu0
      %v3526 = vpop.f32.mrb[0].mxu0
      %v3527 = vadd.f32 %v3111, %v3526
      %v3528 = vpop.f32.mrb[0].mxu0
      %3529 = vmatprep.mubr.bf16.mxu0 0
      %3530 = vmatmul.mubr.bf16.gmra.mrb[0].mxu0 %v3068
      %v3531 = vpop.f32.mrb[0].mxu0
      %v3532 = vadd.f32 %v3111, %v3531
      %v3533 = vpop.f32.mrb[0].mxu0
      %v3534 = vpop.f32.mrb[0].mxu0
      %v3535 = vadd.f32 %v3111, %v3534
      %v3536 = vpop.f32.mrb[0].mxu0
      %3537 = vmatprep.mubr.bf16.mxu0 0
      %3538 = vmatmul.mubr.bf16.gmra.mrb[0].mxu0 %v3069
      %v3539 = vpop.f32.mrb[0].mxu0
      %v3540 = vadd.f32 %v3111, %v3539
      %v3541 = vpop.f32.mrb[0].mxu0
      %v3542 = vpop.f32.mrb[0].mxu0
      %v3543 = vadd.f32 %v3111, %v3542
      %v3544 = vpop.f32.mrb[0].mxu0
      %3545 = vmatprep.mubr.bf16.mxu0 0
      %3546 = vmatmul.mubr.bf16.gmra.mrb[0].mxu0 %v3070
      %v3547 = vpop.f32.mrb[0].mxu0
      %v3548 = vadd.f32 %v3111, %v3547
      %v3549 = vpop.f32.mrb[0].mxu0
      %v3550 = vpop.f32.mrb[0].mxu0
      %v3551 = vadd.f32 %v3111, %v3550
      %v3552 = vpop.f32.mrb[0].mxu0
      %3553 = vmatprep.mubr.bf16.mxu0 0
      %3554 = vmatmul.mubr.bf16.gmra.mrb[0].mxu0 %v3071
      %v3555 = vpop.f32.mrb[0].mxu0
      %v3556 = vadd.f32 %v3111, %v3555
      %v3557 = vpop.f32.mrb[0].mxu0
      %v3558 = vpop.f32.mrb[0].mxu0
      %v3559 = vadd.f32 %v3111, %v3558
      %v3560 = vpop.f32.mrb[0].mxu0
      %3561 = vmatprep.mubr.bf16.mxu0 0
      %3562 = vmatmul.mubr.bf16.gmra.mrb[0].mxu0 %v3072
      %v3563 = vpop.f32.mrb[0].mxu0
      %v3564 = vadd.f32 %v3111, %v3563
      %v3565 = vpop.f32.mrb[0].mxu0
      %v3566 = vpop.f32.mrb[0].mxu0
      %v3567 = vadd.f32 %v3111, %v3566
      %v3568 = vpop.f32.mrb[0].mxu0
      %3569 = vmatprep.mubr.bf16.mxu0 0
      %3570 = vmatmul.mubr.bf16.gmra.mrb[0].mxu0 %v3073
      %v3571 = vpop.f32.mrb[0].mxu0
      %v3572 = vadd.f32 %v3111, %v3571
      %v3573 = vpop.f32.mrb[0].mxu0
      %v3574 = vpop.f32.mrb[0].mxu0
      %v3575 = vadd.f32 %v3111, %v3574
      %v3576 = vpop.f32.mrb[0].mxu0
      %3577 = vmatprep.mubr.bf16.mxu0 0
      %3578 = vmatmul.mubr.bf16.gmra.mrb[0].mxu0 %v3074
      %v3579 = vpop.f32.mrb[0].mxu0
      %v3580 = vadd.f32 %v3111, %v3579
      %v3581 = vpop.f32.mrb[0].mxu0
      %v3582 = vpop.f32.mrb[0].mxu0
      %v3583 = vadd.f32 %v3111, %v3582
      %v3584 = vpop.f32.mrb[0].mxu0
      %3585 = vmatprep.mubr.bf16.mxu0 0
      %3586 = vmatmul.mubr.bf16.gmra.mrb[0].mxu0 %v3075
      %v3587 = vpop.f32.mrb[0].mxu0
      %v3588 = vadd.f32 %v3111, %v3587
      %v3589 = vpop.f32.mrb[0].mxu0
      %v3590 = vpop.f32.mrb[0].mxu0
      %v3591 = vadd.f32 %v3111, %v3590
      %v3592 = vpop.f32.mrb[0].mxu0
      %3593 = vmatprep.mubr.bf16.mxu0 0
      %3594 = vmatmul.mubr.bf16.gmra.mrb[0].mxu0 %v3076
      %v3595 = vpop.f32.mrb[0].mxu0
      %v3596 = vadd.f32 %v3111, %v3595
      %v3597 = vpop.f32.mrb[0].mxu0
      %v3598 = vpop.f32.mrb[0].mxu0
      %v3599 = vadd.f32 %v3111, %v3598
      %v3600 = vpop.f32.mrb[0].mxu0
      %3601 = vmatprep.mubr.bf16.mxu0 0
      %3602 = vmatmul.mubr.bf16.gmra.mrb[0].mxu0 %v3077
      %v3603 = vpop.f32.mrb[0].mxu0
      %v3604 = vadd.f32 %v3111, %v3603
      %v3605 = vpop.f32.mrb[0].mxu0
      %v3606 = vpop.f32.mrb[0].mxu0
      %v3607 = vadd.f32 %v3111, %v3606
      %v3608 = vpop.f32.mrb[0].mxu0
      %3609 = vmatprep.mubr.bf16.mxu0 0
      %3610 = vmatmul.mubr.bf16.gmra.mrb[0].mxu0 %v3078
      %v3611 = vpop.f32.mrb[0].mxu0
      %v3612 = vadd.f32 %v3111, %v3611
      %v3613 = vpop.f32.mrb[0].mxu0
      %v3614 = vpop.f32.mrb[0].mxu0
      %v3615 = vadd.f32 %v3111, %v3614
      %v3616 = vpop.f32.mrb[0].mxu0
      %3617 = vmatprep.mubr.bf16.mxu0 0
      %3618 = vmatmul.mubr.bf16.gmra.mrb[0].mxu0 %v3079
      %v3619 = vpop.f32.mrb[0].mxu0
      %v3620 = vadd.f32 %v3111, %v3619
      %v3621 = vpop.f32.mrb[0].mxu0
      %v3622 = vpop.f32.mrb[0].mxu0
      %v3623 = vadd.f32 %v3111, %v3622
      %v3624 = vpop.f32.mrb[0].mxu0
      %3625 = vmatprep.mubr.bf16.mxu0 0
      %3626 = vmatmul.mubr.bf16.gmra.mrb[0].mxu0 %v3080
      %v3627 = vpop.f32.mrb[0].mxu0
      %v3628 = vadd.f32 %v3111, %v3627
      %v3629 = vpop.f32.mrb[0].mxu0
      %v3630 = vpop.f32.mrb[0].mxu0
      %v3631 = vadd.f32 %v3111, %v3630
      %v3632 = vpop.f32.mrb[0].mxu0
      %3633 = vmatprep.mubr.bf16.mxu0 0
      %3634 = vmatmul.mubr.bf16.gmra.mrb[0].mxu0 %v3081
      %v3635 = vpop.f32.mrb[0].mxu0
      %v3636 = vadd.f32 %v3111, %v3635
      %v3637 = vpop.f32.mrb[0].mxu0
      %v3638 = vpop.f32.mrb[0].mxu0
      %v3639 = vadd.f32 %v3111, %v3638
      %v3640 = vpop.f32.mrb[0].mxu0
      %3641 = vmatprep.mubr.bf16.mxu0 0
      %3642 = vmatmul.mubr.bf16.gmra.mrb[0].mxu0 %v3082
      %v3643 = vpop.f32.mrb[0].mxu0
      %v3644 = vadd.f32 %v3111, %v3643
      %v3645 = vpop.f32.mrb[0].mxu0
      %v3646 = vpop.f32.mrb[0].mxu0
      %v3647 = vadd.f32 %v3111, %v3646
      %v3648 = vpop.f32.mrb[0].mxu0
      %3649 = vmatprep.mubr.bf16.mxu0 0
      %3650 = vmatmul.mubr.bf16.gmra.mrb[0].mxu0 %v3083
      %v3651 = vpop.f32.mrb[0].mxu0
      %v3652 = vadd.f32 %v3111, %v3651
      %v3653 = vpop.f32.mrb[0].mxu0
      %v3654 = vpop.f32.mrb[0].mxu0
      %v3655 = vadd.f32 %v3111, %v3654
      %v3656 = vpop.f32.mrb[0].mxu0
      %3657 = vmatprep.mubr.bf16.mxu0 0
      %3658 = vmatmul.mubr.bf16.gmra.mrb[0].mxu0 %v3084
      %v3659 = vpop.f32.mrb[0].mxu0
      %v3660 = vadd.f32 %v3111, %v3659
      %v3661 = vpop.f32.mrb[0].mxu0
      %v3662 = vpop.f32.mrb[0].mxu0
      %v3663 = vadd.f32 %v3111, %v3662
      %v3664 = vpop.f32.mrb[0].mxu0
      %3665 = vmatprep.mubr.bf16.mxu0 0
      %3666 = vmatmul.mubr.bf16.gmra.mrb[0].mxu0 %v3085
      %v3667 = vpop.f32.mrb[0].mxu0
      %v3668 = vadd.f32 %v3111, %v3667
      %v3669 = vpop.f32.mrb[0].mxu0
      %v3670 = vpop.f32.mrb[0].mxu0
      %v3671 = vadd.f32 %v3111, %v3670
      %v3672 = vpop.f32.mrb[0].mxu0
      %3673 = vmatprep.mubr.bf16.mxu0 0
      %3674 = vmatmul.mubr.bf16.gmra.mrb[0].mxu0 %v3086
      %v3675 = vpop.f32.mrb[0].mxu0
      %v3676 = vadd.f32 %v3111, %v3675
      %v3677 = vpop.f32.mrb[0].mxu0
      %v3678 = vpop.f32.mrb[0].mxu0
      %v3679 = vadd.f32 %v3111, %v3678
      %v3680 = vpop.f32.mrb[0].mxu0
      %3681 = vmatprep.mubr.bf16.mxu0 0
      %3682 = vmatmul.mubr.bf16.gmra.mrb[0].mxu0 %v3087
      %v3683 = vpop.f32.mrb[0].mxu0
      %v3684 = vadd.f32 %v3111, %v3683
      %v3685 = vpop.f32.mrb[0].mxu0
      %v3686 = vpop.f32.mrb[0].mxu0
      %v3687 = vadd.f32 %v3111, %v3686
      %v3688 = vpop.f32.mrb[0].mxu0
      %3689 = vmatprep.mubr.bf16.mxu0 0
      %3690 = vmatmul.mubr.bf16.gmra.mrb[0].mxu0 %v3088
      %v3691 = vpop.f32.mrb[0].mxu0
      %v3692 = vadd.f32 %v3111, %v3691
      %v3693 = vpop.f32.mrb[0].mxu0
      %v3694 = vpop.f32.mrb[0].mxu0
      %v3695 = vadd.f32 %v3111, %v3694
      %v3696 = vpop.f32.mrb[0].mxu0
      %3697 = vmatprep.mubr.bf16.mxu0 0
      %3698 = vmatmul.mubr.bf16.gmra.mrb[0].mxu0 %v3089
      %v3699 = vpop.f32.mrb[0].mxu0
      %v3700 = vadd.f32 %v3111, %v3699
      %v3701 = vpop.f32.mrb[0].mxu0
      %v3702 = vpop.f32.mrb[0].mxu0
      %v3703 = vadd.f32 %v3111, %v3702
      %v3704 = vpop.f32.mrb[0].mxu0
      %3705 = vdwg.mxu0
      %vm3706 = vcmask 64512
      %3707 = vst.msk [vmem:[%s334] sm:$0xff] %vm3706, %v3196
      %3708 = vst.msk [vmem:[%s334 + $0x8] sm:$0xff] %vm3706, %v3199
      %3709 = vst.msk [vmem:[%s334 + $0x10] sm:$0xff] %vm3706, %v3204
      %3710 = vst.msk [vmem:[%s334 + $0x18] sm:$0xff] %vm3706, %v3207
      %3711 = vst.msk [vmem:[%s334 + $0x20] sm:$0xff] %vm3706, %v3212
      %3712 = vst.msk [vmem:[%s334 + $0x28] sm:$0xff] %vm3706, %v3215
      %3713 = vst.msk [vmem:[%s334 + $0x30] sm:$0xff] %vm3706, %v3220
      %3714 = vst.msk [vmem:[%s334 + $0x38] sm:$0xff] %vm3706, %v3223
      %3715 = vst.msk [vmem:[%s334 + $0x40] sm:$0xff] %vm3706, %v3228
      %3716 = vst.msk [vmem:[%s334 + $0x48] sm:$0xff] %vm3706, %v3231
      %3717 = vst.msk [vmem:[%s334 + $0x50] sm:$0xff] %vm3706, %v3236
      %3718 = vst.msk [vmem:[%s334 + $0x58] sm:$0xff] %vm3706, %v3239
      %3719 = vst.msk [vmem:[%s334 + $0x60] sm:$0xff] %vm3706, %v3244
      %3720 = vst.msk [vmem:[%s334 + $0x68] sm:$0xff] %vm3706, %v3247
      %3721 = vst.msk [vmem:[%s334 + $0x70] sm:$0xff] %vm3706, %v3252
      %3722 = vst.msk [vmem:[%s334 + $0x78] sm:$0xff] %vm3706, %v3255
      %3723 = vst.msk [vmem:[%s334 + $0x80] sm:$0xff] %vm3706, %v3260
      %3724 = vst.msk [vmem:[%s334 + $0x88] sm:$0xff] %vm3706, %v3263
      %3725 = vst.msk [vmem:[%s334 + $0x90] sm:$0xff] %vm3706, %v3268
      %3726 = vst.msk [vmem:[%s334 + $0x98] sm:$0xff] %vm3706, %v3271
      %3727 = vst.msk [vmem:[%s334 + $0xa0] sm:$0xff] %vm3706, %v3276
      %3728 = vst.msk [vmem:[%s334 + $0xa8] sm:$0xff] %vm3706, %v3279
      %3729 = vst.msk [vmem:[%s334 + $0xb0] sm:$0xff] %vm3706, %v3284
      %3730 = vst.msk [vmem:[%s334 + $0xb8] sm:$0xff] %vm3706, %v3287
      %3731 = vst.msk [vmem:[%s334 + $0xc0] sm:$0xff] %vm3706, %v3292
      %3732 = vst.msk [vmem:[%s334 + $0xc8] sm:$0xff] %vm3706, %v3295
      %3733 = vst.msk [vmem:[%s334 + $0xd0] sm:$0xff] %vm3706, %v3300
      %3734 = vst.msk [vmem:[%s334 + $0xd8] sm:$0xff] %vm3706, %v3303
      %3735 = vst.msk [vmem:[%s334 + $0xe0] sm:$0xff] %vm3706, %v3308
      %3736 = vst.msk [vmem:[%s334 + $0xe8] sm:$0xff] %vm3706, %v3311
      %3737 = vst.msk [vmem:[%s334 + $0xf0] sm:$0xff] %vm3706, %v3316
      %3738 = vst.msk [vmem:[%s334 + $0xf8] sm:$0xff] %vm3706, %v3319
      %3739 = vst.msk [vmem:[%s334 + $0x100] sm:$0xff] %vm3706, %v3324
      %3740 = vst.msk [vmem:[%s334 + $0x108] sm:$0xff] %vm3706, %v3327
      %3741 = vst.msk [vmem:[%s334 + $0x110] sm:$0xff] %vm3706, %v3332
      %3742 = vst.msk [vmem:[%s334 + $0x118] sm:$0xff] %vm3706, %v3335
      %3743 = vst.msk [vmem:[%s334 + $0x120] sm:$0xff] %vm3706, %v3340
      %3744 = vst.msk [vmem:[%s334 + $0x128] sm:$0xff] %vm3706, %v3343
      %3745 = vst.msk [vmem:[%s334 + $0x130] sm:$0xff] %vm3706, %v3348
      %3746 = vst.msk [vmem:[%s334 + $0x138] sm:$0xff] %vm3706, %v3351
      %3747 = vst.msk [vmem:[%s334 + $0x140] sm:$0xff] %vm3706, %v3356
      %3748 = vst.msk [vmem:[%s334 + $0x148] sm:$0xff] %vm3706, %v3359
      %3749 = vst.msk [vmem:[%s334 + $0x150] sm:$0xff] %vm3706, %v3364
      %3750 = vst.msk [vmem:[%s334 + $0x158] sm:$0xff] %vm3706, %v3367
      %3751 = vst.msk [vmem:[%s334 + $0x160] sm:$0xff] %vm3706, %v3372
      %3752 = vst.msk [vmem:[%s334 + $0x168] sm:$0xff] %vm3706, %v3375
      %3753 = vst.msk [vmem:[%s334 + $0x170] sm:$0xff] %vm3706, %v3380
      %3754 = vst.msk [vmem:[%s334 + $0x178] sm:$0xff] %vm3706, %v3383
      %3755 = vst.msk [vmem:[%s334 + $0x180] sm:$0xff] %vm3706, %v3388
      %3756 = vst.msk [vmem:[%s334 + $0x188] sm:$0xff] %vm3706, %v3391
      %3757 = vst.msk [vmem:[%s334 + $0x190] sm:$0xff] %vm3706, %v3396
      %3758 = vst.msk [vmem:[%s334 + $0x198] sm:$0xff] %vm3706, %v3399
      %3759 = vst.msk [vmem:[%s334 + $0x1a0] sm:$0xff] %vm3706, %v3404
      %3760 = vst.msk [vmem:[%s334 + $0x1a8] sm:$0xff] %vm3706, %v3407
      %3761 = vst.msk [vmem:[%s334 + $0x1b0] sm:$0xff] %vm3706, %v3412
      %3762 = vst.msk [vmem:[%s334 + $0x1b8] sm:$0xff] %vm3706, %v3415
      %3763 = vst.msk [vmem:[%s334 + $0x1c0] sm:$0xff] %vm3706, %v3420
      %3764 = vst.msk [vmem:[%s334 + $0x1c8] sm:$0xff] %vm3706, %v3423
      %3765 = vst.msk [vmem:[%s334 + $0x1d0] sm:$0xff] %vm3706, %v3428
      %3766 = vst.msk [vmem:[%s334 + $0x1d8] sm:$0xff] %vm3706, %v3431
      %3767 = vst.msk [vmem:[%s334 + $0x1e0] sm:$0xff] %vm3706, %v3436
      %3768 = vst.msk [vmem:[%s334 + $0x1e8] sm:$0xff] %vm3706, %v3439
      %3769 = vst.msk [vmem:[%s334 + $0x1f0] sm:$0xff] %vm3706, %v3444
      %3770 = vst.msk [vmem:[%s334 + $0x1f8] sm:$0xff] %vm3706, %v3447
      %3771 = vst.msk [vmem:[%s334 + $0x200] sm:$0xff] %vm3706, %v3452
      %3772 = vst.msk [vmem:[%s334 + $0x208] sm:$0xff] %vm3706, %v3455
      %3773 = vst.msk [vmem:[%s334 + $0x210] sm:$0xff] %vm3706, %v3460
      %3774 = vst.msk [vmem:[%s334 + $0x218] sm:$0xff] %vm3706, %v3463
      %3775 = vst.msk [vmem:[%s334 + $0x220] sm:$0xff] %vm3706, %v3468
      %3776 = vst.msk [vmem:[%s334 + $0x228] sm:$0xff] %vm3706, %v3471
      %3777 = vst.msk [vmem:[%s334 + $0x230] sm:$0xff] %vm3706, %v3476
      %3778 = vst.msk [vmem:[%s334 + $0x238] sm:$0xff] %vm3706, %v3479
      %3779 = vst.msk [vmem:[%s334 + $0x240] sm:$0xff] %vm3706, %v3484
      %3780 = vst.msk [vmem:[%s334 + $0x248] sm:$0xff] %vm3706, %v3487
      %3781 = vst.msk [vmem:[%s334 + $0x250] sm:$0xff] %vm3706, %v3492
      %3782 = vst.msk [vmem:[%s334 + $0x258] sm:$0xff] %vm3706, %v3495
      %3783 = vst.msk [vmem:[%s334 + $0x260] sm:$0xff] %vm3706, %v3500
      %3784 = vst.msk [vmem:[%s334 + $0x268] sm:$0xff] %vm3706, %v3503
      %3785 = vst.msk [vmem:[%s334 + $0x270] sm:$0xff] %vm3706, %v3508
      %3786 = vst.msk [vmem:[%s334 + $0x278] sm:$0xff] %vm3706, %v3511
      %3787 = vst.msk [vmem:[%s334 + $0x280] sm:$0xff] %vm3706, %v3516
      %3788 = vst.msk [vmem:[%s334 + $0x288] sm:$0xff] %vm3706, %v3519
      %3789 = vst.msk [vmem:[%s334 + $0x290] sm:$0xff] %vm3706, %v3524
      %3790 = vst.msk [vmem:[%s334 + $0x298] sm:$0xff] %vm3706, %v3527
      %3791 = vst.msk [vmem:[%s334 + $0x2a0] sm:$0xff] %vm3706, %v3532
      %3792 = vst.msk [vmem:[%s334 + $0x2a8] sm:$0xff] %vm3706, %v3535
      %3793 = vst.msk [vmem:[%s334 + $0x2b0] sm:$0xff] %vm3706, %v3540
      %3794 = vst.msk [vmem:[%s334 + $0x2b8] sm:$0xff] %vm3706, %v3543
      %3795 = vst.msk [vmem:[%s334 + $0x2c0] sm:$0xff] %vm3706, %v3548
      %3796 = vst.msk [vmem:[%s334 + $0x2c8] sm:$0xff] %vm3706, %v3551
      %3797 = vst.msk [vmem:[%s334 + $0x2d0] sm:$0xff] %vm3706, %v3556
      %3798 = vst.msk [vmem:[%s334 + $0x2d8] sm:$0xff] %vm3706, %v3559
      %3799 = vst.msk [vmem:[%s334 + $0x2e0] sm:$0xff] %vm3706, %v3564
      %3800 = vst.msk [vmem:[%s334 + $0x2e8] sm:$0xff] %vm3706, %v3567
      %3801 = vst.msk [vmem:[%s334 + $0x2f0] sm:$0xff] %vm3706, %v3572
      %3802 = vst.msk [vmem:[%s334 + $0x2f8] sm:$0xff] %vm3706, %v3575
      %3803 = vst.msk [vmem:[%s334 + $0x300] sm:$0xff] %vm3706, %v3580
      %3804 = vst.msk [vmem:[%s334 + $0x308] sm:$0xff] %vm3706, %v3583
      %3805 = vst.msk [vmem:[%s334 + $0x310] sm:$0xff] %vm3706, %v3588
      %3806 = vst.msk [vmem:[%s334 + $0x318] sm:$0xff] %vm3706, %v3591
      %3807 = vst.msk [vmem:[%s334 + $0x320] sm:$0xff] %vm3706, %v3596
      %3808 = vst.msk [vmem:[%s334 + $0x328] sm:$0xff] %vm3706, %v3599
      %3809 = vst.msk [vmem:[%s334 + $0x330] sm:$0xff] %vm3706, %v3604
      %3810 = vst.msk [vmem:[%s334 + $0x338] sm:$0xff] %vm3706, %v3607
      %3811 = vst.msk [vmem:[%s334 + $0x340] sm:$0xff] %vm3706, %v3612
      %3812 = vst.msk [vmem:[%s334 + $0x348] sm:$0xff] %vm3706, %v3615
      %3813 = vst.msk [vmem:[%s334 + $0x350] sm:$0xff] %vm3706, %v3620
      %3814 = vst.msk [vmem:[%s334 + $0x358] sm:$0xff] %vm3706, %v3623
      %3815 = vst.msk [vmem:[%s334 + $0x360] sm:$0xff] %vm3706, %v3628
      %3816 = vst.msk [vmem:[%s334 + $0x368] sm:$0xff] %vm3706, %v3631
      %3817 = vst.msk [vmem:[%s334 + $0x370] sm:$0xff] %vm3706, %v3636
      %3818 = vst.msk [vmem:[%s334 + $0x378] sm:$0xff] %vm3706, %v3639
      %3819 = vst.msk [vmem:[%s334 + $0x380] sm:$0xff] %vm3706, %v3644
      %3820 = vst.msk [vmem:[%s334 + $0x388] sm:$0xff] %vm3706, %v3647
      %3821 = vst.msk [vmem:[%s334 + $0x390] sm:$0xff] %vm3706, %v3652
      %3822 = vst.msk [vmem:[%s334 + $0x398] sm:$0xff] %vm3706, %v3655
      %3823 = vst.msk [vmem:[%s334 + $0x3a0] sm:$0xff] %vm3706, %v3660
      %3824 = vst.msk [vmem:[%s334 + $0x3a8] sm:$0xff] %vm3706, %v3663
      %3825 = vst.msk [vmem:[%s334 + $0x3b0] sm:$0xff] %vm3706, %v3668
      %3826 = vst.msk [vmem:[%s334 + $0x3b8] sm:$0xff] %vm3706, %v3671
      %3827 = vst.msk [vmem:[%s334 + $0x3c0] sm:$0xff] %vm3706, %v3676
      %3828 = vst.msk [vmem:[%s334 + $0x3c8] sm:$0xff] %vm3706, %v3679
      %3829 = vst.msk [vmem:[%s334 + $0x3d0] sm:$0xff] %vm3706, %v3684
      %3830 = vst.msk [vmem:[%s334 + $0x3d8] sm:$0xff] %vm3706, %v3687
      %3831 = vst.msk [vmem:[%s334 + $0x3e0] sm:$0xff] %vm3706, %v3692
      %3832 = vst.msk [vmem:[%s334 + $0x3e8] sm:$0xff] %vm3706, %v3695
      %3833 = vst.msk [vmem:[%s334 + $0x3f0] sm:$0xff] %vm3706, %v3700
      %3834 = vst.msk [vmem:[%s334 + $0x3f8] sm:$0xff] %vm3706, %v3703
      %s3835 = smul.u32 128, %s20
      %p3836 = scmp.lt.s32.totalorder %s3835, 255
      %s3837 = scalar_select %p3836, %s3835, 255
      %s3838 = smul.addr %s3837, 8
      %s3839 = scalar_lea.vmem %s9, %s3838
      // Predicated region
      $region57: #{tpu_custom_call.1} parent=55 // pred_check
        %p3840 = pneg %p232
      $region58: #{tpu_custom_call.1} parent=55 // pred_check_branch
        %3842 = sbr.rel (%p3840) target = $region60
      $region59: #{tpu_custom_call.1} parent=55 // pred_region
        %s3843 = smul.u32 128, %s20
      $region60: #{tpu_custom_call.1} parent=55 // pred_fallthru
        _
    $region56: #{tpu_custom_call.1} parent=5 // pred_fallthru
      _
    %p3844 = scmp.le.s32.totalorder 2, %s15
    // Predicated region
    $region61: #{tpu_custom_call.1} parent=5 // pred_check
      %p3845 = pneg %p3844
    $region62: #{tpu_custom_call.1} parent=5 // pred_check_branch
      %3847 = sbr.rel (%p3845) target = $region64
    $region63: #{tpu_custom_call.1} parent=5 // pred_region
      %s3848 = ssub.s32 %s15, 2
      // Predicated region
      $region65: #{tpu_custom_call.1} parent=63 // pred_check
        %p3849 = pneg %p238
      $region66: #{tpu_custom_call.1} parent=63 // pred_check_branch
        %3851 = sbr.rel (%p3849) target = $region68
      $region67: #{tpu_custom_call.1} parent=63 // pred_region
        %s3852 = smul.u32 128, %s21
        %p3853 = scmp.lt.s32.totalorder %s3852, 255
        %s3854 = scalar_select %p3853, %s3852, 255
        %s3855 = smul.addr %s3854, 8
        %s3856 = scalar_lea.vmem %s9, %s3855
      $region68: #{tpu_custom_call.1} parent=63 // pred_fallthru
        _
    $region64: #{tpu_custom_call.1} parent=5 // pred_fallthru
      _
  $region6: #{tpu_custom_call.1} parent=0 // loop_footer
    %s19 = sadd.s32 1, %s15
  $region7: #{tpu_custom_call.1} parent=0 // loop_footer_branch
    %14 = sbr.rel target = $region3
  $region8: #{tpu_custom_call.1} parent=0 // loop_exit
    _

</llo_original>
